<compile_context>
chip_gen: v6e
topology: v6e:2x2x1
jax: 0.10.0
libtpu: 0.0.40
codegen_flags: <defaults>
</compile_context>

<pallas_src>
import jax
import jax.numpy as jnp
from jax import lax
from jax.experimental import pallas as pl
from jax.experimental.pallas import tpu as pltpu


def _round_up(n, m):
    return ((n + m - 1) // m) * m


def _elu(v):
    # PyTorch nn.ELU (alpha=1); exp argument clamped so the untaken branch is finite.
    return jnp.where(v > 0, v, jnp.exp(jnp.minimum(v, 0.0)) - 1.0)


def _shift_prev(v):
    # v[:, t] -> v[:, t-1]; zero shifted into column 0.  Cheap lane shift, no LxL matmul.
    return jnp.concatenate([jnp.zeros_like(v[:, :1]), v[:, :-1]], axis=1)


def _shift_next(v):
    # v[:, t] -> v[:, t+1]; zero shifted into the last column.
    return jnp.concatenate([v[:, 1:], jnp.zeros_like(v[:, :1])], axis=1)


def eeg_encoder(x, p, *, tb=8):
    """Fused EEGEncoder forward (eval mode).

    x: (B, C, T) raw EEG.  Returns (features (B, P) f32, pooled (B, 32) f32).
    pooled is emitted as a tiny secondary output for validation of the f32 frontend.
    """
    B, C, T = x.shape
    L = C * T
    P = p["fc_w"].shape[0]                       # lane-dense: multiple of 128
    R = p["ca_w1"].shape[0]
    eps = 1e-5

    TB = max(8, tb)                              # >= f32 sublane height; raise for large B
    Bpad = _round_up(B, TB)
    Lpad = _round_up(L + 1, 128)                 # strictly > L so wrap lanes read zeros
    N = TB * Lpad
    G = Bpad // TB
    Lf = float(L)

    # ---- host-side folding: conv bias + eval-mode BatchNorm -> scale folded into W, shift ----
    s1 = p["bn1_g"] / jnp.sqrt(p["bn1_v"] + eps)
    t1 = (p["bn1_b"] + s1 * (p["conv1_b"] - p["bn1_m"])).reshape(16, 1).astype(jnp.float32)
    w1 = (p["conv1_w"][:, 0, :] * s1[:, None]).astype(jnp.float32)          # (16, 3)

    s2 = p["bn2_g"] / jnp.sqrt(p["bn2_v"] + eps)
    t2 = (p["bn2_b"] + s2 * (p["conv2_b"] - p["bn2_m"])).reshape(32, 1).astype(jnp.float32)
    # conv2 as one K=48 matmul: hcat rows are [h[t-1](16); h[t](16); h[t+1](16)].
    w2 = (jnp.transpose(p["conv2_w"], (0, 2, 1)).reshape(32, 48)
          * s2[:, None]).astype(jnp.float32)                                # (32, 48)

    s3 = p["bn3_g"] / jnp.sqrt(p["bn3_v"] + eps)
    t3 = p["bn3_b"] + s3 * (p["fc_b"] - p["bn3_m"])                         # fc bias folded in
    wp = jnp.transpose(p["fc_w"]).astype(jnp.bfloat16)                      # (32, P)  MXU bf16
    wr = jnp.transpose(p["res_w"]).astype(jnp.bfloat16)                     # (P, P)   MXU bf16

    col = lambda a: a.reshape(-1, 1).astype(jnp.float32)
    row = lambda a: a.reshape(1, -1).astype(jnp.float32)

    # ---- input layout: TB batch items per grid row, each a zero-padded Lpad lane segment ----
    xz = jnp.zeros((Bpad, Lpad), jnp.float32).at[:B, :L].set(
        x.reshape(B, L).astype(jnp.float32))
    xg = xz.reshape(G, N)                                                   # host reshape: free

    valid = (jnp.arange(Lpad) < L).astype(jnp.float32)                      # (Lpad,)
    bmask = jnp.tile(valid, TB).reshape(1, N)                               # time-validity mask
    # Block-diagonal per-item mean matrix: 1/L on valid lanes of segment b, else 0.
    seg_pool = (jnp.kron(jnp.eye(TB, dtype=jnp.float32),
                         valid.reshape(1, Lpad)) / Lf)                      # (TB, N)

    def kernel(x_ref, bmask_ref, segpool_ref,
               w1_ref, t1_ref, w2_ref, t2_ref,
               wc1_ref, bc1_ref, wc2_ref, bc2_ref,
               wt1_ref, bt1_ref, wt2_ref, bt2_ref,
               wp_ref, s3_ref, t3_ref, wr_ref, br_ref, g_ref, b_ref,
               feat_ref, pooled_ref):
        f32 = jnp.float32
        xv = x_ref[...]                          # (1, N)
        bm = bmask_ref[...]                      # (1, N)
        sp = segpool_ref[...]                    # (TB, N)

        # ---- Conv1d(1->16, k3, p1) + BN + ELU (shifts = lane shifts, BN scale folded) ----
        xp, xn = _shift_prev(xv), _shift_next(xv)
        w1c = w1_ref[...]                        # (16, 3)
        h = w1c[:, 0:1] * xp + w1c[:, 1:2] * xv + w1c[:, 2:3] * xn + t1_ref[...]
        h = _elu(h) * bm                         # zero padded lanes == PyTorch zero-pad for conv2

        # ---- Conv1d(16->32, k3, p1) + BN + ELU : single MXU matmul with K=48 ----
        hcat = jnp.concatenate([_shift_prev(h), h, _shift_next(h)], axis=0)   # (48, N)
        h2 = _elu(jnp.dot(w2_ref[...], hcat, preferred_element_type=f32)
                  + t2_ref[...])                                               # (32, N)

        # ---- ChannelAttention (per-item time mean, squeeze-excite, gate broadcast) ----
        v = lax.dot_general(h2, sp, (((1,), (1,)), ((), ())),
                            preferred_element_type=f32)                       # (32, TB)
        z = jnp.maximum(jnp.dot(wc1_ref[...], v, preferred_element_type=f32)
                        + bc1_ref[...], 0.0)                                   # (R, TB)
        a = jax.nn.sigmoid(jnp.dot(wc2_ref[...], z, preferred_element_type=f32)
                           + bc2_ref[...])                                     # (32, TB)
        gate = jnp.dot(a * Lf, sp, preferred_element_type=f32)                 # (32, N)
        h3 = h2 * gate

        # ---- TemporalAttention (per-time-step channel gate) ----
        zt = jnp.maximum(jnp.dot(wt1_ref[...], h3, preferred_element_type=f32)
                         + bt1_ref[...], 0.0)                                  # (R, N)
        at = jax.nn.sigmoid(jnp.dot(wt2_ref[...], zt, preferred_element_type=f32)
                            + bt2_ref[...])                                    # (32, N)
        h4 = h3 * at

        # ---- AdaptiveAvgPool1d(1): per-item masked mean, directly in (TB, 32) row layout ----
        pooled = lax.dot_general(sp, h4, (((1,), (1,)), ((), ())),
                                 preferred_element_type=f32)                   # (TB, 32)
        pooled_ref[...] = pooled

        # ---- feature head: Linear+BN (fc bias folded) + ResidualAdd(SiLU, Linear) + LayerNorm ----
        f = jnp.dot(pooled.astype(jnp.bfloat16), wp_ref[...],
                    preferred_element_type=f32)
        f = f * s3_ref[...] + t3_ref[...]
        silu = f * jax.nn.sigmoid(f)             # SiLU in f32 (v5e: no bf16 EUP)
        y = jnp.dot(silu.astype(jnp.bfloat16), wr_ref[...],
                    preferred_element_type=f32) + br_ref[...]
        r = f + y                                # Dropout = identity (eval)
        mu = jnp.mean(r, axis=-1, keepdims=True)
        var = jnp.mean(jnp.square(r - mu), axis=-1, keepdims=True)
        feat_ref[...] = (r - mu) * lax.rsqrt(var + 1e-5) * g_ref[...] + b_ref[...]

    rep2 = lambda shape: pl.BlockSpec(shape, lambda i: (0, 0))   # VMEM-resident (fetched once)

    in_specs = [
        pl.BlockSpec((1, N), lambda i: (i, 0)),      # x rows for this batch tile (pipelined)
        rep2((1, N)),                                # time-validity mask
        rep2((TB, N)),                               # block-diagonal mean matrix
        rep2((16, 3)), rep2((16, 1)),                # conv1 folded weight / shift
        rep2((32, 48)), rep2((32, 1)),               # conv2 folded weight / shift
        rep2((R, 32)), rep2((R, 1)), rep2((32, R)), rep2((32, 1)),   # channel attention
        rep2((R, 32)), rep2((R, 1)), rep2((32, R)), rep2((32, 1)),   # temporal attention
        rep2((32, P)), rep2((1, P)), rep2((1, P)),   # head: Wp (bf16), BN scale, shift(+fc bias)
        rep2((P, P)), rep2((1, P)),                  # head: Wr (bf16), residual bias
        rep2((1, P)), rep2((1, P)),                  # LayerNorm gamma / beta
    ]
    # NOTE: on v7x with large P, the (P,P) weight spec could be single-buffered
    # (pipeline_mode=pl.Buffered(1)) to save VMEM; not needed at these sizes.
    out_specs = [
        pl.BlockSpec((TB, P), lambda i: (i, 0)),     # features: lane-dense blocks
        pl.BlockSpec((TB, 32), lambda i: (i, 0)),    # pooled (validation/debug output)
    ]
    out_shape = (jax.ShapeDtypeStruct((Bpad, P), jnp.float32),
                 jax.ShapeDtypeStruct((Bpad, 32), jnp.float32))

    flops = G * (6 * 16 * N                          # conv1 taps
                 + 2 * 32 * 48 * N                   # conv2 matmul
                 + 2 * 2 * R * 32 * N                # temporal attention matmuls
                 + 3 * 2 * 32 * TB * N               # two means + gate broadcast
                 + 2 * TB * (32 * P + P * P))        # feature head
    transcend = G * ((16 + 32 + 32) * N + TB * 3 * P)
    bytes_acc = (xg.size * 4 + seg_pool.size * 4 + bmask.size * 4
                 + wp.size * 2 + wr.size * 2 + (32 * 48 + 16 * 3 + 4 * (R * 32 + 32 * R)) * 4
                 + 10 * P * 4 + Bpad * (P + 32) * 4)
    cost = pl.CostEstimate(flops=int(flops), transcendentals=int(transcend),
                           bytes_accessed=int(bytes_acc))

    feats, pooled = pl.pallas_call(
        kernel,
        out_shape=out_shape,
        grid=(G,),
        in_specs=in_specs,
        out_specs=out_specs,
        compiler_params=pltpu.CompilerParams(
            dimension_semantics=("parallel",),       # both TensorCores on v7x
            vmem_limit_bytes=32 * 1024 * 1024),      # explicit budget, safe on v5e/v6e/v7x
        cost_estimate=cost,
    )(xg, bmask, seg_pool,
      w1, t1, w2, t2,
      p["ca_w1"].astype(jnp.float32), col(p["ca_b1"]),
      p["ca_w2"].astype(jnp.float32), col(p["ca_b2"]),
      p["ta_w1"].astype(jnp.float32), col(p["ta_b1"]),
      p["ta_w2"].astype(jnp.float32), col(p["ta_b2"]),
      wp, row(s3), row(t3), wr, row(p["res_b"]), row(p["ln_g"]), row(p["ln_b"]))
    return feats[:B], pooled[:B]


# ----------------------------------------------------------------------------
# Pure-JAX f32 reference of EEGEncoder.forward (eval mode)
# ----------------------------------------------------------------------------
def _bn_channels(h, g, b, m, v, eps=1e-5):
    s = g / jnp.sqrt(v + eps)
    return h * s[None, :, None] + (b - m * s)[None, :, None]


def _conv1d_ref(x, w, b):
    L = x.shape[-1]
    xp = jnp.pad(x, ((0, 0), (0, 0), (1, 1)))
    out = (jnp.einsum("oi,bil->bol", w[:, :, 0], xp[:, :, 0:L])
           + jnp.einsum("oi,bil->bol", w[:, :, 1], xp[:, :, 1:L + 1])
           + jnp.einsum("oi,bil->bol", w[:, :, 2], xp[:, :, 2:L + 2]))
    return out + b[None, :, None]


def eeg_encoder_ref(x, p):
    B, C, T = x.shape
    eps = 1e-5
    z = x.reshape(B, 1, C * T).astype(jnp.float32)
    h = jax.nn.elu(_bn_channels(_conv1d_ref(z, p["conv1_w"], p["conv1_b"]),
                                p["bn1_g"], p["bn1_b"], p["bn1_m"], p["bn1_v"]))
    h = jax.nn.elu(_bn_channels(_conv1d_ref(h, p["conv2_w"], p["conv2_b"]),
                                p["bn2_g"], p["bn2_b"], p["bn2_m"], p["bn2_v"]))
    v = h.mean(axis=2)
    a = jax.nn.sigmoid(jnp.maximum(v @ p["ca_w1"].T + p["ca_b1"], 0.0)
                       @ p["ca_w2"].T + p["ca_b2"])
    h = h * a[:, :, None]
    hp = jnp.transpose(h, (0, 2, 1))
    at = jax.nn.sigmoid(jnp.maximum(hp @ p["ta_w1"].T + p["ta_b1"], 0.0)
                        @ p["ta_w2"].T + p["ta_b2"])
    h = h * jnp.transpose(at, (0, 2, 1))
    pooled = h.mean(axis=2)                                       # (B, 32)
    f = pooled @ p["fc_w"].T + p["fc_b"]
    s3 = p["bn3_g"] / jnp.sqrt(p["bn3_v"] + eps)
    f = f * s3 + (p["bn3_b"] - p["bn3_m"] * s3)
    r = f + (jax.nn.silu(f) @ p["res_w"].T + p["res_b"])
    mu = r.mean(axis=-1, keepdims=True)
    var = jnp.mean(jnp.square(r - mu), axis=-1, keepdims=True)
    out = (r - mu) * jax.lax.rsqrt(var + eps) * p["ln_g"] + p["ln_b"]
    return pooled, out


if __name__ == "__main__":
    B, C, T = 2, 4, 16          # L = C*T = 64 (padded in-kernel to 128 lanes per item)
    P = 256                     # proj_dim, multiple of 128 (module default is 768)
    R = 4                       # attention bottleneck: max(1, 32 // 8)

    ks = iter(jax.random.split(jax.random.PRNGKey(0), 40))
    nrm = lambda shape, scale=1.0: jax.random.normal(next(ks), shape, jnp.float32) * scale
    uni = lambda shape, lo, hi: jax.random.uniform(next(ks), shape, jnp.float32, lo, hi)

    x = nrm((B, C, T), 1.0)
    params = {
        "conv1_w": nrm((16, 1, 3), 3 ** -0.5), "conv1_b": nrm((16,), 0.05),
        "bn1_g": 1.0 + nrm((16,), 0.1), "bn1_b": nrm((16,), 0.05),
        "bn1_m": nrm((16,), 0.05), "bn1_v": uni((16,), 0.5, 1.5),
        "conv2_w": nrm((32, 16, 3), 48 ** -0.5), "conv2_b": nrm((32,), 0.05),
        "bn2_g": 1.0 + nrm((32,), 0.1), "bn2_b": nrm((32,), 0.05),
        "bn2_m": nrm((32,), 0.05), "bn2_v": uni((32,), 0.5, 1.5),
        "ca_w1": nrm((R, 32), 32 ** -0.5), "ca_b1": nrm((R,), 0.05),
        "ca_w2": nrm((32, R), R ** -0.5), "ca_b2": nrm((32,), 0.05),
        "ta_w1": nrm((R, 32), 32 ** -0.5), "ta_b1": nrm((R,), 0.05),
        "ta_w2": nrm((32, R), R ** -0.5), "ta_b2": nrm((32,), 0.05),
        "fc_w": nrm((P, 32), 32 ** -0.5), "fc_b": nrm((P,), 0.05),
        "bn3_g": 1.0 + nrm((P,), 0.1), "bn3_b": nrm((P,), 0.05),
        "bn3_m": nrm((P,), 0.05), "bn3_v": uni((P,), 0.5, 1.5),
        "res_w": nrm((P, P), P ** -0.5), "res_b": nrm((P,), 0.05),
        "ln_g": 1.0 + nrm((P,), 0.1), "ln_b": nrm((P,), 0.05),
    }

    feats, pooled = eeg_encoder(x, params)
    feats = jax.block_until_ready(feats)

    pooled_ref, feats_ref = eeg_encoder_ref(x, params)
    assert feats.shape == (B, P)
    # Frontend runs entirely in f32 -> tight tolerance on the pooled features.
    assert jnp.allclose(pooled, pooled_ref, atol=1e-3, rtol=1e-3), "frontend mismatch"
    # Feature head uses bf16 MXU operands with f32 accumulation -> looser tolerance.
    assert jnp.allclose(feats, feats_ref, atol=5e-2, rtol=5e-2), "feature head mismatch"
    print("KERNEL_OK")
</pallas_src>

<mosaic_0001>
module attributes {stable_mosaic.version = 11 : i64} {
  func.func @kernel(%arg0: i32, %arg1: memref<1x1024xf32, #tpu.memory_space<vmem>>, %arg2: memref<1x1024xf32, #tpu.memory_space<vmem>>, %arg3: memref<8x1024xf32, #tpu.memory_space<vmem>>, %arg4: memref<16x3xf32, #tpu.memory_space<vmem>>, %arg5: memref<16x1xf32, #tpu.memory_space<vmem>>, %arg6: memref<32x48xf32, #tpu.memory_space<vmem>>, %arg7: memref<32x1xf32, #tpu.memory_space<vmem>>, %arg8: memref<4x32xf32, #tpu.memory_space<vmem>>, %arg9: memref<4x1xf32, #tpu.memory_space<vmem>>, %arg10: memref<32x4xf32, #tpu.memory_space<vmem>>, %arg11: memref<32x1xf32, #tpu.memory_space<vmem>>, %arg12: memref<4x32xf32, #tpu.memory_space<vmem>>, %arg13: memref<4x1xf32, #tpu.memory_space<vmem>>, %arg14: memref<32x4xf32, #tpu.memory_space<vmem>>, %arg15: memref<32x1xf32, #tpu.memory_space<vmem>>, %arg16: memref<32x256xbf16, #tpu.memory_space<vmem>>, %arg17: memref<1x256xf32, #tpu.memory_space<vmem>>, %arg18: memref<1x256xf32, #tpu.memory_space<vmem>>, %arg19: memref<256x256xbf16, #tpu.memory_space<vmem>>, %arg20: memref<1x256xf32, #tpu.memory_space<vmem>>, %arg21: memref<1x256xf32, #tpu.memory_space<vmem>>, %arg22: memref<1x256xf32, #tpu.memory_space<vmem>>, %arg23: memref<8x256xf32, #tpu.memory_space<vmem>>, %arg24: memref<8x32xf32, #tpu.memory_space<vmem>>) attributes {dimension_semantics = [#tpu.dimension_semantics<parallel>], iteration_bounds = array<i64: 1>, scalar_prefetch = 0 : i64, scratch_operands = 0 : i64, tpu.core_type = #tpu.core_type<tc>, window_params = [{transform_indices = @transform_0, window_bounds = array<i64: 1, 1024>}, {pipeline_mode = #tpu.pipeline_mode<synchronous>, transform_indices = @transform_1, window_bounds = array<i64: 1, 1024>}, {pipeline_mode = #tpu.pipeline_mode<synchronous>, transform_indices = @transform_2, window_bounds = array<i64: 8, 1024>}, {pipeline_mode = #tpu.pipeline_mode<synchronous>, transform_indices = @transform_3, window_bounds = array<i64: 16, 3>}, {pipeline_mode = #tpu.pipeline_mode<synchronous>, transform_indices = @transform_4, window_bounds = array<i64: 16, 1>}, {pipeline_mode = #tpu.pipeline_mode<synchronous>, transform_indices = @transform_5, window_bounds = array<i64: 32, 48>}, {pipeline_mode = #tpu.pipeline_mode<synchronous>, transform_indices = @transform_6, window_bounds = array<i64: 32, 1>}, {pipeline_mode = #tpu.pipeline_mode<synchronous>, transform_indices = @transform_7, window_bounds = array<i64: 4, 32>}, {pipeline_mode = #tpu.pipeline_mode<synchronous>, transform_indices = @transform_8, window_bounds = array<i64: 4, 1>}, {pipeline_mode = #tpu.pipeline_mode<synchronous>, transform_indices = @transform_9, window_bounds = array<i64: 32, 4>}, {pipeline_mode = #tpu.pipeline_mode<synchronous>, transform_indices = @transform_10, window_bounds = array<i64: 32, 1>}, {pipeline_mode = #tpu.pipeline_mode<synchronous>, transform_indices = @transform_11, window_bounds = array<i64: 4, 32>}, {pipeline_mode = #tpu.pipeline_mode<synchronous>, transform_indices = @transform_12, window_bounds = array<i64: 4, 1>}, {pipeline_mode = #tpu.pipeline_mode<synchronous>, transform_indices = @transform_13, window_bounds = array<i64: 32, 4>}, {pipeline_mode = #tpu.pipeline_mode<synchronous>, transform_indices = @transform_14, window_bounds = array<i64: 32, 1>}, {pipeline_mode = #tpu.pipeline_mode<synchronous>, transform_indices = @transform_15, window_bounds = array<i64: 32, 256>}, {pipeline_mode = #tpu.pipeline_mode<synchronous>, transform_indices = @transform_16, window_bounds = array<i64: 1, 256>}, {pipeline_mode = #tpu.pipeline_mode<synchronous>, transform_indices = @transform_17, window_bounds = array<i64: 1, 256>}, {pipeline_mode = #tpu.pipeline_mode<synchronous>, transform_indices = @transform_18, window_bounds = array<i64: 256, 256>}, {pipeline_mode = #tpu.pipeline_mode<synchronous>, transform_indices = @transform_19, window_bounds = array<i64: 1, 256>}, {pipeline_mode = #tpu.pipeline_mode<synchronous>, transform_indices = @transform_20, window_bounds = array<i64: 1, 256>}, {pipeline_mode = #tpu.pipeline_mode<synchronous>, transform_indices = @transform_21, window_bounds = array<i64: 1, 256>}, {transform_indices = @transform_22, window_bounds = array<i64: 8, 256>}, {transform_indices = @transform_23, window_bounds = array<i64: 8, 32>}]} {
    %c0 = arith.constant 0 : index
    %c0_0 = arith.constant 0 : index
    %0 = vector.load %arg1[%c0, %c0_0] : memref<1x1024xf32, #tpu.memory_space<vmem>>, vector<1x1024xf32>
    %c0_1 = arith.constant 0 : index
    %c0_2 = arith.constant 0 : index
    %1 = vector.load %arg2[%c0_1, %c0_2] : memref<1x1024xf32, #tpu.memory_space<vmem>>, vector<1x1024xf32>
    %c0_3 = arith.constant 0 : index
    %c0_4 = arith.constant 0 : index
    %2 = vector.load %arg3[%c0_3, %c0_4] : memref<8x1024xf32, #tpu.memory_space<vmem>>, vector<8x1024xf32>
    %cst = arith.constant 0.000000e+00 : f32
    %3 = vector.broadcast %cst : f32 to vector<1x1xf32>
    %4 = vector.extract_strided_slice %0 {offsets = [0, 0], sizes = [1, 1023], strides = [1, 1]} : vector<1x1024xf32> to vector<1x1023xf32>
    %5 = tpu.concatenate %3, %4 in 1 : vector<1x1xf32>, vector<1x1023xf32> -> vector<1x1024xf32>
    %6 = vector.extract_strided_slice %0 {offsets = [0, 1], sizes = [1, 1023], strides = [1, 1]} : vector<1x1024xf32> to vector<1x1023xf32>
    %cst_5 = arith.constant 0.000000e+00 : f32
    %7 = vector.broadcast %cst_5 : f32 to vector<1x1xf32>
    %8 = tpu.concatenate %6, %7 in 1 : vector<1x1023xf32>, vector<1x1xf32> -> vector<1x1024xf32>
    %c0_6 = arith.constant 0 : index
    %c0_7 = arith.constant 0 : index
    %9 = vector.load %arg4[%c0_6, %c0_7] : memref<16x3xf32, #tpu.memory_space<vmem>>, vector<16x3xf32>
    %10 = vector.extract_strided_slice %9 {offsets = [0, 0], sizes = [16, 1], strides = [1, 1]} : vector<16x3xf32> to vector<16x1xf32>
    %11 = vector.broadcast %10 : vector<16x1xf32> to vector<16x1024xf32>
    %12 = vector.broadcast %5 : vector<1x1024xf32> to vector<16x1024xf32>
    %13 = arith.mulf %11, %12 : vector<16x1024xf32>
    %14 = vector.extract_strided_slice %9 {offsets = [0, 1], sizes = [16, 1], strides = [1, 1]} : vector<16x3xf32> to vector<16x1xf32>
    %15 = vector.broadcast %14 : vector<16x1xf32> to vector<16x1024xf32>
    %16 = vector.broadcast %0 : vector<1x1024xf32> to vector<16x1024xf32>
    %17 = arith.mulf %15, %16 : vector<16x1024xf32>
    %18 = arith.addf %13, %17 : vector<16x1024xf32>
    %19 = vector.extract_strided_slice %9 {offsets = [0, 2], sizes = [16, 1], strides = [1, 1]} : vector<16x3xf32> to vector<16x1xf32>
    %20 = vector.broadcast %19 : vector<16x1xf32> to vector<16x1024xf32>
    %21 = vector.broadcast %8 : vector<1x1024xf32> to vector<16x1024xf32>
    %22 = arith.mulf %20, %21 : vector<16x1024xf32>
    %23 = arith.addf %18, %22 : vector<16x1024xf32>
    %c0_8 = arith.constant 0 : index
    %c0_9 = arith.constant 0 : index
    %24 = vector.load %arg5[%c0_8, %c0_9] : memref<16x1xf32, #tpu.memory_space<vmem>>, vector<16x1xf32>
    %25 = vector.broadcast %24 : vector<16x1xf32> to vector<16x1024xf32>
    %26 = arith.addf %23, %25 : vector<16x1024xf32>
    %cst_10 = arith.constant 0.000000e+00 : f32
    %27 = vector.broadcast %cst_10 : f32 to vector<16x1024xf32>
    %28 = arith.cmpf ogt, %26, %27 : vector<16x1024xf32>
    %cst_11 = arith.constant 0.000000e+00 : f32
    %29 = vector.broadcast %cst_11 : f32 to vector<16x1024xf32>
    %30 = arith.minimumf %26, %29 : vector<16x1024xf32>
    %31 = math.exp %30 : vector<16x1024xf32>
    %cst_12 = arith.constant 1.000000e+00 : f32
    %32 = vector.broadcast %cst_12 : f32 to vector<16x1024xf32>
    %33 = arith.subf %31, %32 : vector<16x1024xf32>
    %34 = arith.select %28, %26, %33 : vector<16x1024xi1>, vector<16x1024xf32>
    %35 = vector.broadcast %1 : vector<1x1024xf32> to vector<16x1024xf32>
    %36 = arith.mulf %34, %35 : vector<16x1024xf32>
    %cst_13 = arith.constant 0.000000e+00 : f32
    %37 = vector.broadcast %cst_13 : f32 to vector<16x1xf32>
    %38 = vector.extract_strided_slice %36 {offsets = [0, 0], sizes = [16, 1023], strides = [1, 1]} : vector<16x1024xf32> to vector<16x1023xf32>
    %39 = tpu.concatenate %37, %38 in 1 : vector<16x1xf32>, vector<16x1023xf32> -> vector<16x1024xf32>
    %40 = vector.extract_strided_slice %36 {offsets = [0, 1], sizes = [16, 1023], strides = [1, 1]} : vector<16x1024xf32> to vector<16x1023xf32>
    %cst_14 = arith.constant 0.000000e+00 : f32
    %41 = vector.broadcast %cst_14 : f32 to vector<16x1xf32>
    %42 = tpu.concatenate %40, %41 in 1 : vector<16x1023xf32>, vector<16x1xf32> -> vector<16x1024xf32>
    %43 = tpu.concatenate %39, %36, %42 in 0 : vector<16x1024xf32>, vector<16x1024xf32>, vector<16x1024xf32> -> vector<48x1024xf32>
    %c0_15 = arith.constant 0 : index
    %c0_16 = arith.constant 0 : index
    %44 = vector.load %arg6[%c0_15, %c0_16] : memref<32x48xf32, #tpu.memory_space<vmem>>, vector<32x48xf32>
    %cst_17 = arith.constant dense<0.000000e+00> : vector<32x1024xf32>
    %45 = tpu.matmul %44, %43, %cst_17 {dimension_numbers = #tpu.dot_dimension_numbers<[1], [0], [0], [1], [0, 0, 1, 1], [], []>} : vector<32x48xf32>, vector<48x1024xf32>, vector<32x1024xf32> -> vector<32x1024xf32>
    %c0_18 = arith.constant 0 : index
    %c0_19 = arith.constant 0 : index
    %46 = vector.load %arg7[%c0_18, %c0_19] : memref<32x1xf32, #tpu.memory_space<vmem>>, vector<32x1xf32>
    %47 = vector.broadcast %46 : vector<32x1xf32> to vector<32x1024xf32>
    %48 = arith.addf %45, %47 : vector<32x1024xf32>
    %cst_20 = arith.constant 0.000000e+00 : f32
    %49 = vector.broadcast %cst_20 : f32 to vector<32x1024xf32>
    %50 = arith.cmpf ogt, %48, %49 : vector<32x1024xf32>
    %cst_21 = arith.constant 0.000000e+00 : f32
    %51 = vector.broadcast %cst_21 : f32 to vector<32x1024xf32>
    %52 = arith.minimumf %48, %51 : vector<32x1024xf32>
    %53 = math.exp %52 : vector<32x1024xf32>
    %cst_22 = arith.constant 1.000000e+00 : f32
    %54 = vector.broadcast %cst_22 : f32 to vector<32x1024xf32>
    %55 = arith.subf %53, %54 : vector<32x1024xf32>
    %56 = arith.select %50, %48, %55 : vector<32x1024xi1>, vector<32x1024xf32>
    %cst_23 = arith.constant dense<0.000000e+00> : vector<32x8xf32>
    %57 = tpu.matmul %56, %2, %cst_23 {dimension_numbers = #tpu.dot_dimension_numbers<[1], [1], [0], [0], [0, 0, 1, 0], [], []>} : vector<32x1024xf32>, vector<8x1024xf32>, vector<32x8xf32> -> vector<32x8xf32>
    %c0_24 = arith.constant 0 : index
    %c0_25 = arith.constant 0 : index
    %58 = vector.load %arg8[%c0_24, %c0_25] : memref<4x32xf32, #tpu.memory_space<vmem>>, vector<4x32xf32>
    %cst_26 = arith.constant dense<0.000000e+00> : vector<4x8xf32>
    %59 = tpu.matmul %58, %57, %cst_26 {dimension_numbers = #tpu.dot_dimension_numbers<[1], [0], [0], [1], [0, 0, 1, 1], [], []>} : vector<4x32xf32>, vector<32x8xf32>, vector<4x8xf32> -> vector<4x8xf32>
    %c0_27 = arith.constant 0 : index
    %c0_28 = arith.constant 0 : index
    %60 = vector.load %arg9[%c0_27, %c0_28] : memref<4x1xf32, #tpu.memory_space<vmem>>, vector<4x1xf32>
    %61 = vector.broadcast %60 : vector<4x1xf32> to vector<4x8xf32>
    %62 = arith.addf %59, %61 : vector<4x8xf32>
    %cst_29 = arith.constant 0.000000e+00 : f32
    %63 = vector.broadcast %cst_29 : f32 to vector<4x8xf32>
    %64 = arith.maximumf %62, %63 : vector<4x8xf32>
    %c0_30 = arith.constant 0 : index
    %c0_31 = arith.constant 0 : index
    %65 = vector.load %arg10[%c0_30, %c0_31] : memref<32x4xf32, #tpu.memory_space<vmem>>, vector<32x4xf32>
    %cst_32 = arith.constant dense<0.000000e+00> : vector<32x8xf32>
    %66 = tpu.matmul %65, %64, %cst_32 {dimension_numbers = #tpu.dot_dimension_numbers<[1], [0], [0], [1], [0, 0, 1, 1], [], []>} : vector<32x4xf32>, vector<4x8xf32>, vector<32x8xf32> -> vector<32x8xf32>
    %c0_33 = arith.constant 0 : index
    %c0_34 = arith.constant 0 : index
    %67 = vector.load %arg11[%c0_33, %c0_34] : memref<32x1xf32, #tpu.memory_space<vmem>>, vector<32x1xf32>
    %68 = vector.broadcast %67 : vector<32x1xf32> to vector<32x8xf32>
    %69 = arith.addf %66, %68 : vector<32x8xf32>
    %70 = arith.negf %69 : vector<32x8xf32>
    %71 = math.exp %70 : vector<32x8xf32>
    %cst_35 = arith.constant 1.000000e+00 : f32
    %72 = vector.broadcast %cst_35 : f32 to vector<32x8xf32>
    %73 = arith.addf %72, %71 : vector<32x8xf32>
    %74 = arith.divf %72, %73 : vector<32x8xf32>
    %cst_36 = arith.constant 6.400000e+01 : f32
    %75 = vector.broadcast %cst_36 : f32 to vector<32x8xf32>
    %76 = arith.mulf %74, %75 : vector<32x8xf32>
    %cst_37 = arith.constant dense<0.000000e+00> : vector<32x1024xf32>
    %77 = tpu.matmul %76, %2, %cst_37 {dimension_numbers = #tpu.dot_dimension_numbers<[1], [0], [0], [1], [0, 0, 1, 1], [], []>} : vector<32x8xf32>, vector<8x1024xf32>, vector<32x1024xf32> -> vector<32x1024xf32>
    %78 = arith.mulf %56, %77 : vector<32x1024xf32>
    %c0_38 = arith.constant 0 : index
    %c0_39 = arith.constant 0 : index
    %79 = vector.load %arg12[%c0_38, %c0_39] : memref<4x32xf32, #tpu.memory_space<vmem>>, vector<4x32xf32>
    %cst_40 = arith.constant dense<0.000000e+00> : vector<4x1024xf32>
    %80 = tpu.matmul %79, %78, %cst_40 {dimension_numbers = #tpu.dot_dimension_numbers<[1], [0], [0], [1], [0, 0, 1, 1], [], []>} : vector<4x32xf32>, vector<32x1024xf32>, vector<4x1024xf32> -> vector<4x1024xf32>
    %c0_41 = arith.constant 0 : index
    %c0_42 = arith.constant 0 : index
    %81 = vector.load %arg13[%c0_41, %c0_42] : memref<4x1xf32, #tpu.memory_space<vmem>>, vector<4x1xf32>
    %82 = vector.broadcast %81 : vector<4x1xf32> to vector<4x1024xf32>
    %83 = arith.addf %80, %82 : vector<4x1024xf32>
    %cst_43 = arith.constant 0.000000e+00 : f32
    %84 = vector.broadcast %cst_43 : f32 to vector<4x1024xf32>
    %85 = arith.maximumf %83, %84 : vector<4x1024xf32>
    %c0_44 = arith.constant 0 : index
    %c0_45 = arith.constant 0 : index
    %86 = vector.load %arg14[%c0_44, %c0_45] : memref<32x4xf32, #tpu.memory_space<vmem>>, vector<32x4xf32>
    %cst_46 = arith.constant dense<0.000000e+00> : vector<32x1024xf32>
    %87 = tpu.matmul %86, %85, %cst_46 {dimension_numbers = #tpu.dot_dimension_numbers<[1], [0], [0], [1], [0, 0, 1, 1], [], []>} : vector<32x4xf32>, vector<4x1024xf32>, vector<32x1024xf32> -> vector<32x1024xf32>
    %c0_47 = arith.constant 0 : index
    %c0_48 = arith.constant 0 : index
    %88 = vector.load %arg15[%c0_47, %c0_48] : memref<32x1xf32, #tpu.memory_space<vmem>>, vector<32x1xf32>
    %89 = vector.broadcast %88 : vector<32x1xf32> to vector<32x1024xf32>
    %90 = arith.addf %87, %89 : vector<32x1024xf32>
    %91 = arith.negf %90 : vector<32x1024xf32>
    %92 = math.exp %91 : vector<32x1024xf32>
    %cst_49 = arith.constant 1.000000e+00 : f32
    %93 = vector.broadcast %cst_49 : f32 to vector<32x1024xf32>
    %94 = arith.addf %93, %92 : vector<32x1024xf32>
    %95 = arith.divf %93, %94 : vector<32x1024xf32>
    %96 = arith.mulf %78, %95 : vector<32x1024xf32>
    %cst_50 = arith.constant dense<0.000000e+00> : vector<8x32xf32>
    %97 = tpu.matmul %2, %96, %cst_50 {dimension_numbers = #tpu.dot_dimension_numbers<[1], [1], [0], [0], [0, 0, 1, 0], [], []>} : vector<8x1024xf32>, vector<32x1024xf32>, vector<8x32xf32> -> vector<8x32xf32>
    %c0_51 = arith.constant 0 : index
    %c0_52 = arith.constant 0 : index
    %98 = vector.load %arg24[%c0_51, %c0_52] : memref<8x32xf32, #tpu.memory_space<vmem>>, vector<8x32xf32>
    tpu.vector_store %arg24[%c0_51, %c0_52], %97 {strides = array<i32>} : memref<8x32xf32, #tpu.memory_space<vmem>>, vector<8x32xf32>,
    %99 = arith.truncf %97 : vector<8x32xf32> to vector<8x32xbf16>
    %c0_53 = arith.constant 0 : index
    %c0_54 = arith.constant 0 : index
    %100 = vector.load %arg16[%c0_53, %c0_54] : memref<32x256xbf16, #tpu.memory_space<vmem>>, vector<32x256xbf16>
    %cst_55 = arith.constant dense<0.000000e+00> : vector<8x256xf32>
    %101 = tpu.matmul %99, %100, %cst_55 {dimension_numbers = #tpu.dot_dimension_numbers<[1], [0], [0], [1], [0, 0, 1, 1], [], []>} : vector<8x32xbf16>, vector<32x256xbf16>, vector<8x256xf32> -> vector<8x256xf32>
    %c0_56 = arith.constant 0 : index
    %c0_57 = arith.constant 0 : index
    %102 = vector.load %arg17[%c0_56, %c0_57] : memref<1x256xf32, #tpu.memory_space<vmem>>, vector<1x256xf32>
    %103 = vector.broadcast %102 : vector<1x256xf32> to vector<8x256xf32>
    %104 = arith.mulf %101, %103 : vector<8x256xf32>
    %c0_58 = arith.constant 0 : index
    %c0_59 = arith.constant 0 : index
    %105 = vector.load %arg18[%c0_58, %c0_59] : memref<1x256xf32, #tpu.memory_space<vmem>>, vector<1x256xf32>
    %106 = vector.broadcast %105 : vector<1x256xf32> to vector<8x256xf32>
    %107 = arith.addf %104, %106 : vector<8x256xf32>
    %108 = arith.negf %107 : vector<8x256xf32>
    %109 = math.exp %108 : vector<8x256xf32>
    %cst_60 = arith.constant 1.000000e+00 : f32
    %110 = vector.broadcast %cst_60 : f32 to vector<8x256xf32>
    %111 = arith.addf %110, %109 : vector<8x256xf32>
    %112 = arith.divf %110, %111 : vector<8x256xf32>
    %113 = arith.mulf %107, %112 : vector<8x256xf32>
    %114 = arith.truncf %113 : vector<8x256xf32> to vector<8x256xbf16>
    %c0_61 = arith.constant 0 : index
    %c0_62 = arith.constant 0 : index
    %115 = vector.load %arg19[%c0_61, %c0_62] : memref<256x256xbf16, #tpu.memory_space<vmem>>, vector<256x256xbf16>
    %cst_63 = arith.constant dense<0.000000e+00> : vector<8x256xf32>
    %116 = tpu.matmul %114, %115, %cst_63 {dimension_numbers = #tpu.dot_dimension_numbers<[1], [0], [0], [1], [0, 0, 1, 1], [], []>} : vector<8x256xbf16>, vector<256x256xbf16>, vector<8x256xf32> -> vector<8x256xf32>
    %c0_64 = arith.constant 0 : index
    %c0_65 = arith.constant 0 : index
    %117 = vector.load %arg20[%c0_64, %c0_65] : memref<1x256xf32, #tpu.memory_space<vmem>>, vector<1x256xf32>
    %118 = vector.broadcast %117 : vector<1x256xf32> to vector<8x256xf32>
    %119 = arith.addf %116, %118 : vector<8x256xf32>
    %120 = arith.addf %107, %119 : vector<8x256xf32>
    %cst_66 = arith.constant dense<0.000000e+00> : vector<8xf32>
    %121 = vector.multi_reduction <add>, %120, %cst_66 [1] : vector<8x256xf32> to vector<8xf32>
    %122 = vector.shape_cast %121 : vector<8xf32> to vector<8x1xf32>
    %cst_67 = arith.constant 2.560000e+02 : f32
    %123 = vector.broadcast %cst_67 : f32 to vector<8x1xf32>
    %124 = arith.divf %122, %123 : vector<8x1xf32>
    %125 = vector.broadcast %124 : vector<8x1xf32> to vector<8x256xf32>
    %126 = arith.subf %120, %125 : vector<8x256xf32>
    %127 = arith.mulf %126, %126 : vector<8x256xf32>
    %cst_68 = arith.constant dense<0.000000e+00> : vector<8xf32>
    %128 = vector.multi_reduction <add>, %127, %cst_68 [1] : vector<8x256xf32> to vector<8xf32>
    %129 = vector.shape_cast %128 : vector<8xf32> to vector<8x1xf32>
    %cst_69 = arith.constant 2.560000e+02 : f32
    %130 = vector.broadcast %cst_69 : f32 to vector<8x1xf32>
    %131 = arith.divf %129, %130 : vector<8x1xf32>
    %132 = vector.broadcast %124 : vector<8x1xf32> to vector<8x256xf32>
    %133 = arith.subf %120, %132 : vector<8x256xf32>
    %cst_70 = arith.constant 9.99999974E-6 : f32
    %134 = vector.broadcast %cst_70 : f32 to vector<8x1xf32>
    %135 = arith.addf %131, %134 : vector<8x1xf32>
    %136 = math.rsqrt %135 : vector<8x1xf32>
    %137 = vector.broadcast %136 : vector<8x1xf32> to vector<8x256xf32>
    %138 = arith.mulf %133, %137 : vector<8x256xf32>
    %c0_71 = arith.constant 0 : index
    %c0_72 = arith.constant 0 : index
    %139 = vector.load %arg21[%c0_71, %c0_72] : memref<1x256xf32, #tpu.memory_space<vmem>>, vector<1x256xf32>
    %140 = vector.broadcast %139 : vector<1x256xf32> to vector<8x256xf32>
    %141 = arith.mulf %138, %140 : vector<8x256xf32>
    %c0_73 = arith.constant 0 : index
    %c0_74 = arith.constant 0 : index
    %142 = vector.load %arg22[%c0_73, %c0_74] : memref<1x256xf32, #tpu.memory_space<vmem>>, vector<1x256xf32>
    %143 = vector.broadcast %142 : vector<1x256xf32> to vector<8x256xf32>
    %144 = arith.addf %141, %143 : vector<8x256xf32>
    %c0_75 = arith.constant 0 : index
    %c0_76 = arith.constant 0 : index
    %145 = vector.load %arg23[%c0_75, %c0_76] : memref<8x256xf32, #tpu.memory_space<vmem>>, vector<8x256xf32>
    tpu.vector_store %arg23[%c0_75, %c0_76], %144 {strides = array<i32>} : memref<8x256xf32, #tpu.memory_space<vmem>>, vector<8x256xf32>,
    return
  }
  func.func @transform_0(%arg0: i32) -> (i32, i32) {
    %c0_i32 = arith.constant 0 : i32
    %c0_i32_0 = arith.constant 0 : i32
    return %arg0, %c0_i32 : i32, i32
  }
  func.func @transform_1(%arg0: i32) -> (i32, i32) {
    %c0_i32 = arith.constant 0 : i32
    %c0_i32_0 = arith.constant 0 : i32
    %c0_i32_1 = arith.constant 0 : i32
    return %c0_i32, %c0_i32_0 : i32, i32
  }
  func.func @transform_2(%arg0: i32) -> (i32, i32) {
    %c0_i32 = arith.constant 0 : i32
    %c0_i32_0 = arith.constant 0 : i32
    %c0_i32_1 = arith.constant 0 : i32
    return %c0_i32, %c0_i32_0 : i32, i32
  }
  func.func @transform_3(%arg0: i32) -> (i32, i32) {
    %c0_i32 = arith.constant 0 : i32
    %c0_i32_0 = arith.constant 0 : i32
    %c0_i32_1 = arith.constant 0 : i32
    return %c0_i32, %c0_i32_0 : i32, i32
  }
  func.func @transform_4(%arg0: i32) -> (i32, i32) {
    %c0_i32 = arith.constant 0 : i32
    %c0_i32_0 = arith.constant 0 : i32
    %c0_i32_1 = arith.constant 0 : i32
    return %c0_i32, %c0_i32_0 : i32, i32
  }
  func.func @transform_5(%arg0: i32) -> (i32, i32) {
    %c0_i32 = arith.constant 0 : i32
    %c0_i32_0 = arith.constant 0 : i32
    %c0_i32_1 = arith.constant 0 : i32
    return %c0_i32, %c0_i32_0 : i32, i32
  }
  func.func @transform_6(%arg0: i32) -> (i32, i32) {
    %c0_i32 = arith.constant 0 : i32
    %c0_i32_0 = arith.constant 0 : i32
    %c0_i32_1 = arith.constant 0 : i32
    return %c0_i32, %c0_i32_0 : i32, i32
  }
  func.func @transform_7(%arg0: i32) -> (i32, i32) {
    %c0_i32 = arith.constant 0 : i32
    %c0_i32_0 = arith.constant 0 : i32
    %c0_i32_1 = arith.constant 0 : i32
    return %c0_i32, %c0_i32_0 : i32, i32
  }
  func.func @transform_8(%arg0: i32) -> (i32, i32) {
    %c0_i32 = arith.constant 0 : i32
    %c0_i32_0 = arith.constant 0 : i32
    %c0_i32_1 = arith.constant 0 : i32
    return %c0_i32, %c0_i32_0 : i32, i32
  }
  func.func @transform_9(%arg0: i32) -> (i32, i32) {
    %c0_i32 = arith.constant 0 : i32
    %c0_i32_0 = arith.constant 0 : i32
    %c0_i32_1 = arith.constant 0 : i32
    return %c0_i32, %c0_i32_0 : i32, i32
  }
  func.func @transform_10(%arg0: i32) -> (i32, i32) {
    %c0_i32 = arith.constant 0 : i32
    %c0_i32_0 = arith.constant 0 : i32
    %c0_i32_1 = arith.constant 0 : i32
    return %c0_i32, %c0_i32_0 : i32, i32
  }
  func.func @transform_11(%arg0: i32) -> (i32, i32) {
    %c0_i32 = arith.constant 0 : i32
    %c0_i32_0 = arith.constant 0 : i32
    %c0_i32_1 = arith.constant 0 : i32
    return %c0_i32, %c0_i32_0 : i32, i32
  }
  func.func @transform_12(%arg0: i32) -> (i32, i32) {
    %c0_i32 = arith.constant 0 : i32
    %c0_i32_0 = arith.constant 0 : i32
    %c0_i32_1 = arith.constant 0 : i32
    return %c0_i32, %c0_i32_0 : i32, i32
  }
  func.func @transform_13(%arg0: i32) -> (i32, i32) {
    %c0_i32 = arith.constant 0 : i32
    %c0_i32_0 = arith.constant 0 : i32
    %c0_i32_1 = arith.constant 0 : i32
    return %c0_i32, %c0_i32_0 : i32, i32
  }
  func.func @transform_14(%arg0: i32) -> (i32, i32) {
    %c0_i32 = arith.constant 0 : i32
    %c0_i32_0 = arith.constant 0 : i32
    %c0_i32_1 = arith.constant 0 : i32
    return %c0_i32, %c0_i32_0 : i32, i32
  }
  func.func @transform_15(%arg0: i32) -> (i32, i32) {
    %c0_i32 = arith.constant 0 : i32
    %c0_i32_0 = arith.constant 0 : i32
    %c0_i32_1 = arith.constant 0 : i32
    return %c0_i32, %c0_i32_0 : i32, i32
  }
  func.func @transform_16(%arg0: i32) -> (i32, i32) {
    %c0_i32 = arith.constant 0 : i32
    %c0_i32_0 = arith.constant 0 : i32
    %c0_i32_1 = arith.constant 0 : i32
    return %c0_i32, %c0_i32_0 : i32, i32
  }
  func.func @transform_17(%arg0: i32) -> (i32, i32) {
    %c0_i32 = arith.constant 0 : i32
    %c0_i32_0 = arith.constant 0 : i32
    %c0_i32_1 = arith.constant 0 : i32
    return %c0_i32, %c0_i32_0 : i32, i32
  }
  func.func @transform_18(%arg0: i32) -> (i32, i32) {
    %c0_i32 = arith.constant 0 : i32
    %c0_i32_0 = arith.constant 0 : i32
    %c0_i32_1 = arith.constant 0 : i32
    return %c0_i32, %c0_i32_0 : i32, i32
  }
  func.func @transform_19(%arg0: i32) -> (i32, i32) {
    %c0_i32 = arith.constant 0 : i32
    %c0_i32_0 = arith.constant 0 : i32
    %c0_i32_1 = arith.constant 0 : i32
    return %c0_i32, %c0_i32_0 : i32, i32
  }
  func.func @transform_20(%arg0: i32) -> (i32, i32) {
    %c0_i32 = arith.constant 0 : i32
    %c0_i32_0 = arith.constant 0 : i32
    %c0_i32_1 = arith.constant 0 : i32
    return %c0_i32, %c0_i32_0 : i32, i32
  }
  func.func @transform_21(%arg0: i32) -> (i32, i32) {
    %c0_i32 = arith.constant 0 : i32
    %c0_i32_0 = arith.constant 0 : i32
    %c0_i32_1 = arith.constant 0 : i32
    return %c0_i32, %c0_i32_0 : i32, i32
  }
  func.func @transform_22(%arg0: i32) -> (i32, i32) {
    %c0_i32 = arith.constant 0 : i32
    %c0_i32_0 = arith.constant 0 : i32
    return %arg0, %c0_i32 : i32, i32
  }
  func.func @transform_23(%arg0: i32) -> (i32, i32) {
    %c0_i32 = arith.constant 0 : i32
    %c0_i32_0 = arith.constant 0 : i32
    return %arg0, %c0_i32 : i32, i32
  }
}

</mosaic_0001>

<llo_original>
// kernel: tpu_custom_call.1
$region0: #{tpu_custom_call.1}
  #allocation0 [shape = 'u32[]', space=smem, size = 0x4, offset = 0x4, fixed_abs, tag = 'smem constant byte address 0x4 - core index']
  #allocation1 [shape = 'u32[144,128]{1,0:T(1,128)}', space=vmem, size = 0x12000, scoped, tag = 'internal scratch']
  %s0 = inlined_call_operand.vmem [shape: f32[1,1024], index: 0, kind: input, shape index: {}]
  %s1 = inlined_call_operand.vmem [shape: f32[1,1024], index: 1, kind: input, shape index: {}]
  %s2 = inlined_call_operand.vmem [shape: f32[8,1024], index: 2, kind: input, shape index: {}]
  %s3 = inlined_call_operand.vmem [shape: f32[16,3], index: 3, kind: input, shape index: {}]
  %s4 = inlined_call_operand.vmem [shape: f32[16,1], index: 4, kind: input, shape index: {}]
  %s5 = inlined_call_operand.vmem [shape: f32[32,48], index: 5, kind: input, shape index: {}]
  %s6 = inlined_call_operand.vmem [shape: f32[32,1], index: 6, kind: input, shape index: {}]
  %s7 = inlined_call_operand.vmem [shape: f32[4,32], index: 7, kind: input, shape index: {}]
  %s8 = inlined_call_operand.vmem [shape: f32[4,1], index: 8, kind: input, shape index: {}]
  %s9 = inlined_call_operand.vmem [shape: f32[32,4], index: 9, kind: input, shape index: {}]
  %s10 = inlined_call_operand.vmem [shape: f32[32,1], index: 10, kind: input, shape index: {}]
  %s11 = inlined_call_operand.vmem [shape: f32[4,32], index: 11, kind: input, shape index: {}]
  %s12 = inlined_call_operand.vmem [shape: f32[4,1], index: 12, kind: input, shape index: {}]
  %s13 = inlined_call_operand.vmem [shape: f32[32,4], index: 13, kind: input, shape index: {}]
  %s14 = inlined_call_operand.vmem [shape: f32[32,1], index: 14, kind: input, shape index: {}]
  %s15 = inlined_call_operand.vmem [shape: bf16[32,256], index: 15, kind: input, shape index: {}]
  %s16 = inlined_call_operand.vmem [shape: f32[1,256], index: 16, kind: input, shape index: {}]
  %s17 = inlined_call_operand.vmem [shape: f32[1,256], index: 17, kind: input, shape index: {}]
  %s18 = inlined_call_operand.hbm [shape: bf16[256,256], index: 18, kind: input, shape index: {}]
  %s19 = inlined_call_operand.vmem [shape: f32[1,256], index: 19, kind: input, shape index: {}]
  %s20 = inlined_call_operand.vmem [shape: f32[1,256], index: 20, kind: input, shape index: {}]
  %s21 = inlined_call_operand.vmem [shape: f32[1,256], index: 21, kind: input, shape index: {}]
  %s22 = inlined_call_operand.hbm [shape: f32[8,256], index: 22, kind: output, shape index: {0}]
  %s23 = inlined_call_operand.hbm [shape: f32[8,32], index: 23, kind: output, shape index: {1}]
  %24 = xla_tuple %s22, %s23
  %s25 = sld [smem:[#allocation0]]
  $region110: #{tpu_custom_call.1} parent=0
    _
  %s27 = ssub.s32 1, %s25
  %s28 = scalar_select 0, %s27, %s25
  $region1: #{tpu_custom_call.1} parent=0
    #allocation2 [shape = 'u8[131072]{0}', space=vmem, size = 0x20000, scoped, tag = 'input window, operand 18, single buffered']
    #allocation3 [shape = 's32[1]{0}', space=sflag, size = 0x4, scoped, tag = 'scoped memory for tpu_custom_call.1']
    #allocation4 [shape = 's32[1]{0}', space=sflag, size = 0x4, scoped, tag = 'scoped memory for tpu_custom_call.1']
    #allocation5 [shape = 'u8[8192]{0}', space=vmem, size = 0x2000, scoped, tag = 'output window, operand 0, single buffered']
    #allocation6 [shape = 'u8[4096]{0}', space=vmem, size = 0x1000, scoped, tag = 'output window, operand 1, single buffered']
    #allocation7 [shape = 's32[1]{0}', space=sflag, size = 0x4, scoped, tag = 'scoped memory for tpu_custom_call.1']
    %29 = vsyncpa [#allocation3], 0
    %30 = vsyncpa [#allocation4], 0
    %31 = vsyncpa [#allocation7], 0
    // Predicated region
    $region2: #{tpu_custom_call.1} parent=1 // pred_check
      _
    $region3: #{tpu_custom_call.1} parent=1 // pred_check_branch
      %33 = sbr.rel (0) target = $region5
    $region4: #{tpu_custom_call.1} parent=1 // pred_region
      _
    $region5: #{tpu_custom_call.1} parent=1 // pred_fallthru
      _
    // Predicated region
    $region6: #{tpu_custom_call.1} parent=1 // pred_check
      _
    $region7: #{tpu_custom_call.1} parent=1 // pred_check_branch
      %35 = sbr.rel (0) target = $region9
    $region8: #{tpu_custom_call.1} parent=1 // pred_region
      _
    $region9: #{tpu_custom_call.1} parent=1 // pred_fallthru
      _
    // Predicated region
    $region10: #{tpu_custom_call.1} parent=1 // pred_check
      _
    $region11: #{tpu_custom_call.1} parent=1 // pred_check_branch
      %37 = sbr.rel (0) target = $region13
    $region12: #{tpu_custom_call.1} parent=1 // pred_region
      _
    $region13: #{tpu_custom_call.1} parent=1 // pred_fallthru
      _
    // Predicated region
    $region14: #{tpu_custom_call.1} parent=1 // pred_check
      _
    $region15: #{tpu_custom_call.1} parent=1 // pred_check_branch
      %39 = sbr.rel (0) target = $region17
    $region16: #{tpu_custom_call.1} parent=1 // pred_region
      _
    $region17: #{tpu_custom_call.1} parent=1 // pred_fallthru
      _
    // Predicated region
    $region18: #{tpu_custom_call.1} parent=1 // pred_check
      _
    $region19: #{tpu_custom_call.1} parent=1 // pred_check_branch
      %41 = sbr.rel (0) target = $region21
    $region20: #{tpu_custom_call.1} parent=1 // pred_region
      _
    $region21: #{tpu_custom_call.1} parent=1 // pred_fallthru
      _
    // Predicated region
    $region22: #{tpu_custom_call.1} parent=1 // pred_check
      _
    $region23: #{tpu_custom_call.1} parent=1 // pred_check_branch
      %43 = sbr.rel (0) target = $region25
    $region24: #{tpu_custom_call.1} parent=1 // pred_region
      _
    $region25: #{tpu_custom_call.1} parent=1 // pred_fallthru
      _
    // Predicated region
    $region26: #{tpu_custom_call.1} parent=1 // pred_check
      _
    $region27: #{tpu_custom_call.1} parent=1 // pred_check_branch
      %45 = sbr.rel (0) target = $region29
    $region28: #{tpu_custom_call.1} parent=1 // pred_region
      _
    $region29: #{tpu_custom_call.1} parent=1 // pred_fallthru
      _
    // Predicated region
    $region30: #{tpu_custom_call.1} parent=1 // pred_check
      _
    $region31: #{tpu_custom_call.1} parent=1 // pred_check_branch
      %47 = sbr.rel (0) target = $region33
    $region32: #{tpu_custom_call.1} parent=1 // pred_region
      _
    $region33: #{tpu_custom_call.1} parent=1 // pred_fallthru
      _
    // Predicated region
    $region34: #{tpu_custom_call.1} parent=1 // pred_check
      _
    $region35: #{tpu_custom_call.1} parent=1 // pred_check_branch
      %49 = sbr.rel (0) target = $region37
    $region36: #{tpu_custom_call.1} parent=1 // pred_region
      _
    $region37: #{tpu_custom_call.1} parent=1 // pred_fallthru
      _
    // Predicated region
    $region38: #{tpu_custom_call.1} parent=1 // pred_check
      _
    $region39: #{tpu_custom_call.1} parent=1 // pred_check_branch
      %51 = sbr.rel (0) target = $region41
    $region40: #{tpu_custom_call.1} parent=1 // pred_region
      _
    $region41: #{tpu_custom_call.1} parent=1 // pred_fallthru
      _
    // Predicated region
    $region42: #{tpu_custom_call.1} parent=1 // pred_check
      _
    $region43: #{tpu_custom_call.1} parent=1 // pred_check_branch
      %53 = sbr.rel (0) target = $region45
    $region44: #{tpu_custom_call.1} parent=1 // pred_region
      _
    $region45: #{tpu_custom_call.1} parent=1 // pred_fallthru
      _
    // Predicated region
    $region46: #{tpu_custom_call.1} parent=1 // pred_check
      _
    $region47: #{tpu_custom_call.1} parent=1 // pred_check_branch
      %55 = sbr.rel (0) target = $region49
    $region48: #{tpu_custom_call.1} parent=1 // pred_region
      _
    $region49: #{tpu_custom_call.1} parent=1 // pred_fallthru
      _
    // Predicated region
    $region50: #{tpu_custom_call.1} parent=1 // pred_check
      _
    $region51: #{tpu_custom_call.1} parent=1 // pred_check_branch
      %57 = sbr.rel (0) target = $region53
    $region52: #{tpu_custom_call.1} parent=1 // pred_region
      _
    $region53: #{tpu_custom_call.1} parent=1 // pred_fallthru
      _
    // Predicated region
    $region54: #{tpu_custom_call.1} parent=1 // pred_check
      _
    $region55: #{tpu_custom_call.1} parent=1 // pred_check_branch
      %59 = sbr.rel (0) target = $region57
    $region56: #{tpu_custom_call.1} parent=1 // pred_region
      _
    $region57: #{tpu_custom_call.1} parent=1 // pred_fallthru
      _
    // Predicated region
    $region58: #{tpu_custom_call.1} parent=1 // pred_check
      _
    $region59: #{tpu_custom_call.1} parent=1 // pred_check_branch
      %61 = sbr.rel (0) target = $region61
    $region60: #{tpu_custom_call.1} parent=1 // pred_region
      _
    $region61: #{tpu_custom_call.1} parent=1 // pred_fallthru
      _
    // Predicated region
    $region62: #{tpu_custom_call.1} parent=1 // pred_check
      _
    $region63: #{tpu_custom_call.1} parent=1 // pred_check_branch
      %63 = sbr.rel (0) target = $region65
    $region64: #{tpu_custom_call.1} parent=1 // pred_region
      _
    $region65: #{tpu_custom_call.1} parent=1 // pred_fallthru
      _
    // Predicated region
    $region66: #{tpu_custom_call.1} parent=1 // pred_check
      _
    $region67: #{tpu_custom_call.1} parent=1 // pred_check_branch
      %65 = sbr.rel (0) target = $region69
    $region68: #{tpu_custom_call.1} parent=1 // pred_region
      _
    $region69: #{tpu_custom_call.1} parent=1 // pred_fallthru
      _
    // Predicated region
    $region70: #{tpu_custom_call.1} parent=1 // pred_check
      _
    $region71: #{tpu_custom_call.1} parent=1 // pred_check_branch
      %67 = sbr.rel (0) target = $region73
    $region72: #{tpu_custom_call.1} parent=1 // pred_region
      _
    $region73: #{tpu_custom_call.1} parent=1 // pred_fallthru
      _
    // Predicated region
    $region74: #{tpu_custom_call.1} parent=1 // pred_check
      _
    $region75: #{tpu_custom_call.1} parent=1 // pred_check_branch
      %69 = sbr.rel (0) target = $region77
    $region76: #{tpu_custom_call.1} parent=1 // pred_region
      %s71 = ssub.s32 4096, 4096
      %72 = vsyncadd [#allocation3], %s71
      %s73 = sshll.u32 [#allocation2], 4
      %s74 = int_to_ptr.vmem [resolvable:$true] %s73
      %79 = dma.hbm_to_vmem [thread:$0]  %s18, 4096, %s74, [#allocation3], 128, 128, 8
    $region77: #{tpu_custom_call.1} parent=1 // pred_fallthru
      _
    // Predicated region
    $region78: #{tpu_custom_call.1} parent=1 // pred_check
      _
    $region79: #{tpu_custom_call.1} parent=1 // pred_check_branch
      %81 = sbr.rel (0) target = $region81
    $region80: #{tpu_custom_call.1} parent=1 // pred_region
      _
    $region81: #{tpu_custom_call.1} parent=1 // pred_fallthru
      _
    // Predicated region
    $region82: #{tpu_custom_call.1} parent=1 // pred_check
      _
    $region83: #{tpu_custom_call.1} parent=1 // pred_check_branch
      %83 = sbr.rel (0) target = $region85
    $region84: #{tpu_custom_call.1} parent=1 // pred_region
      _
    $region85: #{tpu_custom_call.1} parent=1 // pred_fallthru
      _
    // Predicated region
    $region86: #{tpu_custom_call.1} parent=1 // pred_check
      _
    $region87: #{tpu_custom_call.1} parent=1 // pred_check_branch
      %85 = sbr.rel (0) target = $region89
    $region88: #{tpu_custom_call.1} parent=1 // pred_region
      _
    $region89: #{tpu_custom_call.1} parent=1 // pred_fallthru
      _
    // Predicated region
    $region90: #{tpu_custom_call.1} parent=1 // pred_check
      _
    $region91: #{tpu_custom_call.1} parent=1 // pred_check_branch
      %87 = sbr.rel (0) target = $region93
    $region92: #{tpu_custom_call.1} parent=1 // pred_region
      %88 = dma.done [#allocation3], 4096
    $region93: #{tpu_custom_call.1} parent=1 // pred_fallthru
      _
    %v90 = vld [vmem:[%s0] sm:$0xff]
    %v91 = vld [vmem:[%s1] sm:$0xff]
    %v92 = vld [vmem:[%s2] sm:$0xff]
    %v93 = vld [vmem:[%s2 + $0x8] sm:$0xff]
    %v94 = vld [vmem:[%s2 + $0x10] sm:$0xff]
    %v95 = vld [vmem:[%s2 + $0x18] sm:$0xff]
    %v96 = vld [vmem:[%s2 + $0x20] sm:$0xff]
    %v97 = vld [vmem:[%s2 + $0x28] sm:$0xff]
    %v98 = vld [vmem:[%s2 + $0x30] sm:$0xff]
    %v99 = vld [vmem:[%s2 + $0x38] sm:$0xff]
    %v101 = vlaneseq
    %v102 = vshrl.u32 %v101, 7
    %v103 = vsub.s32 0, %v102
    %v104 = vrot.slane %v90, %v103
    %v105 = vlaneseq
    %v106 = vshrl.u32 %v105, 7
    %v107 = vsub.s32 1, %v106
    %v108 = vrot.slane %v90, %v107
    %v109 = vlaneseq
    %v110 = vshrl.u32 %v109, 7
    %v111 = vsub.s32 2, %v110
    %v112 = vrot.slane %v90, %v111
    %v113 = vlaneseq
    %v114 = vshrl.u32 %v113, 7
    %v115 = vsub.s32 3, %v114
    %v116 = vrot.slane %v90, %v115
    %v117 = vlaneseq
    %v118 = vshrl.u32 %v117, 7
    %v119 = vsub.s32 4, %v118
    %v120 = vrot.slane %v90, %v119
    %v121 = vlaneseq
    %v122 = vshrl.u32 %v121, 7
    %v123 = vsub.s32 5, %v122
    %v124 = vrot.slane %v90, %v123
    %v125 = vlaneseq
    %v126 = vshrl.u32 %v125, 7
    %v127 = vsub.s32 6, %v126
    %v128 = vrot.slane %v90, %v127
    %v129 = vlaneseq
    %v130 = vshrl.u32 %v129, 7
    %v131 = vsub.s32 7, %v130
    %v132 = vrot.slane %v90, %v131
    %133 = vrot.lane.b32.xlu0 %v104, 1
    %v134 = vpop.permute.xlu0 %133
    %135 = vrot.lane.b32.xlu0 %v108, 1
    %v136 = vpop.permute.xlu0 %135
    %137 = vrot.lane.b32.xlu0 %v112, 1
    %v138 = vpop.permute.xlu0 %137
    %139 = vrot.lane.b32.xlu0 %v116, 1
    %v140 = vpop.permute.xlu0 %139
    %141 = vrot.lane.b32.xlu0 %v120, 1
    %v142 = vpop.permute.xlu0 %141
    %143 = vrot.lane.b32.xlu0 %v124, 1
    %v144 = vpop.permute.xlu0 %143
    %145 = vrot.lane.b32.xlu0 %v128, 1
    %v146 = vpop.permute.xlu0 %145
    %147 = vrot.lane.b32.xlu0 %v132, 1
    %v148 = vpop.permute.xlu0 %147
    %vm149 = vcmask 7168
    %v150 = vsel %vm149, %v134, %v136
    %v151 = vsel %vm149, %v136, %v138
    %v152 = vsel %vm149, %v138, %v140
    %v153 = vsel %vm149, %v140, %v142
    %v154 = vsel %vm149, %v142, %v144
    %v155 = vsel %vm149, %v144, %v146
    %v156 = vsel %vm149, %v146, %v148
    %v165 = vsel %vm149, 0.0, %v134
    %166 = vrot.lane.b32.xlu0 %v104, 127
    %v167 = vpop.permute.xlu0 %166
    %168 = vrot.lane.b32.xlu0 %v108, 127
    %v169 = vpop.permute.xlu0 %168
    %170 = vrot.lane.b32.xlu0 %v112, 127
    %v171 = vpop.permute.xlu0 %170
    %172 = vrot.lane.b32.xlu0 %v116, 127
    %v173 = vpop.permute.xlu0 %172
    %174 = vrot.lane.b32.xlu0 %v120, 127
    %v175 = vpop.permute.xlu0 %174
    %176 = vrot.lane.b32.xlu0 %v124, 127
    %v177 = vpop.permute.xlu0 %176
    %178 = vrot.lane.b32.xlu0 %v128, 127
    %v179 = vpop.permute.xlu0 %178
    %180 = vrot.lane.b32.xlu0 %v132, 127
    %v181 = vpop.permute.xlu0 %180
    %vm182 = vcmask 1039360
    %v183 = vsel %vm182, %v167, %v169
    %v184 = vsel %vm182, %v169, %v171
    %v185 = vsel %vm182, %v171, %v173
    %v186 = vsel %vm182, %v173, %v175
    %v187 = vsel %vm182, %v175, %v177
    %v188 = vsel %vm182, %v177, %v179
    %v189 = vsel %vm182, %v179, %v181
    %v198 = vsel %vm182, %v181, 0.0
    %v199 = vld [vmem:[%s3] sm:$0xff]
    %v200 = vld [vmem:[%s3 + $0x8] sm:$0xff]
    %202 = vset.pattern.permute.xlu0 0
    %203 = vperm.xlu0 %202, %v199
    %v204 = vpop.permute.xlu0 %203
    %207 = vset.pattern.permute.xlu0 0
    %208 = vperm.xlu0 %207, %v200
    %v209 = vpop.permute.xlu0 %208
    %v211 = vlaneseq
    %v212 = vshrl.u32 %v211, 7
    %v213 = vsub.s32 0, %v212
    %v214 = vrot.slane %v165, %v213
    %v215 = vlaneseq
    %v216 = vshrl.u32 %v215, 7
    %v217 = vsub.s32 0, %v216
    %v218 = vrot.slane %v150, %v217
    %v219 = vlaneseq
    %v220 = vshrl.u32 %v219, 7
    %v221 = vsub.s32 0, %v220
    %v222 = vrot.slane %v151, %v221
    %v223 = vlaneseq
    %v224 = vshrl.u32 %v223, 7
    %v225 = vsub.s32 0, %v224
    %v226 = vrot.slane %v152, %v225
    %v227 = vlaneseq
    %v228 = vshrl.u32 %v227, 7
    %v229 = vsub.s32 0, %v228
    %v230 = vrot.slane %v153, %v229
    %v231 = vlaneseq
    %v232 = vshrl.u32 %v231, 7
    %v233 = vsub.s32 0, %v232
    %v234 = vrot.slane %v154, %v233
    %v235 = vlaneseq
    %v236 = vshrl.u32 %v235, 7
    %v237 = vsub.s32 0, %v236
    %v238 = vrot.slane %v155, %v237
    %v239 = vlaneseq
    %v240 = vshrl.u32 %v239, 7
    %v241 = vsub.s32 0, %v240
    %v242 = vrot.slane %v156, %v241
    %v243 = vmul.f32 %v204, %v214
    %v244 = vmul.f32 %v204, %v218
    %v245 = vmul.f32 %v204, %v222
    %v246 = vmul.f32 %v204, %v226
    %v247 = vmul.f32 %v204, %v230
    %v248 = vmul.f32 %v204, %v234
    %v249 = vmul.f32 %v204, %v238
    %v250 = vmul.f32 %v204, %v242
    %v251 = vmul.f32 %v209, %v214
    %v252 = vmul.f32 %v209, %v218
    %v253 = vmul.f32 %v209, %v222
    %v254 = vmul.f32 %v209, %v226
    %v255 = vmul.f32 %v209, %v230
    %v256 = vmul.f32 %v209, %v234
    %v257 = vmul.f32 %v209, %v238
    %v258 = vmul.f32 %v209, %v242
    %259 = vset.pattern.permute.xlu0 1
    %260 = vperm.xlu0 %259, %v199
    %v261 = vpop.permute.xlu0 %260
    %263 = vset.pattern.permute.xlu0 1
    %264 = vperm.xlu0 %263, %v200
    %v265 = vpop.permute.xlu0 %264
    %v275 = vmul.f32 %v261, %v104
    %v276 = vmul.f32 %v261, %v108
    %v277 = vmul.f32 %v261, %v112
    %v278 = vmul.f32 %v261, %v116
    %v279 = vmul.f32 %v261, %v120
    %v280 = vmul.f32 %v261, %v124
    %v281 = vmul.f32 %v261, %v128
    %v282 = vmul.f32 %v261, %v132
    %v283 = vmul.f32 %v265, %v104
    %v284 = vmul.f32 %v265, %v108
    %v285 = vmul.f32 %v265, %v112
    %v286 = vmul.f32 %v265, %v116
    %v287 = vmul.f32 %v265, %v120
    %v288 = vmul.f32 %v265, %v124
    %v289 = vmul.f32 %v265, %v128
    %v290 = vmul.f32 %v265, %v132
    %v291 = vadd.f32 %v243, %v275
    %v292 = vadd.f32 %v244, %v276
    %v293 = vadd.f32 %v245, %v277
    %v294 = vadd.f32 %v246, %v278
    %v295 = vadd.f32 %v247, %v279
    %v296 = vadd.f32 %v248, %v280
    %v297 = vadd.f32 %v249, %v281
    %v298 = vadd.f32 %v250, %v282
    %v299 = vadd.f32 %v251, %v283
    %v300 = vadd.f32 %v252, %v284
    %v301 = vadd.f32 %v253, %v285
    %v302 = vadd.f32 %v254, %v286
    %v303 = vadd.f32 %v255, %v287
    %v304 = vadd.f32 %v256, %v288
    %v305 = vadd.f32 %v257, %v289
    %v306 = vadd.f32 %v258, %v290
    %307 = vset.pattern.permute.xlu0 2
    %308 = vperm.xlu0 %307, %v199
    %v309 = vpop.permute.xlu0 %308
    %311 = vset.pattern.permute.xlu0 2
    %312 = vperm.xlu0 %311, %v200
    %v313 = vpop.permute.xlu0 %312
    %v315 = vlaneseq
    %v316 = vshrl.u32 %v315, 7
    %v317 = vsub.s32 0, %v316
    %v318 = vrot.slane %v183, %v317
    %v319 = vlaneseq
    %v320 = vshrl.u32 %v319, 7
    %v321 = vsub.s32 0, %v320
    %v322 = vrot.slane %v184, %v321
    %v323 = vlaneseq
    %v324 = vshrl.u32 %v323, 7
    %v325 = vsub.s32 0, %v324
    %v326 = vrot.slane %v185, %v325
    %v327 = vlaneseq
    %v328 = vshrl.u32 %v327, 7
    %v329 = vsub.s32 0, %v328
    %v330 = vrot.slane %v186, %v329
    %v331 = vlaneseq
    %v332 = vshrl.u32 %v331, 7
    %v333 = vsub.s32 0, %v332
    %v334 = vrot.slane %v187, %v333
    %v335 = vlaneseq
    %v336 = vshrl.u32 %v335, 7
    %v337 = vsub.s32 0, %v336
    %v338 = vrot.slane %v188, %v337
    %v339 = vlaneseq
    %v340 = vshrl.u32 %v339, 7
    %v341 = vsub.s32 0, %v340
    %v342 = vrot.slane %v189, %v341
    %v343 = vlaneseq
    %v344 = vshrl.u32 %v343, 7
    %v345 = vsub.s32 0, %v344
    %v346 = vrot.slane %v198, %v345
    %v347 = vmul.f32 %v309, %v318
    %v348 = vmul.f32 %v309, %v322
    %v349 = vmul.f32 %v309, %v326
    %v350 = vmul.f32 %v309, %v330
    %v351 = vmul.f32 %v309, %v334
    %v352 = vmul.f32 %v309, %v338
    %v353 = vmul.f32 %v309, %v342
    %v354 = vmul.f32 %v309, %v346
    %v355 = vmul.f32 %v313, %v318
    %v356 = vmul.f32 %v313, %v322
    %v357 = vmul.f32 %v313, %v326
    %v358 = vmul.f32 %v313, %v330
    %v359 = vmul.f32 %v313, %v334
    %v360 = vmul.f32 %v313, %v338
    %v361 = vmul.f32 %v313, %v342
    %v362 = vmul.f32 %v313, %v346
    %v363 = vadd.f32 %v291, %v347
    %v364 = vadd.f32 %v292, %v348
    %v365 = vadd.f32 %v293, %v349
    %v366 = vadd.f32 %v294, %v350
    %v367 = vadd.f32 %v295, %v351
    %v368 = vadd.f32 %v296, %v352
    %v369 = vadd.f32 %v297, %v353
    %v370 = vadd.f32 %v298, %v354
    %v371 = vadd.f32 %v299, %v355
    %v372 = vadd.f32 %v300, %v356
    %v373 = vadd.f32 %v301, %v357
    %v374 = vadd.f32 %v302, %v358
    %v375 = vadd.f32 %v303, %v359
    %v376 = vadd.f32 %v304, %v360
    %v377 = vadd.f32 %v305, %v361
    %v378 = vadd.f32 %v306, %v362
    %v379 = vld [vmem:[%s4] sm:$0xff]
    %v380 = vld [vmem:[%s4 + $0x8] sm:$0xff]
    %382 = vset.pattern.permute.xlu0 0
    %383 = vperm.xlu0 %382, %v379
    %v384 = vpop.permute.xlu0 %383
    %387 = vset.pattern.permute.xlu0 0
    %388 = vperm.xlu0 %387, %v380
    %v389 = vpop.permute.xlu0 %388
    %v391 = vadd.f32 %v363, %v384
    %v392 = vadd.f32 %v364, %v384
    %v393 = vadd.f32 %v365, %v384
    %v394 = vadd.f32 %v366, %v384
    %v395 = vadd.f32 %v367, %v384
    %v396 = vadd.f32 %v368, %v384
    %v397 = vadd.f32 %v369, %v384
    %v398 = vadd.f32 %v370, %v384
    %v399 = vadd.f32 %v371, %v389
    %v400 = vadd.f32 %v372, %v389
    %v401 = vadd.f32 %v373, %v389
    %v402 = vadd.f32 %v374, %v389
    %v403 = vadd.f32 %v375, %v389
    %v404 = vadd.f32 %v376, %v389
    %v405 = vadd.f32 %v377, %v389
    %v406 = vadd.f32 %v378, %v389
    %vm407 = vcmp.gt.f32.partialorder %v391, 0.0
    %vm408 = vcmp.gt.f32.partialorder %v392, 0.0
    %vm409 = vcmp.gt.f32.partialorder %v393, 0.0
    %vm410 = vcmp.gt.f32.partialorder %v394, 0.0
    %vm411 = vcmp.gt.f32.partialorder %v395, 0.0
    %vm412 = vcmp.gt.f32.partialorder %v396, 0.0
    %vm413 = vcmp.gt.f32.partialorder %v397, 0.0
    %vm414 = vcmp.gt.f32.partialorder %v398, 0.0
    %vm415 = vcmp.gt.f32.partialorder %v399, 0.0
    %vm416 = vcmp.gt.f32.partialorder %v400, 0.0
    %vm417 = vcmp.gt.f32.partialorder %v401, 0.0
    %vm418 = vcmp.gt.f32.partialorder %v402, 0.0
    %vm419 = vcmp.gt.f32.partialorder %v403, 0.0
    %vm420 = vcmp.gt.f32.partialorder %v404, 0.0
    %vm421 = vcmp.gt.f32.partialorder %v405, 0.0
    %vm422 = vcmp.gt.f32.partialorder %v406, 0.0
    %v423 = vmin.f32 %v391, 0.0
    %v424 = vmin.f32 %v392, 0.0
    %v425 = vmin.f32 %v393, 0.0
    %v426 = vmin.f32 %v394, 0.0
    %v427 = vmin.f32 %v395, 0.0
    %v428 = vmin.f32 %v396, 0.0
    %v429 = vmin.f32 %v397, 0.0
    %v430 = vmin.f32 %v398, 0.0
    %v431 = vmin.f32 %v399, 0.0
    %v432 = vmin.f32 %v400, 0.0
    %v433 = vmin.f32 %v401, 0.0
    %v434 = vmin.f32 %v402, 0.0
    %v435 = vmin.f32 %v403, 0.0
    %v436 = vmin.f32 %v404, 0.0
    %v437 = vmin.f32 %v405, 0.0
    %v438 = vmin.f32 %v406, 0.0
    %v439 = vmul.f32 %v423, 1.442695
    %v440 = vpow.pop %v439
    %v441 = vmul.f32 %v424, 1.442695
    %v442 = vpow.pop %v441
    %v443 = vmul.f32 %v425, 1.442695
    %v444 = vpow.pop %v443
    %v445 = vmul.f32 %v426, 1.442695
    %v446 = vpow.pop %v445
    %v447 = vmul.f32 %v427, 1.442695
    %v448 = vpow.pop %v447
    %v449 = vmul.f32 %v428, 1.442695
    %v450 = vpow.pop %v449
    %v451 = vmul.f32 %v429, 1.442695
    %v452 = vpow.pop %v451
    %v453 = vmul.f32 %v430, 1.442695
    %v454 = vpow.pop %v453
    %v455 = vmul.f32 %v431, 1.442695
    %v456 = vpow.pop %v455
    %v457 = vmul.f32 %v432, 1.442695
    %v458 = vpow.pop %v457
    %v459 = vmul.f32 %v433, 1.442695
    %v460 = vpow.pop %v459
    %v461 = vmul.f32 %v434, 1.442695
    %v462 = vpow.pop %v461
    %v463 = vmul.f32 %v435, 1.442695
    %v464 = vpow.pop %v463
    %v465 = vmul.f32 %v436, 1.442695
    %v466 = vpow.pop %v465
    %v467 = vmul.f32 %v437, 1.442695
    %v468 = vpow.pop %v467
    %v469 = vmul.f32 %v438, 1.442695
    %v470 = vpow.pop %v469
    %v471 = vsub.f32 %v440, 1.0
    %v472 = vsub.f32 %v442, 1.0
    %v473 = vsub.f32 %v444, 1.0
    %v474 = vsub.f32 %v446, 1.0
    %v475 = vsub.f32 %v448, 1.0
    %v476 = vsub.f32 %v450, 1.0
    %v477 = vsub.f32 %v452, 1.0
    %v478 = vsub.f32 %v454, 1.0
    %v479 = vsub.f32 %v456, 1.0
    %v480 = vsub.f32 %v458, 1.0
    %v481 = vsub.f32 %v460, 1.0
    %v482 = vsub.f32 %v462, 1.0
    %v483 = vsub.f32 %v464, 1.0
    %v484 = vsub.f32 %v466, 1.0
    %v485 = vsub.f32 %v468, 1.0
    %v486 = vsub.f32 %v470, 1.0
    %v487 = vsel %vm407, %v391, %v471
    %v488 = vsel %vm408, %v392, %v472
    %v489 = vsel %vm409, %v393, %v473
    %v490 = vsel %vm410, %v394, %v474
    %v491 = vsel %vm411, %v395, %v475
    %v492 = vsel %vm412, %v396, %v476
    %v493 = vsel %vm413, %v397, %v477
    %v494 = vsel %vm414, %v398, %v478
    %v495 = vsel %vm415, %v399, %v479
    %v496 = vsel %vm416, %v400, %v480
    %v497 = vsel %vm417, %v401, %v481
    %v498 = vsel %vm418, %v402, %v482
    %v499 = vsel %vm419, %v403, %v483
    %v500 = vsel %vm420, %v404, %v484
    %v501 = vsel %vm421, %v405, %v485
    %v502 = vsel %vm422, %v406, %v486
    %v504 = vlaneseq
    %v505 = vshrl.u32 %v504, 7
    %v506 = vsub.s32 0, %v505
    %v507 = vrot.slane %v91, %v506
    %v508 = vlaneseq
    %v509 = vshrl.u32 %v508, 7
    %v510 = vsub.s32 1, %v509
    %v511 = vrot.slane %v91, %v510
    %v512 = vlaneseq
    %v513 = vshrl.u32 %v512, 7
    %v514 = vsub.s32 2, %v513
    %v515 = vrot.slane %v91, %v514
    %v516 = vlaneseq
    %v517 = vshrl.u32 %v516, 7
    %v518 = vsub.s32 3, %v517
    %v519 = vrot.slane %v91, %v518
    %v520 = vlaneseq
    %v521 = vshrl.u32 %v520, 7
    %v522 = vsub.s32 4, %v521
    %v523 = vrot.slane %v91, %v522
    %v524 = vlaneseq
    %v525 = vshrl.u32 %v524, 7
    %v526 = vsub.s32 5, %v525
    %v527 = vrot.slane %v91, %v526
    %v528 = vlaneseq
    %v529 = vshrl.u32 %v528, 7
    %v530 = vsub.s32 6, %v529
    %v531 = vrot.slane %v91, %v530
    %v532 = vlaneseq
    %v533 = vshrl.u32 %v532, 7
    %v534 = vsub.s32 7, %v533
    %v535 = vrot.slane %v91, %v534
    %v544 = vmul.f32 %v487, %v507
    %v545 = vmul.f32 %v488, %v511
    %v546 = vmul.f32 %v489, %v515
    %v547 = vmul.f32 %v490, %v519
    %v548 = vmul.f32 %v491, %v523
    %v549 = vmul.f32 %v492, %v527
    %v550 = vmul.f32 %v493, %v531
    %v551 = vmul.f32 %v494, %v535
    %v552 = vmul.f32 %v495, %v507
    %v553 = vmul.f32 %v496, %v511
    %v554 = vmul.f32 %v497, %v515
    %v555 = vmul.f32 %v498, %v519
    %v556 = vmul.f32 %v499, %v523
    %v557 = vmul.f32 %v500, %v527
    %v558 = vmul.f32 %v501, %v531
    %v559 = vmul.f32 %v502, %v535
    %576 = vrot.lane.b32.xlu0 %v544, 1
    %v577 = vpop.permute.xlu0 %576
    %578 = vrot.lane.b32.xlu0 %v545, 1
    %v579 = vpop.permute.xlu0 %578
    %580 = vrot.lane.b32.xlu0 %v546, 1
    %v581 = vpop.permute.xlu0 %580
    %582 = vrot.lane.b32.xlu0 %v547, 1
    %v583 = vpop.permute.xlu0 %582
    %584 = vrot.lane.b32.xlu0 %v548, 1
    %v585 = vpop.permute.xlu0 %584
    %586 = vrot.lane.b32.xlu0 %v549, 1
    %v587 = vpop.permute.xlu0 %586
    %588 = vrot.lane.b32.xlu0 %v550, 1
    %v589 = vpop.permute.xlu0 %588
    %590 = vrot.lane.b32.xlu0 %v551, 1
    %v591 = vpop.permute.xlu0 %590
    %592 = vrot.lane.b32.xlu0 %v552, 1
    %v593 = vpop.permute.xlu0 %592
    %594 = vrot.lane.b32.xlu0 %v553, 1
    %v595 = vpop.permute.xlu0 %594
    %596 = vrot.lane.b32.xlu0 %v554, 1
    %v597 = vpop.permute.xlu0 %596
    %598 = vrot.lane.b32.xlu0 %v555, 1
    %v599 = vpop.permute.xlu0 %598
    %600 = vrot.lane.b32.xlu0 %v556, 1
    %v601 = vpop.permute.xlu0 %600
    %602 = vrot.lane.b32.xlu0 %v557, 1
    %v603 = vpop.permute.xlu0 %602
    %604 = vrot.lane.b32.xlu0 %v558, 1
    %v605 = vpop.permute.xlu0 %604
    %606 = vrot.lane.b32.xlu0 %v559, 1
    %v607 = vpop.permute.xlu0 %606
    %v608 = vsel %vm149, %v577, %v579
    %v609 = vsel %vm149, %v579, %v581
    %v610 = vsel %vm149, %v581, %v583
    %v611 = vsel %vm149, %v583, %v585
    %v612 = vsel %vm149, %v585, %v587
    %v613 = vsel %vm149, %v587, %v589
    %v614 = vsel %vm149, %v589, %v591
    %v615 = vsel %vm149, %v593, %v595
    %v616 = vsel %vm149, %v595, %v597
    %v617 = vsel %vm149, %v597, %v599
    %v618 = vsel %vm149, %v599, %v601
    %v619 = vsel %vm149, %v601, %v603
    %v620 = vsel %vm149, %v603, %v605
    %v621 = vsel %vm149, %v605, %v607
    %v638 = vsel %vm149, 0.0, %v577
    %v639 = vsel %vm149, 0.0, %v593
    %640 = vrot.lane.b32.xlu0 %v544, 127
    %v641 = vpop.permute.xlu0 %640
    %642 = vrot.lane.b32.xlu0 %v545, 127
    %v643 = vpop.permute.xlu0 %642
    %644 = vrot.lane.b32.xlu0 %v546, 127
    %v645 = vpop.permute.xlu0 %644
    %646 = vrot.lane.b32.xlu0 %v547, 127
    %v647 = vpop.permute.xlu0 %646
    %648 = vrot.lane.b32.xlu0 %v548, 127
    %v649 = vpop.permute.xlu0 %648
    %650 = vrot.lane.b32.xlu0 %v549, 127
    %v651 = vpop.permute.xlu0 %650
    %652 = vrot.lane.b32.xlu0 %v550, 127
    %v653 = vpop.permute.xlu0 %652
    %654 = vrot.lane.b32.xlu0 %v551, 127
    %v655 = vpop.permute.xlu0 %654
    %656 = vrot.lane.b32.xlu0 %v552, 127
    %v657 = vpop.permute.xlu0 %656
    %658 = vrot.lane.b32.xlu0 %v553, 127
    %v659 = vpop.permute.xlu0 %658
    %660 = vrot.lane.b32.xlu0 %v554, 127
    %v661 = vpop.permute.xlu0 %660
    %662 = vrot.lane.b32.xlu0 %v555, 127
    %v663 = vpop.permute.xlu0 %662
    %664 = vrot.lane.b32.xlu0 %v556, 127
    %v665 = vpop.permute.xlu0 %664
    %666 = vrot.lane.b32.xlu0 %v557, 127
    %v667 = vpop.permute.xlu0 %666
    %668 = vrot.lane.b32.xlu0 %v558, 127
    %v669 = vpop.permute.xlu0 %668
    %670 = vrot.lane.b32.xlu0 %v559, 127
    %v671 = vpop.permute.xlu0 %670
    %v672 = vsel %vm182, %v641, %v643
    %v673 = vsel %vm182, %v643, %v645
    %v674 = vsel %vm182, %v645, %v647
    %v675 = vsel %vm182, %v647, %v649
    %v676 = vsel %vm182, %v649, %v651
    %v677 = vsel %vm182, %v651, %v653
    %v678 = vsel %vm182, %v653, %v655
    %v679 = vsel %vm182, %v657, %v659
    %v680 = vsel %vm182, %v659, %v661
    %v681 = vsel %vm182, %v661, %v663
    %v682 = vsel %vm182, %v663, %v665
    %v683 = vsel %vm182, %v665, %v667
    %v684 = vsel %vm182, %v667, %v669
    %v685 = vsel %vm182, %v669, %v671
    %v702 = vsel %vm182, %v655, 0.0
    %v703 = vsel %vm182, %v671, 0.0
    %v704 = vld [vmem:[%s5] sm:$0xff]
    %v705 = vld [vmem:[%s5 + $0x8] sm:$0xff]
    %v706 = vld [vmem:[%s5 + $0x10] sm:$0xff]
    %v707 = vld [vmem:[%s5 + $0x18] sm:$0xff]
    %v708 = vld [vmem:[%s6] sm:$0xff]
    %v709 = vld [vmem:[%s6 + $0x8] sm:$0xff]
    %v710 = vld [vmem:[%s6 + $0x10] sm:$0xff]
    %v711 = vld [vmem:[%s6 + $0x18] sm:$0xff]
    %713 = vset.pattern.permute.xlu0 0
    %714 = vperm.xlu0 %713, %v708
    %v715 = vpop.permute.xlu0 %714
    %718 = vset.pattern.permute.xlu0 0
    %719 = vperm.xlu0 %718, %v709
    %v720 = vpop.permute.xlu0 %719
    %723 = vset.pattern.permute.xlu0 0
    %724 = vperm.xlu0 %723, %v710
    %v725 = vpop.permute.xlu0 %724
    %728 = vset.pattern.permute.xlu0 0
    %729 = vperm.xlu0 %728, %v711
    %v730 = vpop.permute.xlu0 %729
    %vm732 = vcmask 392192
    %v734 = vsel %vm732, %v704, 0
    %v737 = vsel %vm732, %v705, 0
    %v740 = vsel %vm732, %v706, 0
    %v743 = vsel %vm732, %v707, 0
    %745 = vmatprep.subr.mxu0 0.0
    %746 = vmatpush1.msra.mxu0 0.0
    %747 = vmatprep.subr.mxu0 0.0
    %748 = vmatpush1.msra.mxu0 0.0
    %749 = vmatprep.subr.mxu0 0.0
    %750 = vmatpush1.msra.mxu0 0.0
    %751 = vmatprep.subr.mxu0 0.0
    %752 = vmatpush1.msra.mxu0 0.0
    %753 = vmatprep.subr.mxu0 0.0
    %754 = vmatpush1.msra.mxu0 0.0
    %755 = vmatprep.subr.mxu0 0.0
    %756 = vmatpush1.msra.mxu0 0.0
    %757 = vmatprep.subr.mxu0 0.0
    %758 = vmatpush1.msra.mxu0 0.0
    %759 = vmatprep.subr.mxu0 0.0
    %760 = vmatpush1.msra.mxu0 0.0
    %761 = vmatprep.subr.mxu0 0.0
    %762 = vmatpush1.msra.mxu0 0.0
    %763 = vmatprep.subr.mxu0 0.0
    %764 = vmatpush1.msra.mxu0 0.0
    %765 = vmatprep.subr.mxu0 %v680
    %766 = vmatpush1.msra.mxu0 %v679
    %767 = vmatprep.subr.mxu0 %v673
    %768 = vmatpush1.msra.mxu0 %v672
    %769 = vmatprep.subr.mxu0 %v553
    %770 = vmatpush1.msra.mxu0 %v552
    %771 = vmatprep.subr.mxu0 %v545
    %772 = vmatpush1.msra.mxu0 %v544
    %773 = vmatprep.subr.mxu0 %v615
    %774 = vmatpush1.msra.mxu0 %v639
    %775 = vmatprep.subr.mxu0 %v608
    %776 = vmatpush1.msra.mxu0 %v638
    %777 = vmatprep.subr.mxu0 0.0
    %778 = vmatpush2.msra.mxu0 0.0
    %779 = vmatprep.subr.mxu0 0.0
    %780 = vmatpush2.msra.mxu0 0.0
    %781 = vmatprep.subr.mxu0 0.0
    %782 = vmatpush2.msra.mxu0 0.0
    %783 = vmatprep.subr.mxu0 0.0
    %784 = vmatpush2.msra.mxu0 0.0
    %785 = vmatprep.subr.mxu0 0.0
    %786 = vmatpush2.msra.mxu0 0.0
    %787 = vmatprep.subr.mxu0 0.0
    %788 = vmatpush2.msra.mxu0 0.0
    %789 = vmatprep.subr.mxu0 0.0
    %790 = vmatpush2.msra.mxu0 0.0
    %791 = vmatprep.subr.mxu0 0.0
    %792 = vmatpush2.msra.mxu0 0.0
    %793 = vmatprep.subr.mxu0 0.0
    %794 = vmatpush2.msra.mxu0 0.0
    %795 = vmatprep.subr.mxu0 0.0
    %796 = vmatpush2.msra.mxu0 0.0
    %797 = vmatprep.subr.mxu0 0.0
    %798 = vmatpush2.msra.mxu0 0.0
    %799 = vmatprep.subr.mxu0 0.0
    %800 = vmatpush2.msra.mxu0 0.0
    %801 = vmatprep.subr.mxu0 0.0
    %802 = vmatpush2.msra.mxu0 0.0
    %803 = vmatprep.subr.mxu0 0.0
    %804 = vmatpush2.msra.mxu0 0.0
    %805 = vmatprep.subr.mxu0 0.0
    %806 = vmatpush2.msra.mxu0 0.0
    %807 = vmatprep.subr.mxu0 0.0
    %808 = vmatpush2.msra.mxu0 0.0
    %809 = vmatprep.mubr.f32.mxu0 0.0
    %810 = vmatmul.mubr.f32.gmra.mxu0 %v734
    %v811 = vpop.f32.mrf.mxu0
    %v812 = vadd.f32 %v715, %v811
    %v813 = vpop.f32.mrf.mxu0
    %v814 = vadd.f32 %v715, %v813
    %815 = vmatprep.mubr.f32.mxu0 0.0
    %816 = vmatmul.mubr.f32.gmra.mxu0 %v737
    %v817 = vpop.f32.mrf.mxu0
    %v818 = vadd.f32 %v720, %v817
    %v819 = vpop.f32.mrf.mxu0
    %v820 = vadd.f32 %v720, %v819
    %821 = vmatprep.mubr.f32.mxu0 0.0
    %822 = vmatmul.mubr.f32.gmra.mxu0 %v740
    %v823 = vpop.f32.mrf.mxu0
    %v824 = vadd.f32 %v725, %v823
    %v825 = vpop.f32.mrf.mxu0
    %v826 = vadd.f32 %v725, %v825
    %827 = vmatprep.mubr.f32.mxu0 0.0
    %828 = vmatmul.mubr.f32.gmra.mxu0 %v743
    %v829 = vpop.f32.mrf.mxu0
    %v830 = vadd.f32 %v730, %v829
    %v831 = vpop.f32.mrf.mxu0
    %v832 = vadd.f32 %v730, %v831
    %833 = vdwg.mxu0
    %834 = vmatprep.subr.mxu0 0.0
    %835 = vmatpush1.msra.mxu0 0.0
    %836 = vmatprep.subr.mxu0 0.0
    %837 = vmatpush1.msra.mxu0 0.0
    %838 = vmatprep.subr.mxu0 0.0
    %839 = vmatpush1.msra.mxu0 0.0
    %840 = vmatprep.subr.mxu0 0.0
    %841 = vmatpush1.msra.mxu0 0.0
    %842 = vmatprep.subr.mxu0 0.0
    %843 = vmatpush1.msra.mxu0 0.0
    %844 = vmatprep.subr.mxu0 0.0
    %845 = vmatpush1.msra.mxu0 0.0
    %846 = vmatprep.subr.mxu0 0.0
    %847 = vmatpush1.msra.mxu0 0.0
    %848 = vmatprep.subr.mxu0 0.0
    %849 = vmatpush1.msra.mxu0 0.0
    %850 = vmatprep.subr.mxu0 0.0
    %851 = vmatpush1.msra.mxu0 0.0
    %852 = vmatprep.subr.mxu0 0.0
    %853 = vmatpush1.msra.mxu0 0.0
    %854 = vmatprep.subr.mxu0 %v682
    %855 = vmatpush1.msra.mxu0 %v681
    %856 = vmatprep.subr.mxu0 %v675
    %857 = vmatpush1.msra.mxu0 %v674
    %858 = vmatprep.subr.mxu0 %v555
    %859 = vmatpush1.msra.mxu0 %v554
    %860 = vmatprep.subr.mxu0 %v547
    %861 = vmatpush1.msra.mxu0 %v546
    %862 = vmatprep.subr.mxu0 %v617
    %863 = vmatpush1.msra.mxu0 %v616
    %864 = vmatprep.subr.mxu0 %v610
    %865 = vmatpush1.msra.mxu0 %v609
    %866 = vmatprep.subr.mxu0 0.0
    %867 = vmatpush2.msra.mxu0 0.0
    %868 = vmatprep.subr.mxu0 0.0
    %869 = vmatpush2.msra.mxu0 0.0
    %870 = vmatprep.subr.mxu0 0.0
    %871 = vmatpush2.msra.mxu0 0.0
    %872 = vmatprep.subr.mxu0 0.0
    %873 = vmatpush2.msra.mxu0 0.0
    %874 = vmatprep.subr.mxu0 0.0
    %875 = vmatpush2.msra.mxu0 0.0
    %876 = vmatprep.subr.mxu0 0.0
    %877 = vmatpush2.msra.mxu0 0.0
    %878 = vmatprep.subr.mxu0 0.0
    %879 = vmatpush2.msra.mxu0 0.0
    %880 = vmatprep.subr.mxu0 0.0
    %881 = vmatpush2.msra.mxu0 0.0
    %882 = vmatprep.subr.mxu0 0.0
    %883 = vmatpush2.msra.mxu0 0.0
    %884 = vmatprep.subr.mxu0 0.0
    %885 = vmatpush2.msra.mxu0 0.0
    %886 = vmatprep.subr.mxu0 0.0
    %887 = vmatpush2.msra.mxu0 0.0
    %888 = vmatprep.subr.mxu0 0.0
    %889 = vmatpush2.msra.mxu0 0.0
    %890 = vmatprep.subr.mxu0 0.0
    %891 = vmatpush2.msra.mxu0 0.0
    %892 = vmatprep.subr.mxu0 0.0
    %893 = vmatpush2.msra.mxu0 0.0
    %894 = vmatprep.subr.mxu0 0.0
    %895 = vmatpush2.msra.mxu0 0.0
    %896 = vmatprep.subr.mxu0 0.0
    %897 = vmatpush2.msra.mxu0 0.0
    %898 = vmatprep.mubr.f32.mxu0 0.0
    %899 = vmatmul.mubr.f32.gmra.mxu0 %v734
    %v900 = vpop.f32.mrf.mxu0
    %v901 = vadd.f32 %v715, %v900
    %v902 = vpop.f32.mrf.mxu0
    %v903 = vadd.f32 %v715, %v902
    %904 = vmatprep.mubr.f32.mxu0 0.0
    %905 = vmatmul.mubr.f32.gmra.mxu0 %v737
    %v906 = vpop.f32.mrf.mxu0
    %v907 = vadd.f32 %v720, %v906
    %v908 = vpop.f32.mrf.mxu0
    %v909 = vadd.f32 %v720, %v908
    %910 = vmatprep.mubr.f32.mxu0 0.0
    %911 = vmatmul.mubr.f32.gmra.mxu0 %v740
    %v912 = vpop.f32.mrf.mxu0
    %v913 = vadd.f32 %v725, %v912
    %v914 = vpop.f32.mrf.mxu0
    %v915 = vadd.f32 %v725, %v914
    %916 = vmatprep.mubr.f32.mxu0 0.0
    %917 = vmatmul.mubr.f32.gmra.mxu0 %v743
    %v918 = vpop.f32.mrf.mxu0
    %v919 = vadd.f32 %v730, %v918
    %v920 = vpop.f32.mrf.mxu0
    %v921 = vadd.f32 %v730, %v920
    %922 = vdwg.mxu0
    %923 = vmatprep.subr.mxu0 0.0
    %924 = vmatpush1.msra.mxu0 0.0
    %925 = vmatprep.subr.mxu0 0.0
    %926 = vmatpush1.msra.mxu0 0.0
    %927 = vmatprep.subr.mxu0 0.0
    %928 = vmatpush1.msra.mxu0 0.0
    %929 = vmatprep.subr.mxu0 0.0
    %930 = vmatpush1.msra.mxu0 0.0
    %931 = vmatprep.subr.mxu0 0.0
    %932 = vmatpush1.msra.mxu0 0.0
    %933 = vmatprep.subr.mxu0 0.0
    %934 = vmatpush1.msra.mxu0 0.0
    %935 = vmatprep.subr.mxu0 0.0
    %936 = vmatpush1.msra.mxu0 0.0
    %937 = vmatprep.subr.mxu0 0.0
    %938 = vmatpush1.msra.mxu0 0.0
    %939 = vmatprep.subr.mxu0 0.0
    %940 = vmatpush1.msra.mxu0 0.0
    %941 = vmatprep.subr.mxu0 0.0
    %942 = vmatpush1.msra.mxu0 0.0
    %943 = vmatprep.subr.mxu0 %v684
    %944 = vmatpush1.msra.mxu0 %v683
    %945 = vmatprep.subr.mxu0 %v677
    %946 = vmatpush1.msra.mxu0 %v676
    %947 = vmatprep.subr.mxu0 %v557
    %948 = vmatpush1.msra.mxu0 %v556
    %949 = vmatprep.subr.mxu0 %v549
    %950 = vmatpush1.msra.mxu0 %v548
    %951 = vmatprep.subr.mxu0 %v619
    %952 = vmatpush1.msra.mxu0 %v618
    %953 = vmatprep.subr.mxu0 %v612
    %954 = vmatpush1.msra.mxu0 %v611
    %955 = vmatprep.subr.mxu0 0.0
    %956 = vmatpush2.msra.mxu0 0.0
    %957 = vmatprep.subr.mxu0 0.0
    %958 = vmatpush2.msra.mxu0 0.0
    %959 = vmatprep.subr.mxu0 0.0
    %960 = vmatpush2.msra.mxu0 0.0
    %961 = vmatprep.subr.mxu0 0.0
    %962 = vmatpush2.msra.mxu0 0.0
    %963 = vmatprep.subr.mxu0 0.0
    %964 = vmatpush2.msra.mxu0 0.0
    %965 = vmatprep.subr.mxu0 0.0
    %966 = vmatpush2.msra.mxu0 0.0
    %967 = vmatprep.subr.mxu0 0.0
    %968 = vmatpush2.msra.mxu0 0.0
    %969 = vmatprep.subr.mxu0 0.0
    %970 = vmatpush2.msra.mxu0 0.0
    %971 = vmatprep.subr.mxu0 0.0
    %972 = vmatpush2.msra.mxu0 0.0
    %973 = vmatprep.subr.mxu0 0.0
    %974 = vmatpush2.msra.mxu0 0.0
    %975 = vmatprep.subr.mxu0 0.0
    %976 = vmatpush2.msra.mxu0 0.0
    %977 = vmatprep.subr.mxu0 0.0
    %978 = vmatpush2.msra.mxu0 0.0
    %979 = vmatprep.subr.mxu0 0.0
    %980 = vmatpush2.msra.mxu0 0.0
    %981 = vmatprep.subr.mxu0 0.0
    %982 = vmatpush2.msra.mxu0 0.0
    %983 = vmatprep.subr.mxu0 0.0
    %984 = vmatpush2.msra.mxu0 0.0
    %985 = vmatprep.subr.mxu0 0.0
    %986 = vmatpush2.msra.mxu0 0.0
    %987 = vmatprep.mubr.f32.mxu0 0.0
    %988 = vmatmul.mubr.f32.gmra.mxu0 %v734
    %v989 = vpop.f32.mrf.mxu0
    %v990 = vadd.f32 %v715, %v989
    %v991 = vpop.f32.mrf.mxu0
    %v992 = vadd.f32 %v715, %v991
    %993 = vmatprep.mubr.f32.mxu0 0.0
    %994 = vmatmul.mubr.f32.gmra.mxu0 %v737
    %v995 = vpop.f32.mrf.mxu0
    %v996 = vadd.f32 %v720, %v995
    %v997 = vpop.f32.mrf.mxu0
    %v998 = vadd.f32 %v720, %v997
    %999 = vmatprep.mubr.f32.mxu0 0.0
    %1000 = vmatmul.mubr.f32.gmra.mxu0 %v740
    %v1001 = vpop.f32.mrf.mxu0
    %v1002 = vadd.f32 %v725, %v1001
    %v1003 = vpop.f32.mrf.mxu0
    %v1004 = vadd.f32 %v725, %v1003
    %1005 = vmatprep.mubr.f32.mxu0 0.0
    %1006 = vmatmul.mubr.f32.gmra.mxu0 %v743
    %v1007 = vpop.f32.mrf.mxu0
    %v1008 = vadd.f32 %v730, %v1007
    %v1009 = vpop.f32.mrf.mxu0
    %v1010 = vadd.f32 %v730, %v1009
    %1011 = vdwg.mxu0
    %1012 = vmatprep.subr.mxu0 0.0
    %1013 = vmatpush1.msra.mxu0 0.0
    %1014 = vmatprep.subr.mxu0 0.0
    %1015 = vmatpush1.msra.mxu0 0.0
    %1016 = vmatprep.subr.mxu0 0.0
    %1017 = vmatpush1.msra.mxu0 0.0
    %1018 = vmatprep.subr.mxu0 0.0
    %1019 = vmatpush1.msra.mxu0 0.0
    %1020 = vmatprep.subr.mxu0 0.0
    %1021 = vmatpush1.msra.mxu0 0.0
    %1022 = vmatprep.subr.mxu0 0.0
    %1023 = vmatpush1.msra.mxu0 0.0
    %1024 = vmatprep.subr.mxu0 0.0
    %1025 = vmatpush1.msra.mxu0 0.0
    %1026 = vmatprep.subr.mxu0 0.0
    %1027 = vmatpush1.msra.mxu0 0.0
    %1028 = vmatprep.subr.mxu0 0.0
    %1029 = vmatpush1.msra.mxu0 0.0
    %1030 = vmatprep.subr.mxu0 0.0
    %1031 = vmatpush1.msra.mxu0 0.0
    %1032 = vmatprep.subr.mxu0 %v703
    %1033 = vmatpush1.msra.mxu0 %v685
    %1034 = vmatprep.subr.mxu0 %v702
    %1035 = vmatpush1.msra.mxu0 %v678
    %1036 = vmatprep.subr.mxu0 %v559
    %1037 = vmatpush1.msra.mxu0 %v558
    %1038 = vmatprep.subr.mxu0 %v551
    %1039 = vmatpush1.msra.mxu0 %v550
    %1040 = vmatprep.subr.mxu0 %v621
    %1041 = vmatpush1.msra.mxu0 %v620
    %1042 = vmatprep.subr.mxu0 %v614
    %1043 = vmatpush1.msra.mxu0 %v613
    %1044 = vmatprep.subr.mxu0 0.0
    %1045 = vmatpush2.msra.mxu0 0.0
    %1046 = vmatprep.subr.mxu0 0.0
    %1047 = vmatpush2.msra.mxu0 0.0
    %1048 = vmatprep.subr.mxu0 0.0
    %1049 = vmatpush2.msra.mxu0 0.0
    %1050 = vmatprep.subr.mxu0 0.0
    %1051 = vmatpush2.msra.mxu0 0.0
    %1052 = vmatprep.subr.mxu0 0.0
    %1053 = vmatpush2.msra.mxu0 0.0
    %1054 = vmatprep.subr.mxu0 0.0
    %1055 = vmatpush2.msra.mxu0 0.0
    %1056 = vmatprep.subr.mxu0 0.0
    %1057 = vmatpush2.msra.mxu0 0.0
    %1058 = vmatprep.subr.mxu0 0.0
    %1059 = vmatpush2.msra.mxu0 0.0
    %1060 = vmatprep.subr.mxu0 0.0
    %1061 = vmatpush2.msra.mxu0 0.0
    %1062 = vmatprep.subr.mxu0 0.0
    %1063 = vmatpush2.msra.mxu0 0.0
    %1064 = vmatprep.subr.mxu0 0.0
    %1065 = vmatpush2.msra.mxu0 0.0
    %1066 = vmatprep.subr.mxu0 0.0
    %1067 = vmatpush2.msra.mxu0 0.0
    %1068 = vmatprep.subr.mxu0 0.0
    %1069 = vmatpush2.msra.mxu0 0.0
    %1070 = vmatprep.subr.mxu0 0.0
    %1071 = vmatpush2.msra.mxu0 0.0
    %1072 = vmatprep.subr.mxu0 0.0
    %1073 = vmatpush2.msra.mxu0 0.0
    %1074 = vmatprep.subr.mxu0 0.0
    %1075 = vmatpush2.msra.mxu0 0.0
    %1076 = vmatprep.mubr.f32.mxu0 0.0
    %1077 = vmatmul.mubr.f32.gmra.mxu0 %v734
    %v1078 = vpop.f32.mrf.mxu0
    %v1079 = vadd.f32 %v715, %v1078
    %v1080 = vpop.f32.mrf.mxu0
    %v1081 = vadd.f32 %v715, %v1080
    %1082 = vmatprep.mubr.f32.mxu0 0.0
    %1083 = vmatmul.mubr.f32.gmra.mxu0 %v737
    %v1084 = vpop.f32.mrf.mxu0
    %v1085 = vadd.f32 %v720, %v1084
    %v1086 = vpop.f32.mrf.mxu0
    %v1087 = vadd.f32 %v720, %v1086
    %1088 = vmatprep.mubr.f32.mxu0 0.0
    %1089 = vmatmul.mubr.f32.gmra.mxu0 %v740
    %v1090 = vpop.f32.mrf.mxu0
    %v1091 = vadd.f32 %v725, %v1090
    %v1092 = vpop.f32.mrf.mxu0
    %v1093 = vadd.f32 %v725, %v1092
    %1094 = vmatprep.mubr.f32.mxu0 0.0
    %1095 = vmatmul.mubr.f32.gmra.mxu0 %v743
    %v1096 = vpop.f32.mrf.mxu0
    %v1097 = vadd.f32 %v730, %v1096
    %v1098 = vpop.f32.mrf.mxu0
    %v1099 = vadd.f32 %v730, %v1098
    %1100 = vdwg.mxu0
    %vm1101 = vcmp.gt.f32.partialorder %v812, 0.0
    %vm1102 = vcmp.gt.f32.partialorder %v814, 0.0
    %vm1103 = vcmp.gt.f32.partialorder %v901, 0.0
    %vm1104 = vcmp.gt.f32.partialorder %v903, 0.0
    %vm1105 = vcmp.gt.f32.partialorder %v990, 0.0
    %vm1106 = vcmp.gt.f32.partialorder %v992, 0.0
    %vm1107 = vcmp.gt.f32.partialorder %v1079, 0.0
    %vm1108 = vcmp.gt.f32.partialorder %v1081, 0.0
    %vm1109 = vcmp.gt.f32.partialorder %v818, 0.0
    %vm1110 = vcmp.gt.f32.partialorder %v820, 0.0
    %vm1111 = vcmp.gt.f32.partialorder %v907, 0.0
    %vm1112 = vcmp.gt.f32.partialorder %v909, 0.0
    %vm1113 = vcmp.gt.f32.partialorder %v996, 0.0
    %vm1114 = vcmp.gt.f32.partialorder %v998, 0.0
    %vm1115 = vcmp.gt.f32.partialorder %v1085, 0.0
    %vm1116 = vcmp.gt.f32.partialorder %v1087, 0.0
    %vm1117 = vcmp.gt.f32.partialorder %v824, 0.0
    %vm1118 = vcmp.gt.f32.partialorder %v826, 0.0
    %vm1119 = vcmp.gt.f32.partialorder %v913, 0.0
    %vm1120 = vcmp.gt.f32.partialorder %v915, 0.0
    %vm1121 = vcmp.gt.f32.partialorder %v1002, 0.0
    %vm1122 = vcmp.gt.f32.partialorder %v1004, 0.0
    %vm1123 = vcmp.gt.f32.partialorder %v1091, 0.0
    %vm1124 = vcmp.gt.f32.partialorder %v1093, 0.0
    %vm1125 = vcmp.gt.f32.partialorder %v830, 0.0
    %vm1126 = vcmp.gt.f32.partialorder %v832, 0.0
    %vm1127 = vcmp.gt.f32.partialorder %v919, 0.0
    %vm1128 = vcmp.gt.f32.partialorder %v921, 0.0
    %vm1129 = vcmp.gt.f32.partialorder %v1008, 0.0
    %vm1130 = vcmp.gt.f32.partialorder %v1010, 0.0
    %vm1131 = vcmp.gt.f32.partialorder %v1097, 0.0
    %vm1132 = vcmp.gt.f32.partialorder %v1099, 0.0
    %v1133 = vmin.f32 %v812, 0.0
    %v1134 = vmin.f32 %v814, 0.0
    %v1135 = vmin.f32 %v901, 0.0
    %v1136 = vmin.f32 %v903, 0.0
    %v1137 = vmin.f32 %v990, 0.0
    %v1138 = vmin.f32 %v992, 0.0
    %v1139 = vmin.f32 %v1079, 0.0
    %v1140 = vmin.f32 %v1081, 0.0
    %v1141 = vmin.f32 %v818, 0.0
    %v1142 = vmin.f32 %v820, 0.0
    %v1143 = vmin.f32 %v907, 0.0
    %v1144 = vmin.f32 %v909, 0.0
    %v1145 = vmin.f32 %v996, 0.0
    %v1146 = vmin.f32 %v998, 0.0
    %v1147 = vmin.f32 %v1085, 0.0
    %v1148 = vmin.f32 %v1087, 0.0
    %v1149 = vmin.f32 %v824, 0.0
    %v1150 = vmin.f32 %v826, 0.0
    %v1151 = vmin.f32 %v913, 0.0
    %v1152 = vmin.f32 %v915, 0.0
    %v1153 = vmin.f32 %v1002, 0.0
    %v1154 = vmin.f32 %v1004, 0.0
    %v1155 = vmin.f32 %v1091, 0.0
    %v1156 = vmin.f32 %v1093, 0.0
    %v1157 = vmin.f32 %v830, 0.0
    %v1158 = vmin.f32 %v832, 0.0
    %v1159 = vmin.f32 %v919, 0.0
    %v1160 = vmin.f32 %v921, 0.0
    %v1161 = vmin.f32 %v1008, 0.0
    %v1162 = vmin.f32 %v1010, 0.0
    %v1163 = vmin.f32 %v1097, 0.0
    %v1164 = vmin.f32 %v1099, 0.0
    %v1165 = vmul.f32 %v1133, 1.442695
    %v1166 = vpow.pop %v1165
    %v1167 = vmul.f32 %v1134, 1.442695
    %v1168 = vpow.pop %v1167
    %v1169 = vmul.f32 %v1135, 1.442695
    %v1170 = vpow.pop %v1169
    %v1171 = vmul.f32 %v1136, 1.442695
    %v1172 = vpow.pop %v1171
    %v1173 = vmul.f32 %v1137, 1.442695
    %v1174 = vpow.pop %v1173
    %v1175 = vmul.f32 %v1138, 1.442695
    %v1176 = vpow.pop %v1175
    %v1177 = vmul.f32 %v1139, 1.442695
    %v1178 = vpow.pop %v1177
    %v1179 = vmul.f32 %v1140, 1.442695
    %v1180 = vpow.pop %v1179
    %v1181 = vmul.f32 %v1141, 1.442695
    %v1182 = vpow.pop %v1181
    %v1183 = vmul.f32 %v1142, 1.442695
    %v1184 = vpow.pop %v1183
    %v1185 = vmul.f32 %v1143, 1.442695
    %v1186 = vpow.pop %v1185
    %v1187 = vmul.f32 %v1144, 1.442695
    %v1188 = vpow.pop %v1187
    %v1189 = vmul.f32 %v1145, 1.442695
    %v1190 = vpow.pop %v1189
    %v1191 = vmul.f32 %v1146, 1.442695
    %v1192 = vpow.pop %v1191
    %v1193 = vmul.f32 %v1147, 1.442695
    %v1194 = vpow.pop %v1193
    %v1195 = vmul.f32 %v1148, 1.442695
    %v1196 = vpow.pop %v1195
    %v1197 = vmul.f32 %v1149, 1.442695
    %v1198 = vpow.pop %v1197
    %v1199 = vmul.f32 %v1150, 1.442695
    %v1200 = vpow.pop %v1199
    %v1201 = vmul.f32 %v1151, 1.442695
    %v1202 = vpow.pop %v1201
    %v1203 = vmul.f32 %v1152, 1.442695
    %v1204 = vpow.pop %v1203
    %v1205 = vmul.f32 %v1153, 1.442695
    %v1206 = vpow.pop %v1205
    %v1207 = vmul.f32 %v1154, 1.442695
    %v1208 = vpow.pop %v1207
    %v1209 = vmul.f32 %v1155, 1.442695
    %v1210 = vpow.pop %v1209
    %v1211 = vmul.f32 %v1156, 1.442695
    %v1212 = vpow.pop %v1211
    %v1213 = vmul.f32 %v1157, 1.442695
    %v1214 = vpow.pop %v1213
    %v1215 = vmul.f32 %v1158, 1.442695
    %v1216 = vpow.pop %v1215
    %v1217 = vmul.f32 %v1159, 1.442695
    %v1218 = vpow.pop %v1217
    %v1219 = vmul.f32 %v1160, 1.442695
    %v1220 = vpow.pop %v1219
    %v1221 = vmul.f32 %v1161, 1.442695
    %v1222 = vpow.pop %v1221
    %v1223 = vmul.f32 %v1162, 1.442695
    %v1224 = vpow.pop %v1223
    %v1225 = vmul.f32 %v1163, 1.442695
    %v1226 = vpow.pop %v1225
    %v1227 = vmul.f32 %v1164, 1.442695
    %v1228 = vpow.pop %v1227
    %v1229 = vsub.f32 %v1166, 1.0
    %v1230 = vsub.f32 %v1168, 1.0
    %v1231 = vsub.f32 %v1170, 1.0
    %v1232 = vsub.f32 %v1172, 1.0
    %v1233 = vsub.f32 %v1174, 1.0
    %v1234 = vsub.f32 %v1176, 1.0
    %v1235 = vsub.f32 %v1178, 1.0
    %v1236 = vsub.f32 %v1180, 1.0
    %v1237 = vsub.f32 %v1182, 1.0
    %v1238 = vsub.f32 %v1184, 1.0
    %v1239 = vsub.f32 %v1186, 1.0
    %v1240 = vsub.f32 %v1188, 1.0
    %v1241 = vsub.f32 %v1190, 1.0
    %v1242 = vsub.f32 %v1192, 1.0
    %v1243 = vsub.f32 %v1194, 1.0
    %v1244 = vsub.f32 %v1196, 1.0
    %v1245 = vsub.f32 %v1198, 1.0
    %v1246 = vsub.f32 %v1200, 1.0
    %v1247 = vsub.f32 %v1202, 1.0
    %v1248 = vsub.f32 %v1204, 1.0
    %v1249 = vsub.f32 %v1206, 1.0
    %v1250 = vsub.f32 %v1208, 1.0
    %v1251 = vsub.f32 %v1210, 1.0
    %v1252 = vsub.f32 %v1212, 1.0
    %v1253 = vsub.f32 %v1214, 1.0
    %v1254 = vsub.f32 %v1216, 1.0
    %v1255 = vsub.f32 %v1218, 1.0
    %v1256 = vsub.f32 %v1220, 1.0
    %v1257 = vsub.f32 %v1222, 1.0
    %v1258 = vsub.f32 %v1224, 1.0
    %v1259 = vsub.f32 %v1226, 1.0
    %v1260 = vsub.f32 %v1228, 1.0
    %v1261 = vsel %vm1101, %v812, %v1229
    %v1262 = vsel %vm1102, %v814, %v1230
    %v1263 = vsel %vm1103, %v901, %v1231
    %v1264 = vsel %vm1104, %v903, %v1232
    %v1265 = vsel %vm1105, %v990, %v1233
    %v1266 = vsel %vm1106, %v992, %v1234
    %v1267 = vsel %vm1107, %v1079, %v1235
    %v1268 = vsel %vm1108, %v1081, %v1236
    %v1269 = vsel %vm1109, %v818, %v1237
    %v1270 = vsel %vm1110, %v820, %v1238
    %v1271 = vsel %vm1111, %v907, %v1239
    %v1272 = vsel %vm1112, %v909, %v1240
    %v1273 = vsel %vm1113, %v996, %v1241
    %v1274 = vsel %vm1114, %v998, %v1242
    %v1275 = vsel %vm1115, %v1085, %v1243
    %v1276 = vsel %vm1116, %v1087, %v1244
    %v1277 = vsel %vm1117, %v824, %v1245
    %v1278 = vsel %vm1118, %v826, %v1246
    %v1279 = vsel %vm1119, %v913, %v1247
    %v1280 = vsel %vm1120, %v915, %v1248
    %v1281 = vsel %vm1121, %v1002, %v1249
    %v1282 = vsel %vm1122, %v1004, %v1250
    %v1283 = vsel %vm1123, %v1091, %v1251
    %v1284 = vsel %vm1124, %v1093, %v1252
    %v1285 = vsel %vm1125, %v830, %v1253
    %v1286 = vsel %vm1126, %v832, %v1254
    %v1287 = vsel %vm1127, %v919, %v1255
    %v1288 = vsel %vm1128, %v921, %v1256
    %v1289 = vsel %vm1129, %v1008, %v1257
    %v1290 = vsel %vm1130, %v1010, %v1258
    %v1291 = vsel %vm1131, %v1097, %v1259
    %v1292 = vsel %vm1132, %v1099, %v1260
    %1293 = vmatprep.subr.mxu0 0.0
    %1294 = vmatpush1.xpose.msra.mxu0 0.0
    %1295 = vmatprep.subr.mxu0 0.0
    %1296 = vmatpush1.xpose.msra.mxu0 0.0
    %1297 = vmatprep.subr.mxu0 0.0
    %1298 = vmatpush1.xpose.msra.mxu0 0.0
    %1299 = vmatprep.subr.mxu0 0.0
    %1300 = vmatpush1.xpose.msra.mxu0 0.0
    %1301 = vmatprep.subr.mxu0 0.0
    %1302 = vmatpush1.xpose.msra.mxu0 0.0
    %1303 = vmatprep.subr.mxu0 0.0
    %1304 = vmatpush1.xpose.msra.mxu0 0.0
    %1305 = vmatprep.subr.mxu0 0.0
    %1306 = vmatpush1.xpose.msra.mxu0 0.0
    %1307 = vmatprep.subr.mxu0 0.0
    %1308 = vmatpush1.xpose.msra.mxu0 0.0
    %1309 = vmatprep.subr.mxu0 0.0
    %1310 = vmatpush1.xpose.msra.mxu0 0.0
    %1311 = vmatprep.subr.mxu0 0.0
    %1312 = vmatpush1.xpose.msra.mxu0 0.0
    %1313 = vmatprep.subr.mxu0 0.0
    %1314 = vmatpush1.xpose.msra.mxu0 0.0
    %1315 = vmatprep.subr.mxu0 0.0
    %1316 = vmatpush1.xpose.msra.mxu0 0.0
    %1317 = vmatprep.subr.mxu0 0.0
    %1318 = vmatpush1.xpose.msra.mxu0 0.0
    %1319 = vmatprep.subr.mxu0 0.0
    %1320 = vmatpush1.xpose.msra.mxu0 0.0
    %1321 = vmatprep.subr.mxu0 0.0
    %1322 = vmatpush1.xpose.msra.mxu0 0.0
    %1323 = vmatprep.subr.mxu0 %v93
    %1324 = vmatpush1.xpose.msra.mxu0 %v92
    %1325 = vmatprep.subr.mxu0 0.0
    %1326 = vmatpush2.xpose.msra.mxu0 0.0
    %1327 = vmatprep.subr.mxu0 0.0
    %1328 = vmatpush2.xpose.msra.mxu0 0.0
    %1329 = vmatprep.subr.mxu0 0.0
    %1330 = vmatpush2.xpose.msra.mxu0 0.0
    %1331 = vmatprep.subr.mxu0 0.0
    %1332 = vmatpush2.xpose.msra.mxu0 0.0
    %1333 = vmatprep.subr.mxu0 0.0
    %1334 = vmatpush2.xpose.msra.mxu0 0.0
    %1335 = vmatprep.subr.mxu0 0.0
    %1336 = vmatpush2.xpose.msra.mxu0 0.0
    %1337 = vmatprep.subr.mxu0 0.0
    %1338 = vmatpush2.xpose.msra.mxu0 0.0
    %1339 = vmatprep.subr.mxu0 0.0
    %1340 = vmatpush2.xpose.msra.mxu0 0.0
    %1341 = vmatprep.subr.mxu0 0.0
    %1342 = vmatpush2.xpose.msra.mxu0 0.0
    %1343 = vmatprep.subr.mxu0 0.0
    %1344 = vmatpush2.xpose.msra.mxu0 0.0
    %1345 = vmatprep.subr.mxu0 0.0
    %1346 = vmatpush2.xpose.msra.mxu0 0.0
    %1347 = vmatprep.subr.mxu0 0.0
    %1348 = vmatpush2.xpose.msra.mxu0 0.0
    %1349 = vmatprep.subr.mxu0 0.0
    %1350 = vmatpush2.xpose.msra.mxu0 0.0
    %1351 = vmatprep.subr.mxu0 0.0
    %1352 = vmatpush2.xpose.msra.mxu0 0.0
    %1353 = vmatprep.subr.mxu0 0.0
    %1354 = vmatpush2.xpose.msra.mxu0 0.0
    %1355 = vmatprep.subr.mxu0 0.0
    %1356 = vmatpush2.xpose.msra.mxu0 0.0
    %1357 = vmatprep.mubr.f32.mxu0 %v1262
    %1358 = vmatmul.mubr.f32.gmra.mxu0 %v1261
    %v1359 = vpop.f32.mrf.mxu0
    %v1360 = vadd.f32 0.0, %v1359
    %v1361 = vpop.f32.mrf.mxu0
    %1362 = vmatprep.mubr.f32.mxu0 %v1270
    %1363 = vmatmul.mubr.f32.gmra.mxu0 %v1269
    %v1364 = vpop.f32.mrf.mxu0
    %v1365 = vadd.f32 0.0, %v1364
    %v1366 = vpop.f32.mrf.mxu0
    %1367 = vmatprep.mubr.f32.mxu0 %v1278
    %1368 = vmatmul.mubr.f32.gmra.mxu0 %v1277
    %v1369 = vpop.f32.mrf.mxu0
    %v1370 = vadd.f32 0.0, %v1369
    %v1371 = vpop.f32.mrf.mxu0
    %1372 = vmatprep.mubr.f32.mxu0 %v1286
    %1373 = vmatmul.mubr.f32.gmra.mxu0 %v1285
    %v1374 = vpop.f32.mrf.mxu0
    %v1375 = vadd.f32 0.0, %v1374
    %v1376 = vpop.f32.mrf.mxu0
    %1377 = vdwg.mxu0
    %1378 = vmatprep.subr.mxu0 0.0
    %1379 = vmatpush1.xpose.msra.mxu0 0.0
    %1380 = vmatprep.subr.mxu0 0.0
    %1381 = vmatpush1.xpose.msra.mxu0 0.0
    %1382 = vmatprep.subr.mxu0 0.0
    %1383 = vmatpush1.xpose.msra.mxu0 0.0
    %1384 = vmatprep.subr.mxu0 0.0
    %1385 = vmatpush1.xpose.msra.mxu0 0.0
    %1386 = vmatprep.subr.mxu0 0.0
    %1387 = vmatpush1.xpose.msra.mxu0 0.0
    %1388 = vmatprep.subr.mxu0 0.0
    %1389 = vmatpush1.xpose.msra.mxu0 0.0
    %1390 = vmatprep.subr.mxu0 0.0
    %1391 = vmatpush1.xpose.msra.mxu0 0.0
    %1392 = vmatprep.subr.mxu0 0.0
    %1393 = vmatpush1.xpose.msra.mxu0 0.0
    %1394 = vmatprep.subr.mxu0 0.0
    %1395 = vmatpush1.xpose.msra.mxu0 0.0
    %1396 = vmatprep.subr.mxu0 0.0
    %1397 = vmatpush1.xpose.msra.mxu0 0.0
    %1398 = vmatprep.subr.mxu0 0.0
    %1399 = vmatpush1.xpose.msra.mxu0 0.0
    %1400 = vmatprep.subr.mxu0 0.0
    %1401 = vmatpush1.xpose.msra.mxu0 0.0
    %1402 = vmatprep.subr.mxu0 0.0
    %1403 = vmatpush1.xpose.msra.mxu0 0.0
    %1404 = vmatprep.subr.mxu0 0.0
    %1405 = vmatpush1.xpose.msra.mxu0 0.0
    %1406 = vmatprep.subr.mxu0 0.0
    %1407 = vmatpush1.xpose.msra.mxu0 0.0
    %1408 = vmatprep.subr.mxu0 %v95
    %1409 = vmatpush1.xpose.msra.mxu0 %v94
    %1410 = vmatprep.subr.mxu0 0.0
    %1411 = vmatpush2.xpose.msra.mxu0 0.0
    %1412 = vmatprep.subr.mxu0 0.0
    %1413 = vmatpush2.xpose.msra.mxu0 0.0
    %1414 = vmatprep.subr.mxu0 0.0
    %1415 = vmatpush2.xpose.msra.mxu0 0.0
    %1416 = vmatprep.subr.mxu0 0.0
    %1417 = vmatpush2.xpose.msra.mxu0 0.0
    %1418 = vmatprep.subr.mxu0 0.0
    %1419 = vmatpush2.xpose.msra.mxu0 0.0
    %1420 = vmatprep.subr.mxu0 0.0
    %1421 = vmatpush2.xpose.msra.mxu0 0.0
    %1422 = vmatprep.subr.mxu0 0.0
    %1423 = vmatpush2.xpose.msra.mxu0 0.0
    %1424 = vmatprep.subr.mxu0 0.0
    %1425 = vmatpush2.xpose.msra.mxu0 0.0
    %1426 = vmatprep.subr.mxu0 0.0
    %1427 = vmatpush2.xpose.msra.mxu0 0.0
    %1428 = vmatprep.subr.mxu0 0.0
    %1429 = vmatpush2.xpose.msra.mxu0 0.0
    %1430 = vmatprep.subr.mxu0 0.0
    %1431 = vmatpush2.xpose.msra.mxu0 0.0
    %1432 = vmatprep.subr.mxu0 0.0
    %1433 = vmatpush2.xpose.msra.mxu0 0.0
    %1434 = vmatprep.subr.mxu0 0.0
    %1435 = vmatpush2.xpose.msra.mxu0 0.0
    %1436 = vmatprep.subr.mxu0 0.0
    %1437 = vmatpush2.xpose.msra.mxu0 0.0
    %1438 = vmatprep.subr.mxu0 0.0
    %1439 = vmatpush2.xpose.msra.mxu0 0.0
    %1440 = vmatprep.subr.mxu0 0.0
    %1441 = vmatpush2.xpose.msra.mxu0 0.0
    %1442 = vmatprep.mubr.f32.mxu0 %v1264
    %1443 = vmatmul.mubr.f32.gmra.mxu0 %v1263
    %v1444 = vpop.f32.mrf.mxu0
    %v1445 = vadd.f32 %v1360, %v1444
    %v1446 = vpop.f32.mrf.mxu0
    %1447 = vmatprep.mubr.f32.mxu0 %v1272
    %1448 = vmatmul.mubr.f32.gmra.mxu0 %v1271
    %v1449 = vpop.f32.mrf.mxu0
    %v1450 = vadd.f32 %v1365, %v1449
    %v1451 = vpop.f32.mrf.mxu0
    %1452 = vmatprep.mubr.f32.mxu0 %v1280
    %1453 = vmatmul.mubr.f32.gmra.mxu0 %v1279
    %v1454 = vpop.f32.mrf.mxu0
    %v1455 = vadd.f32 %v1370, %v1454
    %v1456 = vpop.f32.mrf.mxu0
    %1457 = vmatprep.mubr.f32.mxu0 %v1288
    %1458 = vmatmul.mubr.f32.gmra.mxu0 %v1287
    %v1459 = vpop.f32.mrf.mxu0
    %v1460 = vadd.f32 %v1375, %v1459
    %v1461 = vpop.f32.mrf.mxu0
    %1462 = vdwg.mxu0
    %1463 = vmatprep.subr.mxu0 0.0
    %1464 = vmatpush1.xpose.msra.mxu0 0.0
    %1465 = vmatprep.subr.mxu0 0.0
    %1466 = vmatpush1.xpose.msra.mxu0 0.0
    %1467 = vmatprep.subr.mxu0 0.0
    %1468 = vmatpush1.xpose.msra.mxu0 0.0
    %1469 = vmatprep.subr.mxu0 0.0
    %1470 = vmatpush1.xpose.msra.mxu0 0.0
    %1471 = vmatprep.subr.mxu0 0.0
    %1472 = vmatpush1.xpose.msra.mxu0 0.0
    %1473 = vmatprep.subr.mxu0 0.0
    %1474 = vmatpush1.xpose.msra.mxu0 0.0
    %1475 = vmatprep.subr.mxu0 0.0
    %1476 = vmatpush1.xpose.msra.mxu0 0.0
    %1477 = vmatprep.subr.mxu0 0.0
    %1478 = vmatpush1.xpose.msra.mxu0 0.0
    %1479 = vmatprep.subr.mxu0 0.0
    %1480 = vmatpush1.xpose.msra.mxu0 0.0
    %1481 = vmatprep.subr.mxu0 0.0
    %1482 = vmatpush1.xpose.msra.mxu0 0.0
    %1483 = vmatprep.subr.mxu0 0.0
    %1484 = vmatpush1.xpose.msra.mxu0 0.0
    %1485 = vmatprep.subr.mxu0 0.0
    %1486 = vmatpush1.xpose.msra.mxu0 0.0
    %1487 = vmatprep.subr.mxu0 0.0
    %1488 = vmatpush1.xpose.msra.mxu0 0.0
    %1489 = vmatprep.subr.mxu0 0.0
    %1490 = vmatpush1.xpose.msra.mxu0 0.0
    %1491 = vmatprep.subr.mxu0 0.0
    %1492 = vmatpush1.xpose.msra.mxu0 0.0
    %1493 = vmatprep.subr.mxu0 %v97
    %1494 = vmatpush1.xpose.msra.mxu0 %v96
    %1495 = vmatprep.subr.mxu0 0.0
    %1496 = vmatpush2.xpose.msra.mxu0 0.0
    %1497 = vmatprep.subr.mxu0 0.0
    %1498 = vmatpush2.xpose.msra.mxu0 0.0
    %1499 = vmatprep.subr.mxu0 0.0
    %1500 = vmatpush2.xpose.msra.mxu0 0.0
    %1501 = vmatprep.subr.mxu0 0.0
    %1502 = vmatpush2.xpose.msra.mxu0 0.0
    %1503 = vmatprep.subr.mxu0 0.0
    %1504 = vmatpush2.xpose.msra.mxu0 0.0
    %1505 = vmatprep.subr.mxu0 0.0
    %1506 = vmatpush2.xpose.msra.mxu0 0.0
    %1507 = vmatprep.subr.mxu0 0.0
    %1508 = vmatpush2.xpose.msra.mxu0 0.0
    %1509 = vmatprep.subr.mxu0 0.0
    %1510 = vmatpush2.xpose.msra.mxu0 0.0
    %1511 = vmatprep.subr.mxu0 0.0
    %1512 = vmatpush2.xpose.msra.mxu0 0.0
    %1513 = vmatprep.subr.mxu0 0.0
    %1514 = vmatpush2.xpose.msra.mxu0 0.0
    %1515 = vmatprep.subr.mxu0 0.0
    %1516 = vmatpush2.xpose.msra.mxu0 0.0
    %1517 = vmatprep.subr.mxu0 0.0
    %1518 = vmatpush2.xpose.msra.mxu0 0.0
    %1519 = vmatprep.subr.mxu0 0.0
    %1520 = vmatpush2.xpose.msra.mxu0 0.0
    %1521 = vmatprep.subr.mxu0 0.0
    %1522 = vmatpush2.xpose.msra.mxu0 0.0
    %1523 = vmatprep.subr.mxu0 0.0
    %1524 = vmatpush2.xpose.msra.mxu0 0.0
    %1525 = vmatprep.subr.mxu0 0.0
    %1526 = vmatpush2.xpose.msra.mxu0 0.0
    %1527 = vmatprep.mubr.f32.mxu0 %v1266
    %1528 = vmatmul.mubr.f32.gmra.mxu0 %v1265
    %v1529 = vpop.f32.mrf.mxu0
    %v1530 = vadd.f32 %v1445, %v1529
    %v1531 = vpop.f32.mrf.mxu0
    %1532 = vmatprep.mubr.f32.mxu0 %v1274
    %1533 = vmatmul.mubr.f32.gmra.mxu0 %v1273
    %v1534 = vpop.f32.mrf.mxu0
    %v1535 = vadd.f32 %v1450, %v1534
    %v1536 = vpop.f32.mrf.mxu0
    %1537 = vmatprep.mubr.f32.mxu0 %v1282
    %1538 = vmatmul.mubr.f32.gmra.mxu0 %v1281
    %v1539 = vpop.f32.mrf.mxu0
    %v1540 = vadd.f32 %v1455, %v1539
    %v1541 = vpop.f32.mrf.mxu0
    %1542 = vmatprep.mubr.f32.mxu0 %v1290
    %1543 = vmatmul.mubr.f32.gmra.mxu0 %v1289
    %v1544 = vpop.f32.mrf.mxu0
    %v1545 = vadd.f32 %v1460, %v1544
    %v1546 = vpop.f32.mrf.mxu0
    %1547 = vdwg.mxu0
    %1548 = vmatprep.subr.mxu0 0.0
    %1549 = vmatpush1.xpose.msra.mxu0 0.0
    %1550 = vmatprep.subr.mxu0 0.0
    %1551 = vmatpush1.xpose.msra.mxu0 0.0
    %1552 = vmatprep.subr.mxu0 0.0
    %1553 = vmatpush1.xpose.msra.mxu0 0.0
    %1554 = vmatprep.subr.mxu0 0.0
    %1555 = vmatpush1.xpose.msra.mxu0 0.0
    %1556 = vmatprep.subr.mxu0 0.0
    %1557 = vmatpush1.xpose.msra.mxu0 0.0
    %1558 = vmatprep.subr.mxu0 0.0
    %1559 = vmatpush1.xpose.msra.mxu0 0.0
    %1560 = vmatprep.subr.mxu0 0.0
    %1561 = vmatpush1.xpose.msra.mxu0 0.0
    %1562 = vmatprep.subr.mxu0 0.0
    %1563 = vmatpush1.xpose.msra.mxu0 0.0
    %1564 = vmatprep.subr.mxu0 0.0
    %1565 = vmatpush1.xpose.msra.mxu0 0.0
    %1566 = vmatprep.subr.mxu0 0.0
    %1567 = vmatpush1.xpose.msra.mxu0 0.0
    %1568 = vmatprep.subr.mxu0 0.0
    %1569 = vmatpush1.xpose.msra.mxu0 0.0
    %1570 = vmatprep.subr.mxu0 0.0
    %1571 = vmatpush1.xpose.msra.mxu0 0.0
    %1572 = vmatprep.subr.mxu0 0.0
    %1573 = vmatpush1.xpose.msra.mxu0 0.0
    %1574 = vmatprep.subr.mxu0 0.0
    %1575 = vmatpush1.xpose.msra.mxu0 0.0
    %1576 = vmatprep.subr.mxu0 0.0
    %1577 = vmatpush1.xpose.msra.mxu0 0.0
    %1578 = vmatprep.subr.mxu0 %v99
    %1579 = vmatpush1.xpose.msra.mxu0 %v98
    %1580 = vmatprep.subr.mxu0 0.0
    %1581 = vmatpush2.xpose.msra.mxu0 0.0
    %1582 = vmatprep.subr.mxu0 0.0
    %1583 = vmatpush2.xpose.msra.mxu0 0.0
    %1584 = vmatprep.subr.mxu0 0.0
    %1585 = vmatpush2.xpose.msra.mxu0 0.0
    %1586 = vmatprep.subr.mxu0 0.0
    %1587 = vmatpush2.xpose.msra.mxu0 0.0
    %1588 = vmatprep.subr.mxu0 0.0
    %1589 = vmatpush2.xpose.msra.mxu0 0.0
    %1590 = vmatprep.subr.mxu0 0.0
    %1591 = vmatpush2.xpose.msra.mxu0 0.0
    %1592 = vmatprep.subr.mxu0 0.0
    %1593 = vmatpush2.xpose.msra.mxu0 0.0
    %1594 = vmatprep.subr.mxu0 0.0
    %1595 = vmatpush2.xpose.msra.mxu0 0.0
    %1596 = vmatprep.subr.mxu0 0.0
    %1597 = vmatpush2.xpose.msra.mxu0 0.0
    %1598 = vmatprep.subr.mxu0 0.0
    %1599 = vmatpush2.xpose.msra.mxu0 0.0
    %1600 = vmatprep.subr.mxu0 0.0
    %1601 = vmatpush2.xpose.msra.mxu0 0.0
    %1602 = vmatprep.subr.mxu0 0.0
    %1603 = vmatpush2.xpose.msra.mxu0 0.0
    %1604 = vmatprep.subr.mxu0 0.0
    %1605 = vmatpush2.xpose.msra.mxu0 0.0
    %1606 = vmatprep.subr.mxu0 0.0
    %1607 = vmatpush2.xpose.msra.mxu0 0.0
    %1608 = vmatprep.subr.mxu0 0.0
    %1609 = vmatpush2.xpose.msra.mxu0 0.0
    %1610 = vmatprep.subr.mxu0 0.0
    %1611 = vmatpush2.xpose.msra.mxu0 0.0
    %1612 = vmatprep.mubr.f32.mxu0 %v1268
    %1613 = vmatmul.mubr.f32.gmra.mxu0 %v1267
    %v1614 = vpop.f32.mrf.mxu0
    %v1615 = vadd.f32 %v1530, %v1614
    %v1616 = vpop.f32.mrf.mxu0
    %1617 = vmatprep.mubr.f32.mxu0 %v1276
    %1618 = vmatmul.mubr.f32.gmra.mxu0 %v1275
    %v1619 = vpop.f32.mrf.mxu0
    %v1620 = vadd.f32 %v1535, %v1619
    %v1621 = vpop.f32.mrf.mxu0
    %1622 = vmatprep.mubr.f32.mxu0 %v1284
    %1623 = vmatmul.mubr.f32.gmra.mxu0 %v1283
    %v1624 = vpop.f32.mrf.mxu0
    %v1625 = vadd.f32 %v1540, %v1624
    %v1626 = vpop.f32.mrf.mxu0
    %1627 = vmatprep.mubr.f32.mxu0 %v1292
    %1628 = vmatmul.mubr.f32.gmra.mxu0 %v1291
    %v1629 = vpop.f32.mrf.mxu0
    %v1630 = vadd.f32 %v1545, %v1629
    %v1631 = vpop.f32.mrf.mxu0
    %1632 = vdwg.mxu0
    %v1633 = vld [vmem:[%s7] sm:$0xf]
    %v1634 = vld [vmem:[%s8] sm:$0xf]
    %1636 = vset.pattern.permute.xlu0 0
    %1637 = vperm.xlu0 %1636, %v1634
    %v1638 = vpop.permute.xlu0 %1637
    %vm1640 = vcmask 261120
    %v1642 = vsel %vm1640, %v1633, 0
    %1644 = vmatprep.subr.mxu0 0.0
    %1645 = vmatpush1.msra.mxu0 0.0
    %1646 = vmatprep.subr.mxu0 0.0
    %1647 = vmatpush1.msra.mxu0 0.0
    %1648 = vmatprep.subr.mxu0 0.0
    %1649 = vmatpush1.msra.mxu0 0.0
    %1650 = vmatprep.subr.mxu0 0.0
    %1651 = vmatpush1.msra.mxu0 0.0
    %1652 = vmatprep.subr.mxu0 0.0
    %1653 = vmatpush1.msra.mxu0 0.0
    %1654 = vmatprep.subr.mxu0 0.0
    %1655 = vmatpush1.msra.mxu0 0.0
    %1656 = vmatprep.subr.mxu0 0.0
    %1657 = vmatpush1.msra.mxu0 0.0
    %1658 = vmatprep.subr.mxu0 0.0
    %1659 = vmatpush1.msra.mxu0 0.0
    %1660 = vmatprep.subr.mxu0 0.0
    %1661 = vmatpush1.msra.mxu0 0.0
    %1662 = vmatprep.subr.mxu0 0.0
    %1663 = vmatpush1.msra.mxu0 0.0
    %1664 = vmatprep.subr.mxu0 0.0
    %1665 = vmatpush1.msra.mxu0 0.0
    %1666 = vmatprep.subr.mxu0 0.0
    %1667 = vmatpush1.msra.mxu0 0.0
    %1668 = vmatprep.subr.mxu0 0.0
    %1669 = vmatpush1.msra.mxu0 %v1630
    %1670 = vmatprep.subr.mxu0 0.0
    %1671 = vmatpush1.msra.mxu0 %v1625
    %1672 = vmatprep.subr.mxu0 0.0
    %1673 = vmatpush1.msra.mxu0 %v1620
    %1674 = vmatprep.subr.mxu0 0.0
    %1675 = vmatpush1.msra.mxu0 %v1615
    %1676 = vmatprep.subr.mxu0 0.0
    %1677 = vmatpush2.msra.mxu0 0.0
    %1678 = vmatprep.subr.mxu0 0.0
    %1679 = vmatpush2.msra.mxu0 0.0
    %1680 = vmatprep.subr.mxu0 0.0
    %1681 = vmatpush2.msra.mxu0 0.0
    %1682 = vmatprep.subr.mxu0 0.0
    %1683 = vmatpush2.msra.mxu0 0.0
    %1684 = vmatprep.subr.mxu0 0.0
    %1685 = vmatpush2.msra.mxu0 0.0
    %1686 = vmatprep.subr.mxu0 0.0
    %1687 = vmatpush2.msra.mxu0 0.0
    %1688 = vmatprep.subr.mxu0 0.0
    %1689 = vmatpush2.msra.mxu0 0.0
    %1690 = vmatprep.subr.mxu0 0.0
    %1691 = vmatpush2.msra.mxu0 0.0
    %1692 = vmatprep.subr.mxu0 0.0
    %1693 = vmatpush2.msra.mxu0 0.0
    %1694 = vmatprep.subr.mxu0 0.0
    %1695 = vmatpush2.msra.mxu0 0.0
    %1696 = vmatprep.subr.mxu0 0.0
    %1697 = vmatpush2.msra.mxu0 0.0
    %1698 = vmatprep.subr.mxu0 0.0
    %1699 = vmatpush2.msra.mxu0 0.0
    %1700 = vmatprep.subr.mxu0 0.0
    %1701 = vmatpush2.msra.mxu0 0.0
    %1702 = vmatprep.subr.mxu0 0.0
    %1703 = vmatpush2.msra.mxu0 0.0
    %1704 = vmatprep.subr.mxu0 0.0
    %1705 = vmatpush2.msra.mxu0 0.0
    %1706 = vmatprep.subr.mxu0 0.0
    %1707 = vmatpush2.msra.mxu0 0.0
    %1708 = vmatprep.mubr.f32.mxu0 0.0
    %1709 = vmatmul.mubr.f32.gmra.mxu0 %v1642
    %v1710 = vpop.f32.mrf.mxu0
    %v1711 = vadd.f32 %v1638, %v1710
    %v1712 = vpop.f32.mrf.mxu0
    %1713 = vdwg.mxu0
    %v1714 = vmax.f32 %v1711, 0.0
    %v1715 = vld [vmem:[%s9] sm:$0xff]
    %v1716 = vld [vmem:[%s9 + $0x8] sm:$0xff]
    %v1717 = vld [vmem:[%s9 + $0x10] sm:$0xff]
    %v1718 = vld [vmem:[%s9 + $0x18] sm:$0xff]
    %v1719 = vld [vmem:[%s10] sm:$0xff]
    %v1720 = vld [vmem:[%s10 + $0x8] sm:$0xff]
    %v1721 = vld [vmem:[%s10 + $0x10] sm:$0xff]
    %v1722 = vld [vmem:[%s10 + $0x18] sm:$0xff]
    %1724 = vset.pattern.permute.xlu0 0
    %1725 = vperm.xlu0 %1724, %v1719
    %v1726 = vpop.permute.xlu0 %1725
    %1729 = vset.pattern.permute.xlu0 0
    %1730 = vperm.xlu0 %1729, %v1720
    %v1731 = vpop.permute.xlu0 %1730
    %1734 = vset.pattern.permute.xlu0 0
    %1735 = vperm.xlu0 %1734, %v1721
    %v1736 = vpop.permute.xlu0 %1735
    %1739 = vset.pattern.permute.xlu0 0
    %1740 = vperm.xlu0 %1739, %v1722
    %v1741 = vpop.permute.xlu0 %1740
    %vm1743 = vcmask 31744
    %v1745 = vsel %vm1743, %v1715, 0
    %v1748 = vsel %vm1743, %v1716, 0
    %v1751 = vsel %vm1743, %v1717, 0
    %v1754 = vsel %vm1743, %v1718, 0
    %vm1756 = vcmask 1043456
    %v1758 = vsel %vm1756, %v1714, 0
    %1760 = vmatprep.subr.mxu0 0.0
    %1761 = vmatpush1.msra.mxu0 0.0
    %1762 = vmatprep.subr.mxu0 0.0
    %1763 = vmatpush1.msra.mxu0 0.0
    %1764 = vmatprep.subr.mxu0 0.0
    %1765 = vmatpush1.msra.mxu0 0.0
    %1766 = vmatprep.subr.mxu0 0.0
    %1767 = vmatpush1.msra.mxu0 0.0
    %1768 = vmatprep.subr.mxu0 0.0
    %1769 = vmatpush1.msra.mxu0 0.0
    %1770 = vmatprep.subr.mxu0 0.0
    %1771 = vmatpush1.msra.mxu0 0.0
    %1772 = vmatprep.subr.mxu0 0.0
    %1773 = vmatpush1.msra.mxu0 0.0
    %1774 = vmatprep.subr.mxu0 0.0
    %1775 = vmatpush1.msra.mxu0 0.0
    %1776 = vmatprep.subr.mxu0 0.0
    %1777 = vmatpush1.msra.mxu0 0.0
    %1778 = vmatprep.subr.mxu0 0.0
    %1779 = vmatpush1.msra.mxu0 0.0
    %1780 = vmatprep.subr.mxu0 0.0
    %1781 = vmatpush1.msra.mxu0 0.0
    %1782 = vmatprep.subr.mxu0 0.0
    %1783 = vmatpush1.msra.mxu0 0.0
    %1784 = vmatprep.subr.mxu0 0.0
    %1785 = vmatpush1.msra.mxu0 0.0
    %1786 = vmatprep.subr.mxu0 0.0
    %1787 = vmatpush1.msra.mxu0 0.0
    %1788 = vmatprep.subr.mxu0 0.0
    %1789 = vmatpush1.msra.mxu0 0.0
    %1790 = vmatprep.subr.mxu0 0.0
    %1791 = vmatpush1.msra.mxu0 %v1758
    %1792 = vmatprep.subr.mxu0 0.0
    %1793 = vmatpush2.msra.mxu0 0.0
    %1794 = vmatprep.subr.mxu0 0.0
    %1795 = vmatpush2.msra.mxu0 0.0
    %1796 = vmatprep.subr.mxu0 0.0
    %1797 = vmatpush2.msra.mxu0 0.0
    %1798 = vmatprep.subr.mxu0 0.0
    %1799 = vmatpush2.msra.mxu0 0.0
    %1800 = vmatprep.subr.mxu0 0.0
    %1801 = vmatpush2.msra.mxu0 0.0
    %1802 = vmatprep.subr.mxu0 0.0
    %1803 = vmatpush2.msra.mxu0 0.0
    %1804 = vmatprep.subr.mxu0 0.0
    %1805 = vmatpush2.msra.mxu0 0.0
    %1806 = vmatprep.subr.mxu0 0.0
    %1807 = vmatpush2.msra.mxu0 0.0
    %1808 = vmatprep.subr.mxu0 0.0
    %1809 = vmatpush2.msra.mxu0 0.0
    %1810 = vmatprep.subr.mxu0 0.0
    %1811 = vmatpush2.msra.mxu0 0.0
    %1812 = vmatprep.subr.mxu0 0.0
    %1813 = vmatpush2.msra.mxu0 0.0
    %1814 = vmatprep.subr.mxu0 0.0
    %1815 = vmatpush2.msra.mxu0 0.0
    %1816 = vmatprep.subr.mxu0 0.0
    %1817 = vmatpush2.msra.mxu0 0.0
    %1818 = vmatprep.subr.mxu0 0.0
    %1819 = vmatpush2.msra.mxu0 0.0
    %1820 = vmatprep.subr.mxu0 0.0
    %1821 = vmatpush2.msra.mxu0 0.0
    %1822 = vmatprep.subr.mxu0 0.0
    %1823 = vmatpush2.msra.mxu0 0.0
    %1824 = vmatprep.mubr.f32.mxu0 0.0
    %1825 = vmatmul.mubr.f32.gmra.mxu0 %v1745
    %v1826 = vpop.f32.mrf.mxu0
    %v1827 = vadd.f32 %v1726, %v1826
    %v1828 = vpop.f32.mrf.mxu0
    %1829 = vmatprep.mubr.f32.mxu0 0.0
    %1830 = vmatmul.mubr.f32.gmra.mxu0 %v1748
    %v1831 = vpop.f32.mrf.mxu0
    %v1832 = vadd.f32 %v1731, %v1831
    %v1833 = vpop.f32.mrf.mxu0
    %1834 = vmatprep.mubr.f32.mxu0 0.0
    %1835 = vmatmul.mubr.f32.gmra.mxu0 %v1751
    %v1836 = vpop.f32.mrf.mxu0
    %v1837 = vadd.f32 %v1736, %v1836
    %v1838 = vpop.f32.mrf.mxu0
    %1839 = vmatprep.mubr.f32.mxu0 0.0
    %1840 = vmatmul.mubr.f32.gmra.mxu0 %v1754
    %v1841 = vpop.f32.mrf.mxu0
    %v1842 = vadd.f32 %v1741, %v1841
    %v1843 = vpop.f32.mrf.mxu0
    %1844 = vdwg.mxu0
    %v1845 = vxor.u32 %v1827, 2147483648
    %v1846 = vxor.u32 %v1832, 2147483648
    %v1847 = vxor.u32 %v1837, 2147483648
    %v1848 = vxor.u32 %v1842, 2147483648
    %v1849 = vmul.f32 %v1845, 1.442695
    %v1850 = vpow.pop %v1849
    %v1851 = vmul.f32 %v1846, 1.442695
    %v1852 = vpow.pop %v1851
    %v1853 = vmul.f32 %v1847, 1.442695
    %v1854 = vpow.pop %v1853
    %v1855 = vmul.f32 %v1848, 1.442695
    %v1856 = vpow.pop %v1855
    %v1857 = vadd.f32 %v1850, 1.0
    %v1858 = vadd.f32 %v1852, 1.0
    %v1859 = vadd.f32 %v1854, 1.0
    %v1860 = vadd.f32 %v1856, 1.0
    %v1861 = vrcp.pop %v1857
    %v1862 = vmul.f32 1.0, %v1861
    %v1863 = vrcp.pop %v1858
    %v1864 = vmul.f32 1.0, %v1863
    %v1865 = vrcp.pop %v1859
    %v1866 = vmul.f32 1.0, %v1865
    %v1867 = vrcp.pop %v1860
    %v1868 = vmul.f32 1.0, %v1867
    %v1869 = vmul.f32 %v1862, 64.0
    %v1870 = vmul.f32 %v1864, 64.0
    %v1871 = vmul.f32 %v1866, 64.0
    %v1872 = vmul.f32 %v1868, 64.0
    %vm1873 = vcmask 64512
    %v1875 = vsel %vm1873, %v1869, 0
    %v1878 = vsel %vm1873, %v1870, 0
    %v1881 = vsel %vm1873, %v1871, 0
    %v1884 = vsel %vm1873, %v1872, 0
    %1886 = vmatprep.subr.mxu0 0.0
    %1887 = vmatpush1.msra.mxu0 0.0
    %1888 = vmatprep.subr.mxu0 0.0
    %1889 = vmatpush1.msra.mxu0 0.0
    %1890 = vmatprep.subr.mxu0 0.0
    %1891 = vmatpush1.msra.mxu0 0.0
    %1892 = vmatprep.subr.mxu0 0.0
    %1893 = vmatpush1.msra.mxu0 0.0
    %1894 = vmatprep.subr.mxu0 0.0
    %1895 = vmatpush1.msra.mxu0 0.0
    %1896 = vmatprep.subr.mxu0 0.0
    %1897 = vmatpush1.msra.mxu0 0.0
    %1898 = vmatprep.subr.mxu0 0.0
    %1899 = vmatpush1.msra.mxu0 0.0
    %1900 = vmatprep.subr.mxu0 0.0
    %1901 = vmatpush1.msra.mxu0 0.0
    %1902 = vmatprep.subr.mxu0 0.0
    %1903 = vmatpush1.msra.mxu0 0.0
    %1904 = vmatprep.subr.mxu0 0.0
    %1905 = vmatpush1.msra.mxu0 0.0
    %1906 = vmatprep.subr.mxu0 0.0
    %1907 = vmatpush1.msra.mxu0 0.0
    %1908 = vmatprep.subr.mxu0 0.0
    %1909 = vmatpush1.msra.mxu0 0.0
    %1910 = vmatprep.subr.mxu0 0.0
    %1911 = vmatpush1.msra.mxu0 0.0
    %1912 = vmatprep.subr.mxu0 0.0
    %1913 = vmatpush1.msra.mxu0 0.0
    %1914 = vmatprep.subr.mxu0 0.0
    %1915 = vmatpush1.msra.mxu0 0.0
    %1916 = vmatprep.subr.mxu0 %v93
    %1917 = vmatpush1.msra.mxu0 %v92
    %1918 = vmatprep.subr.mxu0 0.0
    %1919 = vmatpush2.msra.mxu0 0.0
    %1920 = vmatprep.subr.mxu0 0.0
    %1921 = vmatpush2.msra.mxu0 0.0
    %1922 = vmatprep.subr.mxu0 0.0
    %1923 = vmatpush2.msra.mxu0 0.0
    %1924 = vmatprep.subr.mxu0 0.0
    %1925 = vmatpush2.msra.mxu0 0.0
    %1926 = vmatprep.subr.mxu0 0.0
    %1927 = vmatpush2.msra.mxu0 0.0
    %1928 = vmatprep.subr.mxu0 0.0
    %1929 = vmatpush2.msra.mxu0 0.0
    %1930 = vmatprep.subr.mxu0 0.0
    %1931 = vmatpush2.msra.mxu0 0.0
    %1932 = vmatprep.subr.mxu0 0.0
    %1933 = vmatpush2.msra.mxu0 0.0
    %1934 = vmatprep.subr.mxu0 0.0
    %1935 = vmatpush2.msra.mxu0 0.0
    %1936 = vmatprep.subr.mxu0 0.0
    %1937 = vmatpush2.msra.mxu0 0.0
    %1938 = vmatprep.subr.mxu0 0.0
    %1939 = vmatpush2.msra.mxu0 0.0
    %1940 = vmatprep.subr.mxu0 0.0
    %1941 = vmatpush2.msra.mxu0 0.0
    %1942 = vmatprep.subr.mxu0 0.0
    %1943 = vmatpush2.msra.mxu0 0.0
    %1944 = vmatprep.subr.mxu0 0.0
    %1945 = vmatpush2.msra.mxu0 0.0
    %1946 = vmatprep.subr.mxu0 0.0
    %1947 = vmatpush2.msra.mxu0 0.0
    %1948 = vmatprep.subr.mxu0 0.0
    %1949 = vmatpush2.msra.mxu0 0.0
    %1950 = vmatprep.mubr.f32.mxu0 0.0
    %1951 = vmatmul.mubr.f32.gmra.mxu0 %v1875
    %v1952 = vpop.f32.mrf.mxu0
    %v1953 = vadd.f32 0.0, %v1952
    %v1954 = vpop.f32.mrf.mxu0
    %v1955 = vadd.f32 0.0, %v1954
    %1956 = vmatprep.mubr.f32.mxu0 0.0
    %1957 = vmatmul.mubr.f32.gmra.mxu0 %v1878
    %v1958 = vpop.f32.mrf.mxu0
    %v1959 = vadd.f32 0.0, %v1958
    %v1960 = vpop.f32.mrf.mxu0
    %v1961 = vadd.f32 0.0, %v1960
    %1962 = vmatprep.mubr.f32.mxu0 0.0
    %1963 = vmatmul.mubr.f32.gmra.mxu0 %v1881
    %v1964 = vpop.f32.mrf.mxu0
    %v1965 = vadd.f32 0.0, %v1964
    %v1966 = vpop.f32.mrf.mxu0
    %v1967 = vadd.f32 0.0, %v1966
    %1968 = vmatprep.mubr.f32.mxu0 0.0
    %1969 = vmatmul.mubr.f32.gmra.mxu0 %v1884
    %v1970 = vpop.f32.mrf.mxu0
    %v1971 = vadd.f32 0.0, %v1970
    %v1972 = vpop.f32.mrf.mxu0
    %v1973 = vadd.f32 0.0, %v1972
    %1974 = vdwg.mxu0
    %1975 = vmatprep.subr.mxu0 0.0
    %1976 = vmatpush1.msra.mxu0 0.0
    %1977 = vmatprep.subr.mxu0 0.0
    %1978 = vmatpush1.msra.mxu0 0.0
    %1979 = vmatprep.subr.mxu0 0.0
    %1980 = vmatpush1.msra.mxu0 0.0
    %1981 = vmatprep.subr.mxu0 0.0
    %1982 = vmatpush1.msra.mxu0 0.0
    %1983 = vmatprep.subr.mxu0 0.0
    %1984 = vmatpush1.msra.mxu0 0.0
    %1985 = vmatprep.subr.mxu0 0.0
    %1986 = vmatpush1.msra.mxu0 0.0
    %1987 = vmatprep.subr.mxu0 0.0
    %1988 = vmatpush1.msra.mxu0 0.0
    %1989 = vmatprep.subr.mxu0 0.0
    %1990 = vmatpush1.msra.mxu0 0.0
    %1991 = vmatprep.subr.mxu0 0.0
    %1992 = vmatpush1.msra.mxu0 0.0
    %1993 = vmatprep.subr.mxu0 0.0
    %1994 = vmatpush1.msra.mxu0 0.0
    %1995 = vmatprep.subr.mxu0 0.0
    %1996 = vmatpush1.msra.mxu0 0.0
    %1997 = vmatprep.subr.mxu0 0.0
    %1998 = vmatpush1.msra.mxu0 0.0
    %1999 = vmatprep.subr.mxu0 0.0
    %2000 = vmatpush1.msra.mxu0 0.0
    %2001 = vmatprep.subr.mxu0 0.0
    %2002 = vmatpush1.msra.mxu0 0.0
    %2003 = vmatprep.subr.mxu0 0.0
    %2004 = vmatpush1.msra.mxu0 0.0
    %2005 = vmatprep.subr.mxu0 %v95
    %2006 = vmatpush1.msra.mxu0 %v94
    %2007 = vmatprep.subr.mxu0 0.0
    %2008 = vmatpush2.msra.mxu0 0.0
    %2009 = vmatprep.subr.mxu0 0.0
    %2010 = vmatpush2.msra.mxu0 0.0
    %2011 = vmatprep.subr.mxu0 0.0
    %2012 = vmatpush2.msra.mxu0 0.0
    %2013 = vmatprep.subr.mxu0 0.0
    %2014 = vmatpush2.msra.mxu0 0.0
    %2015 = vmatprep.subr.mxu0 0.0
    %2016 = vmatpush2.msra.mxu0 0.0
    %2017 = vmatprep.subr.mxu0 0.0
    %2018 = vmatpush2.msra.mxu0 0.0
    %2019 = vmatprep.subr.mxu0 0.0
    %2020 = vmatpush2.msra.mxu0 0.0
    %2021 = vmatprep.subr.mxu0 0.0
    %2022 = vmatpush2.msra.mxu0 0.0
    %2023 = vmatprep.subr.mxu0 0.0
    %2024 = vmatpush2.msra.mxu0 0.0
    %2025 = vmatprep.subr.mxu0 0.0
    %2026 = vmatpush2.msra.mxu0 0.0
    %2027 = vmatprep.subr.mxu0 0.0
    %2028 = vmatpush2.msra.mxu0 0.0
    %2029 = vmatprep.subr.mxu0 0.0
    %2030 = vmatpush2.msra.mxu0 0.0
    %2031 = vmatprep.subr.mxu0 0.0
    %2032 = vmatpush2.msra.mxu0 0.0
    %2033 = vmatprep.subr.mxu0 0.0
    %2034 = vmatpush2.msra.mxu0 0.0
    %2035 = vmatprep.subr.mxu0 0.0
    %2036 = vmatpush2.msra.mxu0 0.0
    %2037 = vmatprep.subr.mxu0 0.0
    %2038 = vmatpush2.msra.mxu0 0.0
    %2039 = vmatprep.mubr.f32.mxu0 0.0
    %2040 = vmatmul.mubr.f32.gmra.mxu0 %v1875
    %v2041 = vpop.f32.mrf.mxu0
    %v2042 = vadd.f32 0.0, %v2041
    %v2043 = vpop.f32.mrf.mxu0
    %v2044 = vadd.f32 0.0, %v2043
    %2045 = vmatprep.mubr.f32.mxu0 0.0
    %2046 = vmatmul.mubr.f32.gmra.mxu0 %v1878
    %v2047 = vpop.f32.mrf.mxu0
    %v2048 = vadd.f32 0.0, %v2047
    %v2049 = vpop.f32.mrf.mxu0
    %v2050 = vadd.f32 0.0, %v2049
    %2051 = vmatprep.mubr.f32.mxu0 0.0
    %2052 = vmatmul.mubr.f32.gmra.mxu0 %v1881
    %v2053 = vpop.f32.mrf.mxu0
    %v2054 = vadd.f32 0.0, %v2053
    %v2055 = vpop.f32.mrf.mxu0
    %v2056 = vadd.f32 0.0, %v2055
    %2057 = vmatprep.mubr.f32.mxu0 0.0
    %2058 = vmatmul.mubr.f32.gmra.mxu0 %v1884
    %v2059 = vpop.f32.mrf.mxu0
    %v2060 = vadd.f32 0.0, %v2059
    %v2061 = vpop.f32.mrf.mxu0
    %v2062 = vadd.f32 0.0, %v2061
    %2063 = vdwg.mxu0
    %2064 = vmatprep.subr.mxu0 0.0
    %2065 = vmatpush1.msra.mxu0 0.0
    %2066 = vmatprep.subr.mxu0 0.0
    %2067 = vmatpush1.msra.mxu0 0.0
    %2068 = vmatprep.subr.mxu0 0.0
    %2069 = vmatpush1.msra.mxu0 0.0
    %2070 = vmatprep.subr.mxu0 0.0
    %2071 = vmatpush1.msra.mxu0 0.0
    %2072 = vmatprep.subr.mxu0 0.0
    %2073 = vmatpush1.msra.mxu0 0.0
    %2074 = vmatprep.subr.mxu0 0.0
    %2075 = vmatpush1.msra.mxu0 0.0
    %2076 = vmatprep.subr.mxu0 0.0
    %2077 = vmatpush1.msra.mxu0 0.0
    %2078 = vmatprep.subr.mxu0 0.0
    %2079 = vmatpush1.msra.mxu0 0.0
    %2080 = vmatprep.subr.mxu0 0.0
    %2081 = vmatpush1.msra.mxu0 0.0
    %2082 = vmatprep.subr.mxu0 0.0
    %2083 = vmatpush1.msra.mxu0 0.0
    %2084 = vmatprep.subr.mxu0 0.0
    %2085 = vmatpush1.msra.mxu0 0.0
    %2086 = vmatprep.subr.mxu0 0.0
    %2087 = vmatpush1.msra.mxu0 0.0
    %2088 = vmatprep.subr.mxu0 0.0
    %2089 = vmatpush1.msra.mxu0 0.0
    %2090 = vmatprep.subr.mxu0 0.0
    %2091 = vmatpush1.msra.mxu0 0.0
    %2092 = vmatprep.subr.mxu0 0.0
    %2093 = vmatpush1.msra.mxu0 0.0
    %2094 = vmatprep.subr.mxu0 %v97
    %2095 = vmatpush1.msra.mxu0 %v96
    %2096 = vmatprep.subr.mxu0 0.0
    %2097 = vmatpush2.msra.mxu0 0.0
    %2098 = vmatprep.subr.mxu0 0.0
    %2099 = vmatpush2.msra.mxu0 0.0
    %2100 = vmatprep.subr.mxu0 0.0
    %2101 = vmatpush2.msra.mxu0 0.0
    %2102 = vmatprep.subr.mxu0 0.0
    %2103 = vmatpush2.msra.mxu0 0.0
    %2104 = vmatprep.subr.mxu0 0.0
    %2105 = vmatpush2.msra.mxu0 0.0
    %2106 = vmatprep.subr.mxu0 0.0
    %2107 = vmatpush2.msra.mxu0 0.0
    %2108 = vmatprep.subr.mxu0 0.0
    %2109 = vmatpush2.msra.mxu0 0.0
    %2110 = vmatprep.subr.mxu0 0.0
    %2111 = vmatpush2.msra.mxu0 0.0
    %2112 = vmatprep.subr.mxu0 0.0
    %2113 = vmatpush2.msra.mxu0 0.0
    %2114 = vmatprep.subr.mxu0 0.0
    %2115 = vmatpush2.msra.mxu0 0.0
    %2116 = vmatprep.subr.mxu0 0.0
    %2117 = vmatpush2.msra.mxu0 0.0
    %2118 = vmatprep.subr.mxu0 0.0
    %2119 = vmatpush2.msra.mxu0 0.0
    %2120 = vmatprep.subr.mxu0 0.0
    %2121 = vmatpush2.msra.mxu0 0.0
    %2122 = vmatprep.subr.mxu0 0.0
    %2123 = vmatpush2.msra.mxu0 0.0
    %2124 = vmatprep.subr.mxu0 0.0
    %2125 = vmatpush2.msra.mxu0 0.0
    %2126 = vmatprep.subr.mxu0 0.0
    %2127 = vmatpush2.msra.mxu0 0.0
    %2128 = vmatprep.mubr.f32.mxu0 0.0
    %2129 = vmatmul.mubr.f32.gmra.mxu0 %v1875
    %v2130 = vpop.f32.mrf.mxu0
    %v2131 = vadd.f32 0.0, %v2130
    %v2132 = vpop.f32.mrf.mxu0
    %v2133 = vadd.f32 0.0, %v2132
    %2134 = vmatprep.mubr.f32.mxu0 0.0
    %2135 = vmatmul.mubr.f32.gmra.mxu0 %v1878
    %v2136 = vpop.f32.mrf.mxu0
    %v2137 = vadd.f32 0.0, %v2136
    %v2138 = vpop.f32.mrf.mxu0
    %v2139 = vadd.f32 0.0, %v2138
    %2140 = vmatprep.mubr.f32.mxu0 0.0
    %2141 = vmatmul.mubr.f32.gmra.mxu0 %v1881
    %v2142 = vpop.f32.mrf.mxu0
    %v2143 = vadd.f32 0.0, %v2142
    %v2144 = vpop.f32.mrf.mxu0
    %v2145 = vadd.f32 0.0, %v2144
    %2146 = vmatprep.mubr.f32.mxu0 0.0
    %2147 = vmatmul.mubr.f32.gmra.mxu0 %v1884
    %v2148 = vpop.f32.mrf.mxu0
    %v2149 = vadd.f32 0.0, %v2148
    %v2150 = vpop.f32.mrf.mxu0
    %v2151 = vadd.f32 0.0, %v2150
    %2152 = vdwg.mxu0
    %2153 = vmatprep.subr.mxu0 0.0
    %2154 = vmatpush1.msra.mxu0 0.0
    %2155 = vmatprep.subr.mxu0 0.0
    %2156 = vmatpush1.msra.mxu0 0.0
    %2157 = vmatprep.subr.mxu0 0.0
    %2158 = vmatpush1.msra.mxu0 0.0
    %2159 = vmatprep.subr.mxu0 0.0
    %2160 = vmatpush1.msra.mxu0 0.0
    %2161 = vmatprep.subr.mxu0 0.0
    %2162 = vmatpush1.msra.mxu0 0.0
    %2163 = vmatprep.subr.mxu0 0.0
    %2164 = vmatpush1.msra.mxu0 0.0
    %2165 = vmatprep.subr.mxu0 0.0
    %2166 = vmatpush1.msra.mxu0 0.0
    %2167 = vmatprep.subr.mxu0 0.0
    %2168 = vmatpush1.msra.mxu0 0.0
    %2169 = vmatprep.subr.mxu0 0.0
    %2170 = vmatpush1.msra.mxu0 0.0
    %2171 = vmatprep.subr.mxu0 0.0
    %2172 = vmatpush1.msra.mxu0 0.0
    %2173 = vmatprep.subr.mxu0 0.0
    %2174 = vmatpush1.msra.mxu0 0.0
    %2175 = vmatprep.subr.mxu0 0.0
    %2176 = vmatpush1.msra.mxu0 0.0
    %2177 = vmatprep.subr.mxu0 0.0
    %2178 = vmatpush1.msra.mxu0 0.0
    %2179 = vmatprep.subr.mxu0 0.0
    %2180 = vmatpush1.msra.mxu0 0.0
    %2181 = vmatprep.subr.mxu0 0.0
    %2182 = vmatpush1.msra.mxu0 0.0
    %2183 = vmatprep.subr.mxu0 %v99
    %2184 = vmatpush1.msra.mxu0 %v98
    %2185 = vmatprep.subr.mxu0 0.0
    %2186 = vmatpush2.msra.mxu0 0.0
    %2187 = vmatprep.subr.mxu0 0.0
    %2188 = vmatpush2.msra.mxu0 0.0
    %2189 = vmatprep.subr.mxu0 0.0
    %2190 = vmatpush2.msra.mxu0 0.0
    %2191 = vmatprep.subr.mxu0 0.0
    %2192 = vmatpush2.msra.mxu0 0.0
    %2193 = vmatprep.subr.mxu0 0.0
    %2194 = vmatpush2.msra.mxu0 0.0
    %2195 = vmatprep.subr.mxu0 0.0
    %2196 = vmatpush2.msra.mxu0 0.0
    %2197 = vmatprep.subr.mxu0 0.0
    %2198 = vmatpush2.msra.mxu0 0.0
    %2199 = vmatprep.subr.mxu0 0.0
    %2200 = vmatpush2.msra.mxu0 0.0
    %2201 = vmatprep.subr.mxu0 0.0
    %2202 = vmatpush2.msra.mxu0 0.0
    %2203 = vmatprep.subr.mxu0 0.0
    %2204 = vmatpush2.msra.mxu0 0.0
    %2205 = vmatprep.subr.mxu0 0.0
    %2206 = vmatpush2.msra.mxu0 0.0
    %2207 = vmatprep.subr.mxu0 0.0
    %2208 = vmatpush2.msra.mxu0 0.0
    %2209 = vmatprep.subr.mxu0 0.0
    %2210 = vmatpush2.msra.mxu0 0.0
    %2211 = vmatprep.subr.mxu0 0.0
    %2212 = vmatpush2.msra.mxu0 0.0
    %2213 = vmatprep.subr.mxu0 0.0
    %2214 = vmatpush2.msra.mxu0 0.0
    %2215 = vmatprep.subr.mxu0 0.0
    %2216 = vmatpush2.msra.mxu0 0.0
    %2217 = vmatprep.mubr.f32.mxu0 0.0
    %2218 = vmatmul.mubr.f32.gmra.mxu0 %v1875
    %v2219 = vpop.f32.mrf.mxu0
    %v2220 = vadd.f32 0.0, %v2219
    %v2221 = vpop.f32.mrf.mxu0
    %v2222 = vadd.f32 0.0, %v2221
    %2223 = vmatprep.mubr.f32.mxu0 0.0
    %2224 = vmatmul.mubr.f32.gmra.mxu0 %v1878
    %v2225 = vpop.f32.mrf.mxu0
    %v2226 = vadd.f32 0.0, %v2225
    %v2227 = vpop.f32.mrf.mxu0
    %v2228 = vadd.f32 0.0, %v2227
    %2229 = vmatprep.mubr.f32.mxu0 0.0
    %2230 = vmatmul.mubr.f32.gmra.mxu0 %v1881
    %v2231 = vpop.f32.mrf.mxu0
    %v2232 = vadd.f32 0.0, %v2231
    %v2233 = vpop.f32.mrf.mxu0
    %v2234 = vadd.f32 0.0, %v2233
    %2235 = vmatprep.mubr.f32.mxu0 0.0
    %2236 = vmatmul.mubr.f32.gmra.mxu0 %v1884
    %v2237 = vpop.f32.mrf.mxu0
    %v2238 = vadd.f32 0.0, %v2237
    %v2239 = vpop.f32.mrf.mxu0
    %v2240 = vadd.f32 0.0, %v2239
    %2241 = vdwg.mxu0
    %v2242 = vmul.f32 %v1261, %v1953
    %v2243 = vmul.f32 %v1262, %v1955
    %v2244 = vmul.f32 %v1263, %v2042
    %v2245 = vmul.f32 %v1264, %v2044
    %v2246 = vmul.f32 %v1265, %v2131
    %v2247 = vmul.f32 %v1266, %v2133
    %v2248 = vmul.f32 %v1267, %v2220
    %v2249 = vmul.f32 %v1268, %v2222
    %v2250 = vmul.f32 %v1269, %v1959
    %v2251 = vmul.f32 %v1270, %v1961
    %v2252 = vmul.f32 %v1271, %v2048
    %v2253 = vmul.f32 %v1272, %v2050
    %v2254 = vmul.f32 %v1273, %v2137
    %v2255 = vmul.f32 %v1274, %v2139
    %v2256 = vmul.f32 %v1275, %v2226
    %v2257 = vmul.f32 %v1276, %v2228
    %v2258 = vmul.f32 %v1277, %v1965
    %v2259 = vmul.f32 %v1278, %v1967
    %v2260 = vmul.f32 %v1279, %v2054
    %v2261 = vmul.f32 %v1280, %v2056
    %v2262 = vmul.f32 %v1281, %v2143
    %v2263 = vmul.f32 %v1282, %v2145
    %v2264 = vmul.f32 %v1283, %v2232
    %v2265 = vmul.f32 %v1284, %v2234
    %v2266 = vmul.f32 %v1285, %v1971
    %v2267 = vmul.f32 %v1286, %v1973
    %v2268 = vmul.f32 %v1287, %v2060
    %v2269 = vmul.f32 %v1288, %v2062
    %v2270 = vmul.f32 %v1289, %v2149
    %v2271 = vmul.f32 %v1290, %v2151
    %v2272 = vmul.f32 %v1291, %v2238
    %v2273 = vmul.f32 %v1292, %v2240
    %v2274 = vld [vmem:[%s11] sm:$0xf]
    %v2275 = vld [vmem:[%s12] sm:$0xf]
    %2277 = vset.pattern.permute.xlu0 0
    %2278 = vperm.xlu0 %2277, %v2275
    %v2279 = vpop.permute.xlu0 %2278
    %v2282 = vsel %vm1640, %v2274, 0
    %2284 = vmatprep.subr.mxu0 0.0
    %2285 = vmatpush1.msra.mxu0 0.0
    %2286 = vmatprep.subr.mxu0 0.0
    %2287 = vmatpush1.msra.mxu0 0.0
    %2288 = vmatprep.subr.mxu0 0.0
    %2289 = vmatpush1.msra.mxu0 0.0
    %2290 = vmatprep.subr.mxu0 0.0
    %2291 = vmatpush1.msra.mxu0 0.0
    %2292 = vmatprep.subr.mxu0 0.0
    %2293 = vmatpush1.msra.mxu0 0.0
    %2294 = vmatprep.subr.mxu0 0.0
    %2295 = vmatpush1.msra.mxu0 0.0
    %2296 = vmatprep.subr.mxu0 0.0
    %2297 = vmatpush1.msra.mxu0 0.0
    %2298 = vmatprep.subr.mxu0 0.0
    %2299 = vmatpush1.msra.mxu0 0.0
    %2300 = vmatprep.subr.mxu0 0.0
    %2301 = vmatpush1.msra.mxu0 0.0
    %2302 = vmatprep.subr.mxu0 0.0
    %2303 = vmatpush1.msra.mxu0 0.0
    %2304 = vmatprep.subr.mxu0 0.0
    %2305 = vmatpush1.msra.mxu0 0.0
    %2306 = vmatprep.subr.mxu0 0.0
    %2307 = vmatpush1.msra.mxu0 0.0
    %2308 = vmatprep.subr.mxu0 %v2267
    %2309 = vmatpush1.msra.mxu0 %v2266
    %2310 = vmatprep.subr.mxu0 %v2259
    %2311 = vmatpush1.msra.mxu0 %v2258
    %2312 = vmatprep.subr.mxu0 %v2251
    %2313 = vmatpush1.msra.mxu0 %v2250
    %2314 = vmatprep.subr.mxu0 %v2243
    %2315 = vmatpush1.msra.mxu0 %v2242
    %2316 = vmatprep.subr.mxu0 0.0
    %2317 = vmatpush2.msra.mxu0 0.0
    %2318 = vmatprep.subr.mxu0 0.0
    %2319 = vmatpush2.msra.mxu0 0.0
    %2320 = vmatprep.subr.mxu0 0.0
    %2321 = vmatpush2.msra.mxu0 0.0
    %2322 = vmatprep.subr.mxu0 0.0
    %2323 = vmatpush2.msra.mxu0 0.0
    %2324 = vmatprep.subr.mxu0 0.0
    %2325 = vmatpush2.msra.mxu0 0.0
    %2326 = vmatprep.subr.mxu0 0.0
    %2327 = vmatpush2.msra.mxu0 0.0
    %2328 = vmatprep.subr.mxu0 0.0
    %2329 = vmatpush2.msra.mxu0 0.0
    %2330 = vmatprep.subr.mxu0 0.0
    %2331 = vmatpush2.msra.mxu0 0.0
    %2332 = vmatprep.subr.mxu0 0.0
    %2333 = vmatpush2.msra.mxu0 0.0
    %2334 = vmatprep.subr.mxu0 0.0
    %2335 = vmatpush2.msra.mxu0 0.0
    %2336 = vmatprep.subr.mxu0 0.0
    %2337 = vmatpush2.msra.mxu0 0.0
    %2338 = vmatprep.subr.mxu0 0.0
    %2339 = vmatpush2.msra.mxu0 0.0
    %2340 = vmatprep.subr.mxu0 0.0
    %2341 = vmatpush2.msra.mxu0 0.0
    %2342 = vmatprep.subr.mxu0 0.0
    %2343 = vmatpush2.msra.mxu0 0.0
    %2344 = vmatprep.subr.mxu0 0.0
    %2345 = vmatpush2.msra.mxu0 0.0
    %2346 = vmatprep.subr.mxu0 0.0
    %2347 = vmatpush2.msra.mxu0 0.0
    %2348 = vmatprep.mubr.f32.mxu0 0.0
    %2349 = vmatmul.mubr.f32.gmra.mxu0 %v2282
    %v2350 = vpop.f32.mrf.mxu0
    %v2351 = vadd.f32 %v2279, %v2350
    %v2352 = vpop.f32.mrf.mxu0
    %v2353 = vadd.f32 %v2279, %v2352
    %2354 = vdwg.mxu0
    %2355 = vmatprep.subr.mxu0 0.0
    %2356 = vmatpush1.msra.mxu0 0.0
    %2357 = vmatprep.subr.mxu0 0.0
    %2358 = vmatpush1.msra.mxu0 0.0
    %2359 = vmatprep.subr.mxu0 0.0
    %2360 = vmatpush1.msra.mxu0 0.0
    %2361 = vmatprep.subr.mxu0 0.0
    %2362 = vmatpush1.msra.mxu0 0.0
    %2363 = vmatprep.subr.mxu0 0.0
    %2364 = vmatpush1.msra.mxu0 0.0
    %2365 = vmatprep.subr.mxu0 0.0
    %2366 = vmatpush1.msra.mxu0 0.0
    %2367 = vmatprep.subr.mxu0 0.0
    %2368 = vmatpush1.msra.mxu0 0.0
    %2369 = vmatprep.subr.mxu0 0.0
    %2370 = vmatpush1.msra.mxu0 0.0
    %2371 = vmatprep.subr.mxu0 0.0
    %2372 = vmatpush1.msra.mxu0 0.0
    %2373 = vmatprep.subr.mxu0 0.0
    %2374 = vmatpush1.msra.mxu0 0.0
    %2375 = vmatprep.subr.mxu0 0.0
    %2376 = vmatpush1.msra.mxu0 0.0
    %2377 = vmatprep.subr.mxu0 0.0
    %2378 = vmatpush1.msra.mxu0 0.0
    %2379 = vmatprep.subr.mxu0 %v2269
    %2380 = vmatpush1.msra.mxu0 %v2268
    %2381 = vmatprep.subr.mxu0 %v2261
    %2382 = vmatpush1.msra.mxu0 %v2260
    %2383 = vmatprep.subr.mxu0 %v2253
    %2384 = vmatpush1.msra.mxu0 %v2252
    %2385 = vmatprep.subr.mxu0 %v2245
    %2386 = vmatpush1.msra.mxu0 %v2244
    %2387 = vmatprep.subr.mxu0 0.0
    %2388 = vmatpush2.msra.mxu0 0.0
    %2389 = vmatprep.subr.mxu0 0.0
    %2390 = vmatpush2.msra.mxu0 0.0
    %2391 = vmatprep.subr.mxu0 0.0
    %2392 = vmatpush2.msra.mxu0 0.0
    %2393 = vmatprep.subr.mxu0 0.0
    %2394 = vmatpush2.msra.mxu0 0.0
    %2395 = vmatprep.subr.mxu0 0.0
    %2396 = vmatpush2.msra.mxu0 0.0
    %2397 = vmatprep.subr.mxu0 0.0
    %2398 = vmatpush2.msra.mxu0 0.0
    %2399 = vmatprep.subr.mxu0 0.0
    %2400 = vmatpush2.msra.mxu0 0.0
    %2401 = vmatprep.subr.mxu0 0.0
    %2402 = vmatpush2.msra.mxu0 0.0
    %2403 = vmatprep.subr.mxu0 0.0
    %2404 = vmatpush2.msra.mxu0 0.0
    %2405 = vmatprep.subr.mxu0 0.0
    %2406 = vmatpush2.msra.mxu0 0.0
    %2407 = vmatprep.subr.mxu0 0.0
    %2408 = vmatpush2.msra.mxu0 0.0
    %2409 = vmatprep.subr.mxu0 0.0
    %2410 = vmatpush2.msra.mxu0 0.0
    %2411 = vmatprep.subr.mxu0 0.0
    %2412 = vmatpush2.msra.mxu0 0.0
    %2413 = vmatprep.subr.mxu0 0.0
    %2414 = vmatpush2.msra.mxu0 0.0
    %2415 = vmatprep.subr.mxu0 0.0
    %2416 = vmatpush2.msra.mxu0 0.0
    %2417 = vmatprep.subr.mxu0 0.0
    %2418 = vmatpush2.msra.mxu0 0.0
    %2419 = vmatprep.mubr.f32.mxu0 0.0
    %2420 = vmatmul.mubr.f32.gmra.mxu0 %v2282
    %v2421 = vpop.f32.mrf.mxu0
    %v2422 = vadd.f32 %v2279, %v2421
    %v2423 = vpop.f32.mrf.mxu0
    %v2424 = vadd.f32 %v2279, %v2423
    %2425 = vdwg.mxu0
    %2426 = vmatprep.subr.mxu0 0.0
    %2427 = vmatpush1.msra.mxu0 0.0
    %2428 = vmatprep.subr.mxu0 0.0
    %2429 = vmatpush1.msra.mxu0 0.0
    %2430 = vmatprep.subr.mxu0 0.0
    %2431 = vmatpush1.msra.mxu0 0.0
    %2432 = vmatprep.subr.mxu0 0.0
    %2433 = vmatpush1.msra.mxu0 0.0
    %2434 = vmatprep.subr.mxu0 0.0
    %2435 = vmatpush1.msra.mxu0 0.0
    %2436 = vmatprep.subr.mxu0 0.0
    %2437 = vmatpush1.msra.mxu0 0.0
    %2438 = vmatprep.subr.mxu0 0.0
    %2439 = vmatpush1.msra.mxu0 0.0
    %2440 = vmatprep.subr.mxu0 0.0
    %2441 = vmatpush1.msra.mxu0 0.0
    %2442 = vmatprep.subr.mxu0 0.0
    %2443 = vmatpush1.msra.mxu0 0.0
    %2444 = vmatprep.subr.mxu0 0.0
    %2445 = vmatpush1.msra.mxu0 0.0
    %2446 = vmatprep.subr.mxu0 0.0
    %2447 = vmatpush1.msra.mxu0 0.0
    %2448 = vmatprep.subr.mxu0 0.0
    %2449 = vmatpush1.msra.mxu0 0.0
    %2450 = vmatprep.subr.mxu0 %v2271
    %2451 = vmatpush1.msra.mxu0 %v2270
    %2452 = vmatprep.subr.mxu0 %v2263
    %2453 = vmatpush1.msra.mxu0 %v2262
    %2454 = vmatprep.subr.mxu0 %v2255
    %2455 = vmatpush1.msra.mxu0 %v2254
    %2456 = vmatprep.subr.mxu0 %v2247
    %2457 = vmatpush1.msra.mxu0 %v2246
    %2458 = vmatprep.subr.mxu0 0.0
    %2459 = vmatpush2.msra.mxu0 0.0
    %2460 = vmatprep.subr.mxu0 0.0
    %2461 = vmatpush2.msra.mxu0 0.0
    %2462 = vmatprep.subr.mxu0 0.0
    %2463 = vmatpush2.msra.mxu0 0.0
    %2464 = vmatprep.subr.mxu0 0.0
    %2465 = vmatpush2.msra.mxu0 0.0
    %2466 = vmatprep.subr.mxu0 0.0
    %2467 = vmatpush2.msra.mxu0 0.0
    %2468 = vmatprep.subr.mxu0 0.0
    %2469 = vmatpush2.msra.mxu0 0.0
    %2470 = vmatprep.subr.mxu0 0.0
    %2471 = vmatpush2.msra.mxu0 0.0
    %2472 = vmatprep.subr.mxu0 0.0
    %2473 = vmatpush2.msra.mxu0 0.0
    %2474 = vmatprep.subr.mxu0 0.0
    %2475 = vmatpush2.msra.mxu0 0.0
    %2476 = vmatprep.subr.mxu0 0.0
    %2477 = vmatpush2.msra.mxu0 0.0
    %2478 = vmatprep.subr.mxu0 0.0
    %2479 = vmatpush2.msra.mxu0 0.0
    %2480 = vmatprep.subr.mxu0 0.0
    %2481 = vmatpush2.msra.mxu0 0.0
    %2482 = vmatprep.subr.mxu0 0.0
    %2483 = vmatpush2.msra.mxu0 0.0
    %2484 = vmatprep.subr.mxu0 0.0
    %2485 = vmatpush2.msra.mxu0 0.0
    %2486 = vmatprep.subr.mxu0 0.0
    %2487 = vmatpush2.msra.mxu0 0.0
    %2488 = vmatprep.subr.mxu0 0.0
    %2489 = vmatpush2.msra.mxu0 0.0
    %2490 = vmatprep.mubr.f32.mxu0 0.0
    %2491 = vmatmul.mubr.f32.gmra.mxu0 %v2282
    %v2492 = vpop.f32.mrf.mxu0
    %v2493 = vadd.f32 %v2279, %v2492
    %v2494 = vpop.f32.mrf.mxu0
    %v2495 = vadd.f32 %v2279, %v2494
    %2496 = vdwg.mxu0
    %2497 = vmatprep.subr.mxu0 0.0
    %2498 = vmatpush1.msra.mxu0 0.0
    %2499 = vmatprep.subr.mxu0 0.0
    %2500 = vmatpush1.msra.mxu0 0.0
    %2501 = vmatprep.subr.mxu0 0.0
    %2502 = vmatpush1.msra.mxu0 0.0
    %2503 = vmatprep.subr.mxu0 0.0
    %2504 = vmatpush1.msra.mxu0 0.0
    %2505 = vmatprep.subr.mxu0 0.0
    %2506 = vmatpush1.msra.mxu0 0.0
    %2507 = vmatprep.subr.mxu0 0.0
    %2508 = vmatpush1.msra.mxu0 0.0
    %2509 = vmatprep.subr.mxu0 0.0
    %2510 = vmatpush1.msra.mxu0 0.0
    %2511 = vmatprep.subr.mxu0 0.0
    %2512 = vmatpush1.msra.mxu0 0.0
    %2513 = vmatprep.subr.mxu0 0.0
    %2514 = vmatpush1.msra.mxu0 0.0
    %2515 = vmatprep.subr.mxu0 0.0
    %2516 = vmatpush1.msra.mxu0 0.0
    %2517 = vmatprep.subr.mxu0 0.0
    %2518 = vmatpush1.msra.mxu0 0.0
    %2519 = vmatprep.subr.mxu0 0.0
    %2520 = vmatpush1.msra.mxu0 0.0
    %2521 = vmatprep.subr.mxu0 %v2273
    %2522 = vmatpush1.msra.mxu0 %v2272
    %2523 = vmatprep.subr.mxu0 %v2265
    %2524 = vmatpush1.msra.mxu0 %v2264
    %2525 = vmatprep.subr.mxu0 %v2257
    %2526 = vmatpush1.msra.mxu0 %v2256
    %2527 = vmatprep.subr.mxu0 %v2249
    %2528 = vmatpush1.msra.mxu0 %v2248
    %2529 = vmatprep.subr.mxu0 0.0
    %2530 = vmatpush2.msra.mxu0 0.0
    %2531 = vmatprep.subr.mxu0 0.0
    %2532 = vmatpush2.msra.mxu0 0.0
    %2533 = vmatprep.subr.mxu0 0.0
    %2534 = vmatpush2.msra.mxu0 0.0
    %2535 = vmatprep.subr.mxu0 0.0
    %2536 = vmatpush2.msra.mxu0 0.0
    %2537 = vmatprep.subr.mxu0 0.0
    %2538 = vmatpush2.msra.mxu0 0.0
    %2539 = vmatprep.subr.mxu0 0.0
    %2540 = vmatpush2.msra.mxu0 0.0
    %2541 = vmatprep.subr.mxu0 0.0
    %2542 = vmatpush2.msra.mxu0 0.0
    %2543 = vmatprep.subr.mxu0 0.0
    %2544 = vmatpush2.msra.mxu0 0.0
    %2545 = vmatprep.subr.mxu0 0.0
    %2546 = vmatpush2.msra.mxu0 0.0
    %2547 = vmatprep.subr.mxu0 0.0
    %2548 = vmatpush2.msra.mxu0 0.0
    %2549 = vmatprep.subr.mxu0 0.0
    %2550 = vmatpush2.msra.mxu0 0.0
    %2551 = vmatprep.subr.mxu0 0.0
    %2552 = vmatpush2.msra.mxu0 0.0
    %2553 = vmatprep.subr.mxu0 0.0
    %2554 = vmatpush2.msra.mxu0 0.0
    %2555 = vmatprep.subr.mxu0 0.0
    %2556 = vmatpush2.msra.mxu0 0.0
    %2557 = vmatprep.subr.mxu0 0.0
    %2558 = vmatpush2.msra.mxu0 0.0
    %2559 = vmatprep.subr.mxu0 0.0
    %2560 = vmatpush2.msra.mxu0 0.0
    %2561 = vmatprep.mubr.f32.mxu0 0.0
    %2562 = vmatmul.mubr.f32.gmra.mxu0 %v2282
    %v2563 = vpop.f32.mrf.mxu0
    %v2564 = vadd.f32 %v2279, %v2563
    %v2565 = vpop.f32.mrf.mxu0
    %v2566 = vadd.f32 %v2279, %v2565
    %2567 = vdwg.mxu0
    %v2568 = vmax.f32 %v2351, 0.0
    %v2569 = vmax.f32 %v2353, 0.0
    %v2570 = vmax.f32 %v2422, 0.0
    %v2571 = vmax.f32 %v2424, 0.0
    %v2572 = vmax.f32 %v2493, 0.0
    %v2573 = vmax.f32 %v2495, 0.0
    %v2574 = vmax.f32 %v2564, 0.0
    %v2575 = vmax.f32 %v2566, 0.0
    %v2576 = vld [vmem:[%s13] sm:$0xff]
    %v2577 = vld [vmem:[%s13 + $0x8] sm:$0xff]
    %v2578 = vld [vmem:[%s13 + $0x10] sm:$0xff]
    %v2579 = vld [vmem:[%s13 + $0x18] sm:$0xff]
    %v2580 = vld [vmem:[%s14] sm:$0xff]
    %v2581 = vld [vmem:[%s14 + $0x8] sm:$0xff]
    %v2582 = vld [vmem:[%s14 + $0x10] sm:$0xff]
    %v2583 = vld [vmem:[%s14 + $0x18] sm:$0xff]
    %2585 = vset.pattern.permute.xlu0 0
    %2586 = vperm.xlu0 %2585, %v2580
    %v2587 = vpop.permute.xlu0 %2586
    %2590 = vset.pattern.permute.xlu0 0
    %2591 = vperm.xlu0 %2590, %v2581
    %v2592 = vpop.permute.xlu0 %2591
    %2595 = vset.pattern.permute.xlu0 0
    %2596 = vperm.xlu0 %2595, %v2582
    %v2597 = vpop.permute.xlu0 %2596
    %2600 = vset.pattern.permute.xlu0 0
    %2601 = vperm.xlu0 %2600, %v2583
    %v2602 = vpop.permute.xlu0 %2601
    %v2605 = vsel %vm1743, %v2576, 0
    %v2608 = vsel %vm1743, %v2577, 0
    %v2611 = vsel %vm1743, %v2578, 0
    %v2614 = vsel %vm1743, %v2579, 0
    %v2617 = vsel %vm1756, %v2568, 0
    %v2620 = vsel %vm1756, %v2569, 0
    %v2623 = vsel %vm1756, %v2570, 0
    %v2626 = vsel %vm1756, %v2571, 0
    %v2629 = vsel %vm1756, %v2572, 0
    %v2632 = vsel %vm1756, %v2573, 0
    %v2635 = vsel %vm1756, %v2574, 0
    %v2638 = vsel %vm1756, %v2575, 0
    %2640 = vmatprep.subr.mxu0 0.0
    %2641 = vmatpush1.msra.mxu0 0.0
    %2642 = vmatprep.subr.mxu0 0.0
    %2643 = vmatpush1.msra.mxu0 0.0
    %2644 = vmatprep.subr.mxu0 0.0
    %2645 = vmatpush1.msra.mxu0 0.0
    %2646 = vmatprep.subr.mxu0 0.0
    %2647 = vmatpush1.msra.mxu0 0.0
    %2648 = vmatprep.subr.mxu0 0.0
    %2649 = vmatpush1.msra.mxu0 0.0
    %2650 = vmatprep.subr.mxu0 0.0
    %2651 = vmatpush1.msra.mxu0 0.0
    %2652 = vmatprep.subr.mxu0 0.0
    %2653 = vmatpush1.msra.mxu0 0.0
    %2654 = vmatprep.subr.mxu0 0.0
    %2655 = vmatpush1.msra.mxu0 0.0
    %2656 = vmatprep.subr.mxu0 0.0
    %2657 = vmatpush1.msra.mxu0 0.0
    %2658 = vmatprep.subr.mxu0 0.0
    %2659 = vmatpush1.msra.mxu0 0.0
    %2660 = vmatprep.subr.mxu0 0.0
    %2661 = vmatpush1.msra.mxu0 0.0
    %2662 = vmatprep.subr.mxu0 0.0
    %2663 = vmatpush1.msra.mxu0 0.0
    %2664 = vmatprep.subr.mxu0 0.0
    %2665 = vmatpush1.msra.mxu0 0.0
    %2666 = vmatprep.subr.mxu0 0.0
    %2667 = vmatpush1.msra.mxu0 0.0
    %2668 = vmatprep.subr.mxu0 0.0
    %2669 = vmatpush1.msra.mxu0 0.0
    %2670 = vmatprep.subr.mxu0 %v2620
    %2671 = vmatpush1.msra.mxu0 %v2617
    %2672 = vmatprep.subr.mxu0 0.0
    %2673 = vmatpush2.msra.mxu0 0.0
    %2674 = vmatprep.subr.mxu0 0.0
    %2675 = vmatpush2.msra.mxu0 0.0
    %2676 = vmatprep.subr.mxu0 0.0
    %2677 = vmatpush2.msra.mxu0 0.0
    %2678 = vmatprep.subr.mxu0 0.0
    %2679 = vmatpush2.msra.mxu0 0.0
    %2680 = vmatprep.subr.mxu0 0.0
    %2681 = vmatpush2.msra.mxu0 0.0
    %2682 = vmatprep.subr.mxu0 0.0
    %2683 = vmatpush2.msra.mxu0 0.0
    %2684 = vmatprep.subr.mxu0 0.0
    %2685 = vmatpush2.msra.mxu0 0.0
    %2686 = vmatprep.subr.mxu0 0.0
    %2687 = vmatpush2.msra.mxu0 0.0
    %2688 = vmatprep.subr.mxu0 0.0
    %2689 = vmatpush2.msra.mxu0 0.0
    %2690 = vmatprep.subr.mxu0 0.0
    %2691 = vmatpush2.msra.mxu0 0.0
    %2692 = vmatprep.subr.mxu0 0.0
    %2693 = vmatpush2.msra.mxu0 0.0
    %2694 = vmatprep.subr.mxu0 0.0
    %2695 = vmatpush2.msra.mxu0 0.0
    %2696 = vmatprep.subr.mxu0 0.0
    %2697 = vmatpush2.msra.mxu0 0.0
    %2698 = vmatprep.subr.mxu0 0.0
    %2699 = vmatpush2.msra.mxu0 0.0
    %2700 = vmatprep.subr.mxu0 0.0
    %2701 = vmatpush2.msra.mxu0 0.0
    %2702 = vmatprep.subr.mxu0 0.0
    %2703 = vmatpush2.msra.mxu0 0.0
    %2704 = vmatprep.mubr.f32.mxu0 0.0
    %2705 = vmatmul.mubr.f32.gmra.mxu0 %v2605
    %v2706 = vpop.f32.mrf.mxu0
    %v2707 = vadd.f32 %v2587, %v2706
    %v2708 = vpop.f32.mrf.mxu0
    %v2709 = vadd.f32 %v2587, %v2708
    %2710 = vmatprep.mubr.f32.mxu0 0.0
    %2711 = vmatmul.mubr.f32.gmra.mxu0 %v2608
    %v2712 = vpop.f32.mrf.mxu0
    %v2713 = vadd.f32 %v2592, %v2712
    %v2714 = vpop.f32.mrf.mxu0
    %v2715 = vadd.f32 %v2592, %v2714
    %2716 = vmatprep.mubr.f32.mxu0 0.0
    %2717 = vmatmul.mubr.f32.gmra.mxu0 %v2611
    %v2718 = vpop.f32.mrf.mxu0
    %v2719 = vadd.f32 %v2597, %v2718
    %v2720 = vpop.f32.mrf.mxu0
    %v2721 = vadd.f32 %v2597, %v2720
    %2722 = vmatprep.mubr.f32.mxu0 0.0
    %2723 = vmatmul.mubr.f32.gmra.mxu0 %v2614
    %v2724 = vpop.f32.mrf.mxu0
    %v2725 = vadd.f32 %v2602, %v2724
    %v2726 = vpop.f32.mrf.mxu0
    %v2727 = vadd.f32 %v2602, %v2726
    %2728 = vdwg.mxu0
    %2729 = vmatprep.subr.mxu0 0.0
    %2730 = vmatpush1.msra.mxu0 0.0
    %2731 = vmatprep.subr.mxu0 0.0
    %2732 = vmatpush1.msra.mxu0 0.0
    %2733 = vmatprep.subr.mxu0 0.0
    %2734 = vmatpush1.msra.mxu0 0.0
    %2735 = vmatprep.subr.mxu0 0.0
    %2736 = vmatpush1.msra.mxu0 0.0
    %2737 = vmatprep.subr.mxu0 0.0
    %2738 = vmatpush1.msra.mxu0 0.0
    %2739 = vmatprep.subr.mxu0 0.0
    %2740 = vmatpush1.msra.mxu0 0.0
    %2741 = vmatprep.subr.mxu0 0.0
    %2742 = vmatpush1.msra.mxu0 0.0
    %2743 = vmatprep.subr.mxu0 0.0
    %2744 = vmatpush1.msra.mxu0 0.0
    %2745 = vmatprep.subr.mxu0 0.0
    %2746 = vmatpush1.msra.mxu0 0.0
    %2747 = vmatprep.subr.mxu0 0.0
    %2748 = vmatpush1.msra.mxu0 0.0
    %2749 = vmatprep.subr.mxu0 0.0
    %2750 = vmatpush1.msra.mxu0 0.0
    %2751 = vmatprep.subr.mxu0 0.0
    %2752 = vmatpush1.msra.mxu0 0.0
    %2753 = vmatprep.subr.mxu0 0.0
    %2754 = vmatpush1.msra.mxu0 0.0
    %2755 = vmatprep.subr.mxu0 0.0
    %2756 = vmatpush1.msra.mxu0 0.0
    %2757 = vmatprep.subr.mxu0 0.0
    %2758 = vmatpush1.msra.mxu0 0.0
    %2759 = vmatprep.subr.mxu0 %v2626
    %2760 = vmatpush1.msra.mxu0 %v2623
    %2761 = vmatprep.subr.mxu0 0.0
    %2762 = vmatpush2.msra.mxu0 0.0
    %2763 = vmatprep.subr.mxu0 0.0
    %2764 = vmatpush2.msra.mxu0 0.0
    %2765 = vmatprep.subr.mxu0 0.0
    %2766 = vmatpush2.msra.mxu0 0.0
    %2767 = vmatprep.subr.mxu0 0.0
    %2768 = vmatpush2.msra.mxu0 0.0
    %2769 = vmatprep.subr.mxu0 0.0
    %2770 = vmatpush2.msra.mxu0 0.0
    %2771 = vmatprep.subr.mxu0 0.0
    %2772 = vmatpush2.msra.mxu0 0.0
    %2773 = vmatprep.subr.mxu0 0.0
    %2774 = vmatpush2.msra.mxu0 0.0
    %2775 = vmatprep.subr.mxu0 0.0
    %2776 = vmatpush2.msra.mxu0 0.0
    %2777 = vmatprep.subr.mxu0 0.0
    %2778 = vmatpush2.msra.mxu0 0.0
    %2779 = vmatprep.subr.mxu0 0.0
    %2780 = vmatpush2.msra.mxu0 0.0
    %2781 = vmatprep.subr.mxu0 0.0
    %2782 = vmatpush2.msra.mxu0 0.0
    %2783 = vmatprep.subr.mxu0 0.0
    %2784 = vmatpush2.msra.mxu0 0.0
    %2785 = vmatprep.subr.mxu0 0.0
    %2786 = vmatpush2.msra.mxu0 0.0
    %2787 = vmatprep.subr.mxu0 0.0
    %2788 = vmatpush2.msra.mxu0 0.0
    %2789 = vmatprep.subr.mxu0 0.0
    %2790 = vmatpush2.msra.mxu0 0.0
    %2791 = vmatprep.subr.mxu0 0.0
    %2792 = vmatpush2.msra.mxu0 0.0
    %2793 = vmatprep.mubr.f32.mxu0 0.0
    %2794 = vmatmul.mubr.f32.gmra.mxu0 %v2605
    %v2795 = vpop.f32.mrf.mxu0
    %v2796 = vadd.f32 %v2587, %v2795
    %v2797 = vpop.f32.mrf.mxu0
    %v2798 = vadd.f32 %v2587, %v2797
    %2799 = vmatprep.mubr.f32.mxu0 0.0
    %2800 = vmatmul.mubr.f32.gmra.mxu0 %v2608
    %v2801 = vpop.f32.mrf.mxu0
    %v2802 = vadd.f32 %v2592, %v2801
    %v2803 = vpop.f32.mrf.mxu0
    %v2804 = vadd.f32 %v2592, %v2803
    %2805 = vmatprep.mubr.f32.mxu0 0.0
    %2806 = vmatmul.mubr.f32.gmra.mxu0 %v2611
    %v2807 = vpop.f32.mrf.mxu0
    %v2808 = vadd.f32 %v2597, %v2807
    %v2809 = vpop.f32.mrf.mxu0
    %v2810 = vadd.f32 %v2597, %v2809
    %2811 = vmatprep.mubr.f32.mxu0 0.0
    %2812 = vmatmul.mubr.f32.gmra.mxu0 %v2614
    %v2813 = vpop.f32.mrf.mxu0
    %v2814 = vadd.f32 %v2602, %v2813
    %v2815 = vpop.f32.mrf.mxu0
    %v2816 = vadd.f32 %v2602, %v2815
    %2817 = vdwg.mxu0
    %2818 = vmatprep.subr.mxu0 0.0
    %2819 = vmatpush1.msra.mxu0 0.0
    %2820 = vmatprep.subr.mxu0 0.0
    %2821 = vmatpush1.msra.mxu0 0.0
    %2822 = vmatprep.subr.mxu0 0.0
    %2823 = vmatpush1.msra.mxu0 0.0
    %2824 = vmatprep.subr.mxu0 0.0
    %2825 = vmatpush1.msra.mxu0 0.0
    %2826 = vmatprep.subr.mxu0 0.0
    %2827 = vmatpush1.msra.mxu0 0.0
    %2828 = vmatprep.subr.mxu0 0.0
    %2829 = vmatpush1.msra.mxu0 0.0
    %2830 = vmatprep.subr.mxu0 0.0
    %2831 = vmatpush1.msra.mxu0 0.0
    %2832 = vmatprep.subr.mxu0 0.0
    %2833 = vmatpush1.msra.mxu0 0.0
    %2834 = vmatprep.subr.mxu0 0.0
    %2835 = vmatpush1.msra.mxu0 0.0
    %2836 = vmatprep.subr.mxu0 0.0
    %2837 = vmatpush1.msra.mxu0 0.0
    %2838 = vmatprep.subr.mxu0 0.0
    %2839 = vmatpush1.msra.mxu0 0.0
    %2840 = vmatprep.subr.mxu0 0.0
    %2841 = vmatpush1.msra.mxu0 0.0
    %2842 = vmatprep.subr.mxu0 0.0
    %2843 = vmatpush1.msra.mxu0 0.0
    %2844 = vmatprep.subr.mxu0 0.0
    %2845 = vmatpush1.msra.mxu0 0.0
    %2846 = vmatprep.subr.mxu0 0.0
    %2847 = vmatpush1.msra.mxu0 0.0
    %2848 = vmatprep.subr.mxu0 %v2632
    %2849 = vmatpush1.msra.mxu0 %v2629
    %2850 = vmatprep.subr.mxu0 0.0
    %2851 = vmatpush2.msra.mxu0 0.0
    %2852 = vmatprep.subr.mxu0 0.0
    %2853 = vmatpush2.msra.mxu0 0.0
    %2854 = vmatprep.subr.mxu0 0.0
    %2855 = vmatpush2.msra.mxu0 0.0
    %2856 = vmatprep.subr.mxu0 0.0
    %2857 = vmatpush2.msra.mxu0 0.0
    %2858 = vmatprep.subr.mxu0 0.0
    %2859 = vmatpush2.msra.mxu0 0.0
    %2860 = vmatprep.subr.mxu0 0.0
    %2861 = vmatpush2.msra.mxu0 0.0
    %2862 = vmatprep.subr.mxu0 0.0
    %2863 = vmatpush2.msra.mxu0 0.0
    %2864 = vmatprep.subr.mxu0 0.0
    %2865 = vmatpush2.msra.mxu0 0.0
    %2866 = vmatprep.subr.mxu0 0.0
    %2867 = vmatpush2.msra.mxu0 0.0
    %2868 = vmatprep.subr.mxu0 0.0
    %2869 = vmatpush2.msra.mxu0 0.0
    %2870 = vmatprep.subr.mxu0 0.0
    %2871 = vmatpush2.msra.mxu0 0.0
    %2872 = vmatprep.subr.mxu0 0.0
    %2873 = vmatpush2.msra.mxu0 0.0
    %2874 = vmatprep.subr.mxu0 0.0
    %2875 = vmatpush2.msra.mxu0 0.0
    %2876 = vmatprep.subr.mxu0 0.0
    %2877 = vmatpush2.msra.mxu0 0.0
    %2878 = vmatprep.subr.mxu0 0.0
    %2879 = vmatpush2.msra.mxu0 0.0
    %2880 = vmatprep.subr.mxu0 0.0
    %2881 = vmatpush2.msra.mxu0 0.0
    %2882 = vmatprep.mubr.f32.mxu0 0.0
    %2883 = vmatmul.mubr.f32.gmra.mxu0 %v2605
    %v2884 = vpop.f32.mrf.mxu0
    %v2885 = vadd.f32 %v2587, %v2884
    %v2886 = vpop.f32.mrf.mxu0
    %v2887 = vadd.f32 %v2587, %v2886
    %2888 = vmatprep.mubr.f32.mxu0 0.0
    %2889 = vmatmul.mubr.f32.gmra.mxu0 %v2608
    %v2890 = vpop.f32.mrf.mxu0
    %v2891 = vadd.f32 %v2592, %v2890
    %v2892 = vpop.f32.mrf.mxu0
    %v2893 = vadd.f32 %v2592, %v2892
    %2894 = vmatprep.mubr.f32.mxu0 0.0
    %2895 = vmatmul.mubr.f32.gmra.mxu0 %v2611
    %v2896 = vpop.f32.mrf.mxu0
    %v2897 = vadd.f32 %v2597, %v2896
    %v2898 = vpop.f32.mrf.mxu0
    %v2899 = vadd.f32 %v2597, %v2898
    %2900 = vmatprep.mubr.f32.mxu0 0.0
    %2901 = vmatmul.mubr.f32.gmra.mxu0 %v2614
    %v2902 = vpop.f32.mrf.mxu0
    %v2903 = vadd.f32 %v2602, %v2902
    %v2904 = vpop.f32.mrf.mxu0
    %v2905 = vadd.f32 %v2602, %v2904
    %2906 = vdwg.mxu0
    %2907 = vmatprep.subr.mxu0 0.0
    %2908 = vmatpush1.msra.mxu0 0.0
    %2909 = vmatprep.subr.mxu0 0.0
    %2910 = vmatpush1.msra.mxu0 0.0
    %2911 = vmatprep.subr.mxu0 0.0
    %2912 = vmatpush1.msra.mxu0 0.0
    %2913 = vmatprep.subr.mxu0 0.0
    %2914 = vmatpush1.msra.mxu0 0.0
    %2915 = vmatprep.subr.mxu0 0.0
    %2916 = vmatpush1.msra.mxu0 0.0
    %2917 = vmatprep.subr.mxu0 0.0
    %2918 = vmatpush1.msra.mxu0 0.0
    %2919 = vmatprep.subr.mxu0 0.0
    %2920 = vmatpush1.msra.mxu0 0.0
    %2921 = vmatprep.subr.mxu0 0.0
    %2922 = vmatpush1.msra.mxu0 0.0
    %2923 = vmatprep.subr.mxu0 0.0
    %2924 = vmatpush1.msra.mxu0 0.0
    %2925 = vmatprep.subr.mxu0 0.0
    %2926 = vmatpush1.msra.mxu0 0.0
    %2927 = vmatprep.subr.mxu0 0.0
    %2928 = vmatpush1.msra.mxu0 0.0
    %2929 = vmatprep.subr.mxu0 0.0
    %2930 = vmatpush1.msra.mxu0 0.0
    %2931 = vmatprep.subr.mxu0 0.0
    %2932 = vmatpush1.msra.mxu0 0.0
    %2933 = vmatprep.subr.mxu0 0.0
    %2934 = vmatpush1.msra.mxu0 0.0
    %2935 = vmatprep.subr.mxu0 0.0
    %2936 = vmatpush1.msra.mxu0 0.0
    %2937 = vmatprep.subr.mxu0 %v2638
    %2938 = vmatpush1.msra.mxu0 %v2635
    %2939 = vmatprep.subr.mxu0 0.0
    %2940 = vmatpush2.msra.mxu0 0.0
    %2941 = vmatprep.subr.mxu0 0.0
    %2942 = vmatpush2.msra.mxu0 0.0
    %2943 = vmatprep.subr.mxu0 0.0
    %2944 = vmatpush2.msra.mxu0 0.0
    %2945 = vmatprep.subr.mxu0 0.0
    %2946 = vmatpush2.msra.mxu0 0.0
    %2947 = vmatprep.subr.mxu0 0.0
    %2948 = vmatpush2.msra.mxu0 0.0
    %2949 = vmatprep.subr.mxu0 0.0
    %2950 = vmatpush2.msra.mxu0 0.0
    %2951 = vmatprep.subr.mxu0 0.0
    %2952 = vmatpush2.msra.mxu0 0.0
    %2953 = vmatprep.subr.mxu0 0.0
    %2954 = vmatpush2.msra.mxu0 0.0
    %2955 = vmatprep.subr.mxu0 0.0
    %2956 = vmatpush2.msra.mxu0 0.0
    %2957 = vmatprep.subr.mxu0 0.0
    %2958 = vmatpush2.msra.mxu0 0.0
    %2959 = vmatprep.subr.mxu0 0.0
    %2960 = vmatpush2.msra.mxu0 0.0
    %2961 = vmatprep.subr.mxu0 0.0
    %2962 = vmatpush2.msra.mxu0 0.0
    %2963 = vmatprep.subr.mxu0 0.0
    %2964 = vmatpush2.msra.mxu0 0.0
    %2965 = vmatprep.subr.mxu0 0.0
    %2966 = vmatpush2.msra.mxu0 0.0
    %2967 = vmatprep.subr.mxu0 0.0
    %2968 = vmatpush2.msra.mxu0 0.0
    %2969 = vmatprep.subr.mxu0 0.0
    %2970 = vmatpush2.msra.mxu0 0.0
    %2971 = vmatprep.mubr.f32.mxu0 0.0
    %2972 = vmatmul.mubr.f32.gmra.mxu0 %v2605
    %v2973 = vpop.f32.mrf.mxu0
    %v2974 = vadd.f32 %v2587, %v2973
    %v2975 = vpop.f32.mrf.mxu0
    %v2976 = vadd.f32 %v2587, %v2975
    %2977 = vmatprep.mubr.f32.mxu0 0.0
    %2978 = vmatmul.mubr.f32.gmra.mxu0 %v2608
    %v2979 = vpop.f32.mrf.mxu0
    %v2980 = vadd.f32 %v2592, %v2979
    %v2981 = vpop.f32.mrf.mxu0
    %v2982 = vadd.f32 %v2592, %v2981
    %2983 = vmatprep.mubr.f32.mxu0 0.0
    %2984 = vmatmul.mubr.f32.gmra.mxu0 %v2611
    %v2985 = vpop.f32.mrf.mxu0
    %v2986 = vadd.f32 %v2597, %v2985
    %v2987 = vpop.f32.mrf.mxu0
    %v2988 = vadd.f32 %v2597, %v2987
    %2989 = vmatprep.mubr.f32.mxu0 0.0
    %2990 = vmatmul.mubr.f32.gmra.mxu0 %v2614
    %v2991 = vpop.f32.mrf.mxu0
    %v2992 = vadd.f32 %v2602, %v2991
    %v2993 = vpop.f32.mrf.mxu0
    %v2994 = vadd.f32 %v2602, %v2993
    %2995 = vdwg.mxu0
    %v2996 = vxor.u32 %v2707, 2147483648
    %v2997 = vxor.u32 %v2709, 2147483648
    %v2998 = vxor.u32 %v2796, 2147483648
    %v2999 = vxor.u32 %v2798, 2147483648
    %v3000 = vxor.u32 %v2885, 2147483648
    %v3001 = vxor.u32 %v2887, 2147483648
    %v3002 = vxor.u32 %v2974, 2147483648
    %v3003 = vxor.u32 %v2976, 2147483648
    %v3004 = vxor.u32 %v2713, 2147483648
    %v3005 = vxor.u32 %v2715, 2147483648
    %v3006 = vxor.u32 %v2802, 2147483648
    %v3007 = vxor.u32 %v2804, 2147483648
    %v3008 = vxor.u32 %v2891, 2147483648
    %v3009 = vxor.u32 %v2893, 2147483648
    %v3010 = vxor.u32 %v2980, 2147483648
    %v3011 = vxor.u32 %v2982, 2147483648
    %v3012 = vxor.u32 %v2719, 2147483648
    %v3013 = vxor.u32 %v2721, 2147483648
    %v3014 = vxor.u32 %v2808, 2147483648
    %v3015 = vxor.u32 %v2810, 2147483648
    %v3016 = vxor.u32 %v2897, 2147483648
    %v3017 = vxor.u32 %v2899, 2147483648
    %v3018 = vxor.u32 %v2986, 2147483648
    %v3019 = vxor.u32 %v2988, 2147483648
    %v3020 = vxor.u32 %v2725, 2147483648
    %v3021 = vxor.u32 %v2727, 2147483648
    %v3022 = vxor.u32 %v2814, 2147483648
    %v3023 = vxor.u32 %v2816, 2147483648
    %v3024 = vxor.u32 %v2903, 2147483648
    %v3025 = vxor.u32 %v2905, 2147483648
    %v3026 = vxor.u32 %v2992, 2147483648
    %v3027 = vxor.u32 %v2994, 2147483648
    %v3028 = vmul.f32 %v2996, 1.442695
    %v3029 = vpow.pop %v3028
    %v3030 = vmul.f32 %v2997, 1.442695
    %v3031 = vpow.pop %v3030
    %v3032 = vmul.f32 %v2998, 1.442695
    %v3033 = vpow.pop %v3032
    %v3034 = vmul.f32 %v2999, 1.442695
    %v3035 = vpow.pop %v3034
    %v3036 = vmul.f32 %v3000, 1.442695
    %v3037 = vpow.pop %v3036
    %v3038 = vmul.f32 %v3001, 1.442695
    %v3039 = vpow.pop %v3038
    %v3040 = vmul.f32 %v3002, 1.442695
    %v3041 = vpow.pop %v3040
    %v3042 = vmul.f32 %v3003, 1.442695
    %v3043 = vpow.pop %v3042
    %v3044 = vmul.f32 %v3004, 1.442695
    %v3045 = vpow.pop %v3044
    %v3046 = vmul.f32 %v3005, 1.442695
    %v3047 = vpow.pop %v3046
    %v3048 = vmul.f32 %v3006, 1.442695
    %v3049 = vpow.pop %v3048
    %v3050 = vmul.f32 %v3007, 1.442695
    %v3051 = vpow.pop %v3050
    %v3052 = vmul.f32 %v3008, 1.442695
    %v3053 = vpow.pop %v3052
    %v3054 = vmul.f32 %v3009, 1.442695
    %v3055 = vpow.pop %v3054
    %v3056 = vmul.f32 %v3010, 1.442695
    %v3057 = vpow.pop %v3056
    %v3058 = vmul.f32 %v3011, 1.442695
    %v3059 = vpow.pop %v3058
    %v3060 = vmul.f32 %v3012, 1.442695
    %v3061 = vpow.pop %v3060
    %v3062 = vmul.f32 %v3013, 1.442695
    %v3063 = vpow.pop %v3062
    %v3064 = vmul.f32 %v3014, 1.442695
    %v3065 = vpow.pop %v3064
    %v3066 = vmul.f32 %v3015, 1.442695
    %v3067 = vpow.pop %v3066
    %v3068 = vmul.f32 %v3016, 1.442695
    %v3069 = vpow.pop %v3068
    %v3070 = vmul.f32 %v3017, 1.442695
    %v3071 = vpow.pop %v3070
    %v3072 = vmul.f32 %v3018, 1.442695
    %v3073 = vpow.pop %v3072
    %v3074 = vmul.f32 %v3019, 1.442695
    %v3075 = vpow.pop %v3074
    %v3076 = vmul.f32 %v3020, 1.442695
    %v3077 = vpow.pop %v3076
    %v3078 = vmul.f32 %v3021, 1.442695
    %v3079 = vpow.pop %v3078
    %v3080 = vmul.f32 %v3022, 1.442695
    %v3081 = vpow.pop %v3080
    %v3082 = vmul.f32 %v3023, 1.442695
    %v3083 = vpow.pop %v3082
    %v3084 = vmul.f32 %v3024, 1.442695
    %v3085 = vpow.pop %v3084
    %v3086 = vmul.f32 %v3025, 1.442695
    %v3087 = vpow.pop %v3086
    %v3088 = vmul.f32 %v3026, 1.442695
    %v3089 = vpow.pop %v3088
    %v3090 = vmul.f32 %v3027, 1.442695
    %v3091 = vpow.pop %v3090
    %v3092 = vadd.f32 %v3029, 1.0
    %v3093 = vadd.f32 %v3031, 1.0
    %v3094 = vadd.f32 %v3033, 1.0
    %v3095 = vadd.f32 %v3035, 1.0
    %v3096 = vadd.f32 %v3037, 1.0
    %v3097 = vadd.f32 %v3039, 1.0
    %v3098 = vadd.f32 %v3041, 1.0
    %v3099 = vadd.f32 %v3043, 1.0
    %v3100 = vadd.f32 %v3045, 1.0
    %v3101 = vadd.f32 %v3047, 1.0
    %v3102 = vadd.f32 %v3049, 1.0
    %v3103 = vadd.f32 %v3051, 1.0
    %v3104 = vadd.f32 %v3053, 1.0
    %v3105 = vadd.f32 %v3055, 1.0
    %v3106 = vadd.f32 %v3057, 1.0
    %v3107 = vadd.f32 %v3059, 1.0
    %v3108 = vadd.f32 %v3061, 1.0
    %v3109 = vadd.f32 %v3063, 1.0
    %v3110 = vadd.f32 %v3065, 1.0
    %v3111 = vadd.f32 %v3067, 1.0
    %v3112 = vadd.f32 %v3069, 1.0
    %v3113 = vadd.f32 %v3071, 1.0
    %v3114 = vadd.f32 %v3073, 1.0
    %v3115 = vadd.f32 %v3075, 1.0
    %v3116 = vadd.f32 %v3077, 1.0
    %v3117 = vadd.f32 %v3079, 1.0
    %v3118 = vadd.f32 %v3081, 1.0
    %v3119 = vadd.f32 %v3083, 1.0
    %v3120 = vadd.f32 %v3085, 1.0
    %v3121 = vadd.f32 %v3087, 1.0
    %v3122 = vadd.f32 %v3089, 1.0
    %v3123 = vadd.f32 %v3091, 1.0
    %v3124 = vrcp.pop %v3092
    %v3125 = vmul.f32 1.0, %v3124
    %v3126 = vrcp.pop %v3093
    %v3127 = vmul.f32 1.0, %v3126
    %v3128 = vrcp.pop %v3094
    %v3129 = vmul.f32 1.0, %v3128
    %v3130 = vrcp.pop %v3095
    %v3131 = vmul.f32 1.0, %v3130
    %v3132 = vrcp.pop %v3096
    %v3133 = vmul.f32 1.0, %v3132
    %v3134 = vrcp.pop %v3097
    %v3135 = vmul.f32 1.0, %v3134
    %v3136 = vrcp.pop %v3098
    %v3137 = vmul.f32 1.0, %v3136
    %v3138 = vrcp.pop %v3099
    %v3139 = vmul.f32 1.0, %v3138
    %v3140 = vrcp.pop %v3100
    %v3141 = vmul.f32 1.0, %v3140
    %v3142 = vrcp.pop %v3101
    %v3143 = vmul.f32 1.0, %v3142
    %v3144 = vrcp.pop %v3102
    %v3145 = vmul.f32 1.0, %v3144
    %v3146 = vrcp.pop %v3103
    %v3147 = vmul.f32 1.0, %v3146
    %v3148 = vrcp.pop %v3104
    %v3149 = vmul.f32 1.0, %v3148
    %v3150 = vrcp.pop %v3105
    %v3151 = vmul.f32 1.0, %v3150
    %v3152 = vrcp.pop %v3106
    %v3153 = vmul.f32 1.0, %v3152
    %v3154 = vrcp.pop %v3107
    %v3155 = vmul.f32 1.0, %v3154
    %v3156 = vrcp.pop %v3108
    %v3157 = vmul.f32 1.0, %v3156
    %v3158 = vrcp.pop %v3109
    %v3159 = vmul.f32 1.0, %v3158
    %v3160 = vrcp.pop %v3110
    %v3161 = vmul.f32 1.0, %v3160
    %v3162 = vrcp.pop %v3111
    %v3163 = vmul.f32 1.0, %v3162
    %v3164 = vrcp.pop %v3112
    %v3165 = vmul.f32 1.0, %v3164
    %v3166 = vrcp.pop %v3113
    %v3167 = vmul.f32 1.0, %v3166
    %v3168 = vrcp.pop %v3114
    %v3169 = vmul.f32 1.0, %v3168
    %v3170 = vrcp.pop %v3115
    %v3171 = vmul.f32 1.0, %v3170
    %v3172 = vrcp.pop %v3116
    %v3173 = vmul.f32 1.0, %v3172
    %v3174 = vrcp.pop %v3117
    %v3175 = vmul.f32 1.0, %v3174
    %v3176 = vrcp.pop %v3118
    %v3177 = vmul.f32 1.0, %v3176
    %v3178 = vrcp.pop %v3119
    %v3179 = vmul.f32 1.0, %v3178
    %v3180 = vrcp.pop %v3120
    %v3181 = vmul.f32 1.0, %v3180
    %v3182 = vrcp.pop %v3121
    %v3183 = vmul.f32 1.0, %v3182
    %v3184 = vrcp.pop %v3122
    %v3185 = vmul.f32 1.0, %v3184
    %v3186 = vrcp.pop %v3123
    %v3187 = vmul.f32 1.0, %v3186
    %v3188 = vmul.f32 %v2242, %v3125
    %v3189 = vmul.f32 %v2243, %v3127
    %v3190 = vmul.f32 %v2244, %v3129
    %v3191 = vmul.f32 %v2245, %v3131
    %v3192 = vmul.f32 %v2246, %v3133
    %v3193 = vmul.f32 %v2247, %v3135
    %v3194 = vmul.f32 %v2248, %v3137
    %v3195 = vmul.f32 %v2249, %v3139
    %v3196 = vmul.f32 %v2250, %v3141
    %v3197 = vmul.f32 %v2251, %v3143
    %v3198 = vmul.f32 %v2252, %v3145
    %v3199 = vmul.f32 %v2253, %v3147
    %v3200 = vmul.f32 %v2254, %v3149
    %v3201 = vmul.f32 %v2255, %v3151
    %v3202 = vmul.f32 %v2256, %v3153
    %v3203 = vmul.f32 %v2257, %v3155
    %v3204 = vmul.f32 %v2258, %v3157
    %v3205 = vmul.f32 %v2259, %v3159
    %v3206 = vmul.f32 %v2260, %v3161
    %v3207 = vmul.f32 %v2261, %v3163
    %v3208 = vmul.f32 %v2262, %v3165
    %v3209 = vmul.f32 %v2263, %v3167
    %v3210 = vmul.f32 %v2264, %v3169
    %v3211 = vmul.f32 %v2265, %v3171
    %v3212 = vmul.f32 %v2266, %v3173
    %v3213 = vmul.f32 %v2267, %v3175
    %v3214 = vmul.f32 %v2268, %v3177
    %v3215 = vmul.f32 %v2269, %v3179
    %v3216 = vmul.f32 %v2270, %v3181
    %v3217 = vmul.f32 %v2271, %v3183
    %v3218 = vmul.f32 %v2272, %v3185
    %v3219 = vmul.f32 %v2273, %v3187
    %3220 = vmatprep.subr.mxu0 0.0
    %3221 = vmatpush1.xpose.msra.mxu0 0.0
    %3222 = vmatprep.subr.mxu0 0.0
    %3223 = vmatpush1.xpose.msra.mxu0 0.0
    %3224 = vmatprep.subr.mxu0 0.0
    %3225 = vmatpush1.xpose.msra.mxu0 0.0
    %3226 = vmatprep.subr.mxu0 0.0
    %3227 = vmatpush1.xpose.msra.mxu0 0.0
    %3228 = vmatprep.subr.mxu0 0.0
    %3229 = vmatpush1.xpose.msra.mxu0 0.0
    %3230 = vmatprep.subr.mxu0 0.0
    %3231 = vmatpush1.xpose.msra.mxu0 0.0
    %3232 = vmatprep.subr.mxu0 0.0
    %3233 = vmatpush1.xpose.msra.mxu0 0.0
    %3234 = vmatprep.subr.mxu0 0.0
    %3235 = vmatpush1.xpose.msra.mxu0 0.0
    %3236 = vmatprep.subr.mxu0 0.0
    %3237 = vmatpush1.xpose.msra.mxu0 0.0
    %3238 = vmatprep.subr.mxu0 0.0
    %3239 = vmatpush1.xpose.msra.mxu0 0.0
    %3240 = vmatprep.subr.mxu0 0.0
    %3241 = vmatpush1.xpose.msra.mxu0 0.0
    %3242 = vmatprep.subr.mxu0 0.0
    %3243 = vmatpush1.xpose.msra.mxu0 0.0
    %3244 = vmatprep.subr.mxu0 %v3213
    %3245 = vmatpush1.xpose.msra.mxu0 %v3212
    %3246 = vmatprep.subr.mxu0 %v3205
    %3247 = vmatpush1.xpose.msra.mxu0 %v3204
    %3248 = vmatprep.subr.mxu0 %v3197
    %3249 = vmatpush1.xpose.msra.mxu0 %v3196
    %3250 = vmatprep.subr.mxu0 %v3189
    %3251 = vmatpush1.xpose.msra.mxu0 %v3188
    %3252 = vmatprep.subr.mxu0 0.0
    %3253 = vmatpush2.xpose.msra.mxu0 0.0
    %3254 = vmatprep.subr.mxu0 0.0
    %3255 = vmatpush2.xpose.msra.mxu0 0.0
    %3256 = vmatprep.subr.mxu0 0.0
    %3257 = vmatpush2.xpose.msra.mxu0 0.0
    %3258 = vmatprep.subr.mxu0 0.0
    %3259 = vmatpush2.xpose.msra.mxu0 0.0
    %3260 = vmatprep.subr.mxu0 0.0
    %3261 = vmatpush2.xpose.msra.mxu0 0.0
    %3262 = vmatprep.subr.mxu0 0.0
    %3263 = vmatpush2.xpose.msra.mxu0 0.0
    %3264 = vmatprep.subr.mxu0 0.0
    %3265 = vmatpush2.xpose.msra.mxu0 0.0
    %3266 = vmatprep.subr.mxu0 0.0
    %3267 = vmatpush2.xpose.msra.mxu0 0.0
    %3268 = vmatprep.subr.mxu0 0.0
    %3269 = vmatpush2.xpose.msra.mxu0 0.0
    %3270 = vmatprep.subr.mxu0 0.0
    %3271 = vmatpush2.xpose.msra.mxu0 0.0
    %3272 = vmatprep.subr.mxu0 0.0
    %3273 = vmatpush2.xpose.msra.mxu0 0.0
    %3274 = vmatprep.subr.mxu0 0.0
    %3275 = vmatpush2.xpose.msra.mxu0 0.0
    %3276 = vmatprep.subr.mxu0 0.0
    %3277 = vmatpush2.xpose.msra.mxu0 0.0
    %3278 = vmatprep.subr.mxu0 0.0
    %3279 = vmatpush2.xpose.msra.mxu0 0.0
    %3280 = vmatprep.subr.mxu0 0.0
    %3281 = vmatpush2.xpose.msra.mxu0 0.0
    %3282 = vmatprep.subr.mxu0 0.0
    %3283 = vmatpush2.xpose.msra.mxu0 0.0
    %3284 = vmatprep.mubr.f32.mxu0 %v93
    %3285 = vmatmul.mubr.f32.gmra.mxu0 %v92
    %v3286 = vpop.f32.mrf.mxu0
    %v3287 = vadd.f32 0.0, %v3286
    %v3288 = vpop.f32.mrf.mxu0
    %3289 = vdwg.mxu0
    %3290 = vmatprep.subr.mxu0 0.0
    %3291 = vmatpush1.xpose.msra.mxu0 0.0
    %3292 = vmatprep.subr.mxu0 0.0
    %3293 = vmatpush1.xpose.msra.mxu0 0.0
    %3294 = vmatprep.subr.mxu0 0.0
    %3295 = vmatpush1.xpose.msra.mxu0 0.0
    %3296 = vmatprep.subr.mxu0 0.0
    %3297 = vmatpush1.xpose.msra.mxu0 0.0
    %3298 = vmatprep.subr.mxu0 0.0
    %3299 = vmatpush1.xpose.msra.mxu0 0.0
    %3300 = vmatprep.subr.mxu0 0.0
    %3301 = vmatpush1.xpose.msra.mxu0 0.0
    %3302 = vmatprep.subr.mxu0 0.0
    %3303 = vmatpush1.xpose.msra.mxu0 0.0
    %3304 = vmatprep.subr.mxu0 0.0
    %3305 = vmatpush1.xpose.msra.mxu0 0.0
    %3306 = vmatprep.subr.mxu0 0.0
    %3307 = vmatpush1.xpose.msra.mxu0 0.0
    %3308 = vmatprep.subr.mxu0 0.0
    %3309 = vmatpush1.xpose.msra.mxu0 0.0
    %3310 = vmatprep.subr.mxu0 0.0
    %3311 = vmatpush1.xpose.msra.mxu0 0.0
    %3312 = vmatprep.subr.mxu0 0.0
    %3313 = vmatpush1.xpose.msra.mxu0 0.0
    %3314 = vmatprep.subr.mxu0 %v3215
    %3315 = vmatpush1.xpose.msra.mxu0 %v3214
    %3316 = vmatprep.subr.mxu0 %v3207
    %3317 = vmatpush1.xpose.msra.mxu0 %v3206
    %3318 = vmatprep.subr.mxu0 %v3199
    %3319 = vmatpush1.xpose.msra.mxu0 %v3198
    %3320 = vmatprep.subr.mxu0 %v3191
    %3321 = vmatpush1.xpose.msra.mxu0 %v3190
    %3322 = vmatprep.subr.mxu0 0.0
    %3323 = vmatpush2.xpose.msra.mxu0 0.0
    %3324 = vmatprep.subr.mxu0 0.0
    %3325 = vmatpush2.xpose.msra.mxu0 0.0
    %3326 = vmatprep.subr.mxu0 0.0
    %3327 = vmatpush2.xpose.msra.mxu0 0.0
    %3328 = vmatprep.subr.mxu0 0.0
    %3329 = vmatpush2.xpose.msra.mxu0 0.0
    %3330 = vmatprep.subr.mxu0 0.0
    %3331 = vmatpush2.xpose.msra.mxu0 0.0
    %3332 = vmatprep.subr.mxu0 0.0
    %3333 = vmatpush2.xpose.msra.mxu0 0.0
    %3334 = vmatprep.subr.mxu0 0.0
    %3335 = vmatpush2.xpose.msra.mxu0 0.0
    %3336 = vmatprep.subr.mxu0 0.0
    %3337 = vmatpush2.xpose.msra.mxu0 0.0
    %3338 = vmatprep.subr.mxu0 0.0
    %3339 = vmatpush2.xpose.msra.mxu0 0.0
    %3340 = vmatprep.subr.mxu0 0.0
    %3341 = vmatpush2.xpose.msra.mxu0 0.0
    %3342 = vmatprep.subr.mxu0 0.0
    %3343 = vmatpush2.xpose.msra.mxu0 0.0
    %3344 = vmatprep.subr.mxu0 0.0
    %3345 = vmatpush2.xpose.msra.mxu0 0.0
    %3346 = vmatprep.subr.mxu0 0.0
    %3347 = vmatpush2.xpose.msra.mxu0 0.0
    %3348 = vmatprep.subr.mxu0 0.0
    %3349 = vmatpush2.xpose.msra.mxu0 0.0
    %3350 = vmatprep.subr.mxu0 0.0
    %3351 = vmatpush2.xpose.msra.mxu0 0.0
    %3352 = vmatprep.subr.mxu0 0.0
    %3353 = vmatpush2.xpose.msra.mxu0 0.0
    %3354 = vmatprep.mubr.f32.mxu0 %v95
    %3355 = vmatmul.mubr.f32.gmra.mxu0 %v94
    %v3356 = vpop.f32.mrf.mxu0
    %v3357 = vadd.f32 %v3287, %v3356
    %v3358 = vpop.f32.mrf.mxu0
    %3359 = vdwg.mxu0
    %3360 = vmatprep.subr.mxu0 0.0
    %3361 = vmatpush1.xpose.msra.mxu0 0.0
    %3362 = vmatprep.subr.mxu0 0.0
    %3363 = vmatpush1.xpose.msra.mxu0 0.0
    %3364 = vmatprep.subr.mxu0 0.0
    %3365 = vmatpush1.xpose.msra.mxu0 0.0
    %3366 = vmatprep.subr.mxu0 0.0
    %3367 = vmatpush1.xpose.msra.mxu0 0.0
    %3368 = vmatprep.subr.mxu0 0.0
    %3369 = vmatpush1.xpose.msra.mxu0 0.0
    %3370 = vmatprep.subr.mxu0 0.0
    %3371 = vmatpush1.xpose.msra.mxu0 0.0
    %3372 = vmatprep.subr.mxu0 0.0
    %3373 = vmatpush1.xpose.msra.mxu0 0.0
    %3374 = vmatprep.subr.mxu0 0.0
    %3375 = vmatpush1.xpose.msra.mxu0 0.0
    %3376 = vmatprep.subr.mxu0 0.0
    %3377 = vmatpush1.xpose.msra.mxu0 0.0
    %3378 = vmatprep.subr.mxu0 0.0
    %3379 = vmatpush1.xpose.msra.mxu0 0.0
    %3380 = vmatprep.subr.mxu0 0.0
    %3381 = vmatpush1.xpose.msra.mxu0 0.0
    %3382 = vmatprep.subr.mxu0 0.0
    %3383 = vmatpush1.xpose.msra.mxu0 0.0
    %3384 = vmatprep.subr.mxu0 %v3217
    %3385 = vmatpush1.xpose.msra.mxu0 %v3216
    %3386 = vmatprep.subr.mxu0 %v3209
    %3387 = vmatpush1.xpose.msra.mxu0 %v3208
    %3388 = vmatprep.subr.mxu0 %v3201
    %3389 = vmatpush1.xpose.msra.mxu0 %v3200
    %3390 = vmatprep.subr.mxu0 %v3193
    %3391 = vmatpush1.xpose.msra.mxu0 %v3192
    %3392 = vmatprep.subr.mxu0 0.0
    %3393 = vmatpush2.xpose.msra.mxu0 0.0
    %3394 = vmatprep.subr.mxu0 0.0
    %3395 = vmatpush2.xpose.msra.mxu0 0.0
    %3396 = vmatprep.subr.mxu0 0.0
    %3397 = vmatpush2.xpose.msra.mxu0 0.0
    %3398 = vmatprep.subr.mxu0 0.0
    %3399 = vmatpush2.xpose.msra.mxu0 0.0
    %3400 = vmatprep.subr.mxu0 0.0
    %3401 = vmatpush2.xpose.msra.mxu0 0.0
    %3402 = vmatprep.subr.mxu0 0.0
    %3403 = vmatpush2.xpose.msra.mxu0 0.0
    %3404 = vmatprep.subr.mxu0 0.0
    %3405 = vmatpush2.xpose.msra.mxu0 0.0
    %3406 = vmatprep.subr.mxu0 0.0
    %3407 = vmatpush2.xpose.msra.mxu0 0.0
    %3408 = vmatprep.subr.mxu0 0.0
    %3409 = vmatpush2.xpose.msra.mxu0 0.0
    %3410 = vmatprep.subr.mxu0 0.0
    %3411 = vmatpush2.xpose.msra.mxu0 0.0
    %3412 = vmatprep.subr.mxu0 0.0
    %3413 = vmatpush2.xpose.msra.mxu0 0.0
    %3414 = vmatprep.subr.mxu0 0.0
    %3415 = vmatpush2.xpose.msra.mxu0 0.0
    %3416 = vmatprep.subr.mxu0 0.0
    %3417 = vmatpush2.xpose.msra.mxu0 0.0
    %3418 = vmatprep.subr.mxu0 0.0
    %3419 = vmatpush2.xpose.msra.mxu0 0.0
    %3420 = vmatprep.subr.mxu0 0.0
    %3421 = vmatpush2.xpose.msra.mxu0 0.0
    %3422 = vmatprep.subr.mxu0 0.0
    %3423 = vmatpush2.xpose.msra.mxu0 0.0
    %3424 = vmatprep.mubr.f32.mxu0 %v97
    %3425 = vmatmul.mubr.f32.gmra.mxu0 %v96
    %v3426 = vpop.f32.mrf.mxu0
    %v3427 = vadd.f32 %v3357, %v3426
    %v3428 = vpop.f32.mrf.mxu0
    %3429 = vdwg.mxu0
    %3430 = vmatprep.subr.mxu0 0.0
    %3431 = vmatpush1.xpose.msra.mxu0 0.0
    %3432 = vmatprep.subr.mxu0 0.0
    %3433 = vmatpush1.xpose.msra.mxu0 0.0
    %3434 = vmatprep.subr.mxu0 0.0
    %3435 = vmatpush1.xpose.msra.mxu0 0.0
    %3436 = vmatprep.subr.mxu0 0.0
    %3437 = vmatpush1.xpose.msra.mxu0 0.0
    %3438 = vmatprep.subr.mxu0 0.0
    %3439 = vmatpush1.xpose.msra.mxu0 0.0
    %3440 = vmatprep.subr.mxu0 0.0
    %3441 = vmatpush1.xpose.msra.mxu0 0.0
    %3442 = vmatprep.subr.mxu0 0.0
    %3443 = vmatpush1.xpose.msra.mxu0 0.0
    %3444 = vmatprep.subr.mxu0 0.0
    %3445 = vmatpush1.xpose.msra.mxu0 0.0
    %3446 = vmatprep.subr.mxu0 0.0
    %3447 = vmatpush1.xpose.msra.mxu0 0.0
    %3448 = vmatprep.subr.mxu0 0.0
    %3449 = vmatpush1.xpose.msra.mxu0 0.0
    %3450 = vmatprep.subr.mxu0 0.0
    %3451 = vmatpush1.xpose.msra.mxu0 0.0
    %3452 = vmatprep.subr.mxu0 0.0
    %3453 = vmatpush1.xpose.msra.mxu0 0.0
    %3454 = vmatprep.subr.mxu0 %v3219
    %3455 = vmatpush1.xpose.msra.mxu0 %v3218
    %3456 = vmatprep.subr.mxu0 %v3211
    %3457 = vmatpush1.xpose.msra.mxu0 %v3210
    %3458 = vmatprep.subr.mxu0 %v3203
    %3459 = vmatpush1.xpose.msra.mxu0 %v3202
    %3460 = vmatprep.subr.mxu0 %v3195
    %3461 = vmatpush1.xpose.msra.mxu0 %v3194
    %3462 = vmatprep.subr.mxu0 0.0
    %3463 = vmatpush2.xpose.msra.mxu0 0.0
    %3464 = vmatprep.subr.mxu0 0.0
    %3465 = vmatpush2.xpose.msra.mxu0 0.0
    %3466 = vmatprep.subr.mxu0 0.0
    %3467 = vmatpush2.xpose.msra.mxu0 0.0
    %3468 = vmatprep.subr.mxu0 0.0
    %3469 = vmatpush2.xpose.msra.mxu0 0.0
    %3470 = vmatprep.subr.mxu0 0.0
    %3471 = vmatpush2.xpose.msra.mxu0 0.0
    %3472 = vmatprep.subr.mxu0 0.0
    %3473 = vmatpush2.xpose.msra.mxu0 0.0
    %3474 = vmatprep.subr.mxu0 0.0
    %3475 = vmatpush2.xpose.msra.mxu0 0.0
    %3476 = vmatprep.subr.mxu0 0.0
    %3477 = vmatpush2.xpose.msra.mxu0 0.0
    %3478 = vmatprep.subr.mxu0 0.0
    %3479 = vmatpush2.xpose.msra.mxu0 0.0
    %3480 = vmatprep.subr.mxu0 0.0
    %3481 = vmatpush2.xpose.msra.mxu0 0.0
    %3482 = vmatprep.subr.mxu0 0.0
    %3483 = vmatpush2.xpose.msra.mxu0 0.0
    %3484 = vmatprep.subr.mxu0 0.0
    %3485 = vmatpush2.xpose.msra.mxu0 0.0
    %3486 = vmatprep.subr.mxu0 0.0
    %3487 = vmatpush2.xpose.msra.mxu0 0.0
    %3488 = vmatprep.subr.mxu0 0.0
    %3489 = vmatpush2.xpose.msra.mxu0 0.0
    %3490 = vmatprep.subr.mxu0 0.0
    %3491 = vmatpush2.xpose.msra.mxu0 0.0
    %3492 = vmatprep.subr.mxu0 0.0
    %3493 = vmatpush2.xpose.msra.mxu0 0.0
    %3494 = vmatprep.mubr.f32.mxu0 %v99
    %3495 = vmatmul.mubr.f32.gmra.mxu0 %v98
    %v3496 = vpop.f32.mrf.mxu0
    %v3497 = vadd.f32 %v3427, %v3496
    %v3498 = vpop.f32.mrf.mxu0
    %3499 = vdwg.mxu0
    %3500 = vst.msk [vmem:[#allocation6] sm:$0xff] %vm1640, %v3497
    %v3501 = vpack.c.bf16 %v3497, %v3497
    %v3502 = vld [vmem:[%s15] sm:$0xff]
    %v3503 = vld [vmem:[%s15 + $0x8] sm:$0xff]
    %v3504 = vld [vmem:[%s15 + $0x10] sm:$0xff]
    %v3505 = vld [vmem:[%s15 + $0x18] sm:$0xff]
    %v3510 = vunpack.c.l.b16 %v3502
    %v3511 = vunpack.c.h.b16 %v3502
    %v3512 = vunpack.c.l.b16 %v3503
    %v3513 = vunpack.c.h.b16 %v3503
    %v3514 = vunpack.c.l.b16 %v3504
    %v3515 = vunpack.c.h.b16 %v3504
    %v3516 = vunpack.c.l.b16 %v3505
    %v3517 = vunpack.c.h.b16 %v3505
    %v3518 = vpack.c.b16 %v3512, %v3510
    %v3519 = vpack.c.b16 %v3513, %v3511
    %v3520 = vpack.c.b16 %v3516, %v3514
    %v3521 = vpack.c.b16 %v3517, %v3515
    %v3527 = vsel %vm1640, %v3501, 0
    %3529 = vmatprep.subr.bf16.mxu0 0
    %3530 = vmatpush1.bf16.msra.mxu0 0
    %3531 = vmatprep.subr.bf16.mxu0 0
    %3532 = vmatpush1.bf16.msra.mxu0 0
    %3533 = vmatprep.subr.bf16.mxu0 0
    %3534 = vmatpush1.bf16.msra.mxu0 0
    %3535 = vmatprep.subr.bf16.mxu0 0
    %3536 = vmatpush1.bf16.msra.mxu0 0
    %3537 = vmatprep.subr.bf16.mxu0 0
    %3538 = vmatpush1.bf16.msra.mxu0 0
    %3539 = vmatprep.subr.bf16.mxu0 0
    %3540 = vmatpush1.bf16.msra.mxu0 0
    %3541 = vmatprep.subr.bf16.mxu0 %v3521
    %3542 = vmatpush1.bf16.msra.mxu0 %v3520
    %3543 = vmatprep.subr.bf16.mxu0 %v3519
    %3544 = vmatpush1.bf16.msra.mxu0 %v3518
    %3545 = vmatprep.subr.bf16.mxu0 0
    %3546 = vmatpush2.bf16.msra.mxu0 0
    %3547 = vmatprep.subr.bf16.mxu0 0
    %3548 = vmatpush2.bf16.msra.mxu0 0
    %3549 = vmatprep.subr.bf16.mxu0 0
    %3550 = vmatpush2.bf16.msra.mxu0 0
    %3551 = vmatprep.subr.bf16.mxu0 0
    %3552 = vmatpush2.bf16.msra.mxu0 0
    %3553 = vmatprep.subr.bf16.mxu0 0
    %3554 = vmatpush2.bf16.msra.mxu0 0
    %3555 = vmatprep.subr.bf16.mxu0 0
    %3556 = vmatpush2.bf16.msra.mxu0 0
    %3557 = vmatprep.subr.bf16.mxu0 0
    %3558 = vmatpush2.bf16.msra.mxu0 0
    %3559 = vmatprep.subr.bf16.mxu0 0
    %3560 = vmatpush2.bf16.msra.mxu0 0
    %3561 = vmatprep.mubr.bf16.mxu0 0
    %3562 = vmatmul.mubr.bf16.gmra.mxu0 %v3527
    %v3563 = vpop.f32.mrf.mxu0
    %v3564 = vadd.f32 0.0, %v3563
    %v3565 = vpop.f32.mrf.mxu0
    %v3566 = vadd.f32 0.0, %v3565
    %v3567 = vpop.f32.mrf.mxu0
    %v3568 = vpop.f32.mrf.mxu0
    %3569 = vdwg.mxu0
    %v3570 = vld [vmem:[%s16] sm:$0x3]
    %v3572 = vlaneseq
    %v3573 = vshrl.u32 %v3572, 7
    %v3574 = vsub.s32 0, %v3573
    %v3575 = vrot.slane %v3570, %v3574
    %v3576 = vlaneseq
    %v3577 = vshrl.u32 %v3576, 7
    %v3578 = vsub.s32 1, %v3577
    %v3579 = vrot.slane %v3570, %v3578
    %v3582 = vmul.f32 %v3564, %v3575
    %v3583 = vmul.f32 %v3566, %v3579
    %v3584 = vld [vmem:[%s17] sm:$0x3]
    %v3586 = vlaneseq
    %v3587 = vshrl.u32 %v3586, 7
    %v3588 = vsub.s32 0, %v3587
    %v3589 = vrot.slane %v3584, %v3588
    %v3590 = vlaneseq
    %v3591 = vshrl.u32 %v3590, 7
    %v3592 = vsub.s32 1, %v3591
    %v3593 = vrot.slane %v3584, %v3592
    %v3596 = vadd.f32 %v3582, %v3589
    %v3597 = vadd.f32 %v3583, %v3593
    %v3598 = vxor.u32 %v3596, 2147483648
    %v3599 = vxor.u32 %v3597, 2147483648
    %v3600 = vmul.f32 %v3598, 1.442695
    %v3601 = vpow.pop %v3600
    %v3602 = vmul.f32 %v3599, 1.442695
    %v3603 = vpow.pop %v3602
    %v3604 = vadd.f32 %v3601, 1.0
    %v3605 = vadd.f32 %v3603, 1.0
    %v3606 = vrcp.pop %v3604
    %v3607 = vmul.f32 1.0, %v3606
    %v3608 = vrcp.pop %v3605
    %v3609 = vmul.f32 1.0, %v3608
    %v3610 = vmul.f32 %v3596, %v3607
    %v3611 = vmul.f32 %v3597, %v3609
    %v3612 = vpack.c.bf16 %v3610, %v3610
    %v3613 = vpack.c.bf16 %v3611, %v3611
    %v3614 = vld [vmem:[#allocation2] sm:$0xff]
    %v3615 = vld [vmem:[#allocation2 + $0x8] sm:$0xff]
    %v3616 = vld [vmem:[#allocation2 + $0x10] sm:$0xff]
    %v3617 = vld [vmem:[#allocation2 + $0x18] sm:$0xff]
    %v3618 = vld [vmem:[#allocation2 + $0x20] sm:$0xff]
    %v3619 = vld [vmem:[#allocation2 + $0x28] sm:$0xff]
    %v3620 = vld [vmem:[#allocation2 + $0x30] sm:$0xff]
    %v3621 = vld [vmem:[#allocation2 + $0x38] sm:$0xff]
    %v3622 = vld [vmem:[#allocation2 + $0x40] sm:$0xff]
    %v3623 = vld [vmem:[#allocation2 + $0x48] sm:$0xff]
    %v3624 = vld [vmem:[#allocation2 + $0x50] sm:$0xff]
    %v3625 = vld [vmem:[#allocation2 + $0x58] sm:$0xff]
    %v3626 = vld [vmem:[#allocation2 + $0x60] sm:$0xff]
    %v3627 = vld [vmem:[#allocation2 + $0x68] sm:$0xff]
    %v3628 = vld [vmem:[#allocation2 + $0x70] sm:$0xff]
    %v3629 = vld [vmem:[#allocation2 + $0x78] sm:$0xff]
    %v3630 = vld [vmem:[#allocation2 + $0x80] sm:$0xff]
    %v3631 = vld [vmem:[#allocation2 + $0x88] sm:$0xff]
    %v3632 = vld [vmem:[#allocation2 + $0x90] sm:$0xff]
    %v3633 = vld [vmem:[#allocation2 + $0x98] sm:$0xff]
    %v3634 = vld [vmem:[#allocation2 + $0xa0] sm:$0xff]
    %v3635 = vld [vmem:[#allocation2 + $0xa8] sm:$0xff]
    %v3636 = vld [vmem:[#allocation2 + $0xb0] sm:$0xff]
    %v3637 = vld [vmem:[#allocation2 + $0xb8] sm:$0xff]
    %v3638 = vld [vmem:[#allocation2 + $0xc0] sm:$0xff]
    %v3639 = vld [vmem:[#allocation2 + $0xc8] sm:$0xff]
    %v3640 = vld [vmem:[#allocation2 + $0xd0] sm:$0xff]
    %v3641 = vld [vmem:[#allocation2 + $0xd8] sm:$0xff]
    %v3642 = vld [vmem:[#allocation2 + $0xe0] sm:$0xff]
    %v3643 = vld [vmem:[#allocation2 + $0xe8] sm:$0xff]
    %v3644 = vld [vmem:[#allocation2 + $0xf0] sm:$0xff]
    %v3645 = vld [vmem:[#allocation2 + $0xf8] sm:$0xff]
    %v3646 = vld [vmem:[%s19] sm:$0x3]
    %v3648 = vlaneseq
    %v3649 = vshrl.u32 %v3648, 7
    %v3650 = vsub.s32 0, %v3649
    %v3651 = vrot.slane %v3646, %v3650
    %v3652 = vlaneseq
    %v3653 = vshrl.u32 %v3652, 7
    %v3654 = vsub.s32 1, %v3653
    %v3655 = vrot.slane %v3646, %v3654
    %v3690 = vunpack.c.l.b16 %v3614
    %v3691 = vunpack.c.h.b16 %v3614
    %v3692 = vunpack.c.l.b16 %v3615
    %v3693 = vunpack.c.h.b16 %v3615
    %v3694 = vunpack.c.l.b16 %v3616
    %v3695 = vunpack.c.h.b16 %v3616
    %v3696 = vunpack.c.l.b16 %v3617
    %v3697 = vunpack.c.h.b16 %v3617
    %v3698 = vunpack.c.l.b16 %v3618
    %v3699 = vunpack.c.h.b16 %v3618
    %v3700 = vunpack.c.l.b16 %v3619
    %v3701 = vunpack.c.h.b16 %v3619
    %v3702 = vunpack.c.l.b16 %v3620
    %v3703 = vunpack.c.h.b16 %v3620
    %v3704 = vunpack.c.l.b16 %v3621
    %v3705 = vunpack.c.h.b16 %v3621
    %v3706 = vunpack.c.l.b16 %v3622
    %v3707 = vunpack.c.h.b16 %v3622
    %v3708 = vunpack.c.l.b16 %v3623
    %v3709 = vunpack.c.h.b16 %v3623
    %v3710 = vunpack.c.l.b16 %v3624
    %v3711 = vunpack.c.h.b16 %v3624
    %v3712 = vunpack.c.l.b16 %v3625
    %v3713 = vunpack.c.h.b16 %v3625
    %v3714 = vunpack.c.l.b16 %v3626
    %v3715 = vunpack.c.h.b16 %v3626
    %v3716 = vunpack.c.l.b16 %v3627
    %v3717 = vunpack.c.h.b16 %v3627
    %v3718 = vunpack.c.l.b16 %v3628
    %v3719 = vunpack.c.h.b16 %v3628
    %v3720 = vunpack.c.l.b16 %v3629
    %v3721 = vunpack.c.h.b16 %v3629
    %v3722 = vunpack.c.l.b16 %v3630
    %v3723 = vunpack.c.h.b16 %v3630
    %v3724 = vunpack.c.l.b16 %v3631
    %v3725 = vunpack.c.h.b16 %v3631
    %v3726 = vunpack.c.l.b16 %v3632
    %v3727 = vunpack.c.h.b16 %v3632
    %v3728 = vunpack.c.l.b16 %v3633
    %v3729 = vunpack.c.h.b16 %v3633
    %v3730 = vunpack.c.l.b16 %v3634
    %v3731 = vunpack.c.h.b16 %v3634
    %v3732 = vunpack.c.l.b16 %v3635
    %v3733 = vunpack.c.h.b16 %v3635
    %v3734 = vunpack.c.l.b16 %v3636
    %v3735 = vunpack.c.h.b16 %v3636
    %v3736 = vunpack.c.l.b16 %v3637
    %v3737 = vunpack.c.h.b16 %v3637
    %v3738 = vunpack.c.l.b16 %v3638
    %v3739 = vunpack.c.h.b16 %v3638
    %v3740 = vunpack.c.l.b16 %v3639
    %v3741 = vunpack.c.h.b16 %v3639
    %v3742 = vunpack.c.l.b16 %v3640
    %v3743 = vunpack.c.h.b16 %v3640
    %v3744 = vunpack.c.l.b16 %v3641
    %v3745 = vunpack.c.h.b16 %v3641
    %v3746 = vunpack.c.l.b16 %v3642
    %v3747 = vunpack.c.h.b16 %v3642
    %v3748 = vunpack.c.l.b16 %v3643
    %v3749 = vunpack.c.h.b16 %v3643
    %v3750 = vunpack.c.l.b16 %v3644
    %v3751 = vunpack.c.h.b16 %v3644
    %v3752 = vunpack.c.l.b16 %v3645
    %v3753 = vunpack.c.h.b16 %v3645
    %v3754 = vpack.c.b16 %v3692, %v3690
    %v3755 = vpack.c.b16 %v3693, %v3691
    %v3756 = vpack.c.b16 %v3696, %v3694
    %v3757 = vpack.c.b16 %v3697, %v3695
    %v3758 = vpack.c.b16 %v3700, %v3698
    %v3759 = vpack.c.b16 %v3701, %v3699
    %v3760 = vpack.c.b16 %v3704, %v3702
    %v3761 = vpack.c.b16 %v3705, %v3703
    %v3762 = vpack.c.b16 %v3708, %v3706
    %v3763 = vpack.c.b16 %v3709, %v3707
    %v3764 = vpack.c.b16 %v3712, %v3710
    %v3765 = vpack.c.b16 %v3713, %v3711
    %v3766 = vpack.c.b16 %v3716, %v3714
    %v3767 = vpack.c.b16 %v3717, %v3715
    %v3768 = vpack.c.b16 %v3720, %v3718
    %v3769 = vpack.c.b16 %v3721, %v3719
    %v3770 = vpack.c.b16 %v3724, %v3722
    %v3771 = vpack.c.b16 %v3725, %v3723
    %v3772 = vpack.c.b16 %v3728, %v3726
    %v3773 = vpack.c.b16 %v3729, %v3727
    %v3774 = vpack.c.b16 %v3732, %v3730
    %v3775 = vpack.c.b16 %v3733, %v3731
    %v3776 = vpack.c.b16 %v3736, %v3734
    %v3777 = vpack.c.b16 %v3737, %v3735
    %v3778 = vpack.c.b16 %v3740, %v3738
    %v3779 = vpack.c.b16 %v3741, %v3739
    %v3780 = vpack.c.b16 %v3744, %v3742
    %v3781 = vpack.c.b16 %v3745, %v3743
    %v3782 = vpack.c.b16 %v3748, %v3746
    %v3783 = vpack.c.b16 %v3749, %v3747
    %v3784 = vpack.c.b16 %v3752, %v3750
    %v3785 = vpack.c.b16 %v3753, %v3751
    %3818 = vmatprep.subr.bf16.mxu0 %v3769
    %3819 = vmatpush1.bf16.msra.mxu0 %v3768
    %3820 = vmatprep.subr.bf16.mxu0 %v3767
    %3821 = vmatpush1.bf16.msra.mxu0 %v3766
    %3822 = vmatprep.subr.bf16.mxu0 %v3765
    %3823 = vmatpush1.bf16.msra.mxu0 %v3764
    %3824 = vmatprep.subr.bf16.mxu0 %v3763
    %3825 = vmatpush1.bf16.msra.mxu0 %v3762
    %3826 = vmatprep.subr.bf16.mxu0 %v3761
    %3827 = vmatpush1.bf16.msra.mxu0 %v3760
    %3828 = vmatprep.subr.bf16.mxu0 %v3759
    %3829 = vmatpush1.bf16.msra.mxu0 %v3758
    %3830 = vmatprep.subr.bf16.mxu0 %v3757
    %3831 = vmatpush1.bf16.msra.mxu0 %v3756
    %3832 = vmatprep.subr.bf16.mxu0 %v3755
    %3833 = vmatpush1.bf16.msra.mxu0 %v3754
    %3834 = vmatprep.subr.bf16.mxu0 %v3785
    %3835 = vmatpush2.bf16.msra.mxu0 %v3784
    %3836 = vmatprep.subr.bf16.mxu0 %v3783
    %3837 = vmatpush2.bf16.msra.mxu0 %v3782
    %3838 = vmatprep.subr.bf16.mxu0 %v3781
    %3839 = vmatpush2.bf16.msra.mxu0 %v3780
    %3840 = vmatprep.subr.bf16.mxu0 %v3779
    %3841 = vmatpush2.bf16.msra.mxu0 %v3778
    %3842 = vmatprep.subr.bf16.mxu0 %v3777
    %3843 = vmatpush2.bf16.msra.mxu0 %v3776
    %3844 = vmatprep.subr.bf16.mxu0 %v3775
    %3845 = vmatpush2.bf16.msra.mxu0 %v3774
    %3846 = vmatprep.subr.bf16.mxu0 %v3773
    %3847 = vmatpush2.bf16.msra.mxu0 %v3772
    %3848 = vmatprep.subr.bf16.mxu0 %v3771
    %3849 = vmatpush2.bf16.msra.mxu0 %v3770
    %3850 = vmatprep.mubr.bf16.mxu0 %v3613
    %3851 = vmatmul.mubr.bf16.gmra.mxu0 %v3612
    %v3852 = vpop.f32.mrf.mxu0
    %v3853 = vadd.f32 %v3651, %v3852
    %v3854 = vpop.f32.mrf.mxu0
    %v3855 = vadd.f32 %v3655, %v3854
    %v3856 = vpop.f32.mrf.mxu0
    %v3857 = vpop.f32.mrf.mxu0
    %3858 = vdwg.mxu0
    %v3859 = vadd.f32 %v3596, %v3853
    %v3860 = vadd.f32 %v3597, %v3855
    %v3861 = vadd.f32 %v3859, %v3860
    %3862 = vadd.xlane.f32.xlu0 %v3861
    %v3863 = vpop.xlane.xlu0 %3862
    %v3864 = vrcp.pop 256.0
    %v3865 = vmul.f32 %v3863, %v3864
    %v3866 = vsub.f32 %v3859, %v3865
    %v3867 = vsub.f32 %v3860, %v3865
    %v3868 = vmul.f32 %v3866, %v3866
    %v3869 = vmul.f32 %v3867, %v3867
    %v3870 = vadd.f32 %v3868, %v3869
    %3871 = vadd.xlane.f32.xlu0 %v3870
    %v3872 = vpop.xlane.xlu0 %3871
    %v3873 = vmul.f32 %v3872, %v3864
    %v3874 = vadd.f32 %v3873, 1e-05
    %v3875 = vrsqrt.pop %v3874
    %v3876 = vmul.f32 %v3866, %v3875
    %v3877 = vmul.f32 %v3867, %v3875
    %v3878 = vld [vmem:[%s20] sm:$0x3]
    %v3880 = vlaneseq
    %v3881 = vshrl.u32 %v3880, 7
    %v3882 = vsub.s32 0, %v3881
    %v3883 = vrot.slane %v3878, %v3882
    %v3884 = vlaneseq
    %v3885 = vshrl.u32 %v3884, 7
    %v3886 = vsub.s32 1, %v3885
    %v3887 = vrot.slane %v3878, %v3886
    %v3890 = vmul.f32 %v3876, %v3883
    %v3891 = vmul.f32 %v3877, %v3887
    %v3892 = vld [vmem:[%s21] sm:$0x3]
    %v3894 = vlaneseq
    %v3895 = vshrl.u32 %v3894, 7
    %v3896 = vsub.s32 0, %v3895
    %v3897 = vrot.slane %v3892, %v3896
    %v3898 = vlaneseq
    %v3899 = vshrl.u32 %v3898, 7
    %v3900 = vsub.s32 1, %v3899
    %v3901 = vrot.slane %v3892, %v3900
    %v3904 = vadd.f32 %v3890, %v3897
    %v3905 = vadd.f32 %v3891, %v3901
    %3906 = vst [vmem:[#allocation5] sm:$0xff] %v3904
    %3907 = vst [vmem:[#allocation5 + $0x8] sm:$0xff] %v3905
    // Predicated region
    $region94: #{tpu_custom_call.1} parent=1 // pred_check
      _
    $region95: #{tpu_custom_call.1} parent=1 // pred_check_branch
      %3909 = sbr.rel (0) target = $region97
    $region96: #{tpu_custom_call.1} parent=1 // pred_region
      %s3911 = ssub.s32 256, 256
      %3912 = vsyncadd [#allocation4], %s3911
      %s3914 = sshll.u32 [#allocation5], 4
      %s3915 = int_to_ptr.vmem [resolvable:$true] %s3914
      %3917 = dma.vmem_to_hbm [thread:$0]  %s3915, 256, %s22, [#allocation4]
    $region97: #{tpu_custom_call.1} parent=1 // pred_fallthru
      _
    // Predicated region
    $region98: #{tpu_custom_call.1} parent=1 // pred_check
      _
    $region99: #{tpu_custom_call.1} parent=1 // pred_check_branch
      %3919 = sbr.rel (0) target = $region101
    $region100: #{tpu_custom_call.1} parent=1 // pred_region
      %s3921 = ssub.s32 128, 128
      %3922 = vsyncadd [#allocation7], %s3921
      %s3924 = sshll.u32 [#allocation6], 4
      %s3925 = int_to_ptr.vmem [resolvable:$true] %s3924
      %3927 = dma.vmem_to_hbm [thread:$0]  %s3925, 128, %s23, [#allocation7]
    $region101: #{tpu_custom_call.1} parent=1 // pred_fallthru
      _
    // Predicated region
    $region102: #{tpu_custom_call.1} parent=1 // pred_check
      _
    $region103: #{tpu_custom_call.1} parent=1 // pred_check_branch
      %3929 = sbr.rel (0) target = $region105
    $region104: #{tpu_custom_call.1} parent=1 // pred_region
      %3930 = dma.done [#allocation4], 256
    $region105: #{tpu_custom_call.1} parent=1 // pred_fallthru
      _
    // Predicated region
    $region106: #{tpu_custom_call.1} parent=1 // pred_check
      _
    $region107: #{tpu_custom_call.1} parent=1 // pred_check_branch
      %3932 = sbr.rel (0) target = $region109
    $region108: #{tpu_custom_call.1} parent=1 // pred_region
      %3933 = dma.done [#allocation7], 128
    $region109: #{tpu_custom_call.1} parent=1 // pred_fallthru
      _
    %3934 = vsyncpa [#allocation3], 1
    %3935 = vsyncpa [#allocation4], 1
    %3936 = vsyncpa [#allocation7], 1

</llo_original>
